<compile_context>
chip_gen: v5e
topology: v5e:2x2
jax: 0.10.0
libtpu: 0.0.40
codegen_flags: <defaults>
</compile_context>

<pallas_src>
import functools

import jax
import jax.numpy as jnp
from jax.experimental import pallas as pl
from jax.experimental.pallas import tpu as pltpu

EPS = 1e-5
NEG_SLOPE = 0.1


# ---------------------------------------------------------------------------
# Fused kernel:
#   stage 0:  3x3 / stride-2 / pad-1 conv (Cin -> Cin)   + BN + LeakyReLU
#   stage 1:  3x3 / stride-1 / pad-1 conv (Cin -> Cmid)  + BN + LeakyReLU
#   stage 2:  3x3 / stride-1 / pad-1 conv (Cmid -> Cout) + BN + LeakyReLU
# Activations live as (P, C) matrices, P = N*Hd*Wd (=128 for the test shape).
# ---------------------------------------------------------------------------
def _down_kernel(xcol_ref, w0_ref, w1_ref, w2_ref,
                 g0_ref, be0_ref, g1_ref, be1_ref, g2_ref, be2_ref,
                 o_ref,
                 pad1_ref, col1_ref, pad2_ref, col2_ref,
                 *, N, Hd, Wd, C0, C1, C2):
    P = N * Hd * Wd

    def bn_lrelu(y, gamma, beta):
        # Training-mode BN, single pass: var = E[x^2] - mean^2 (biased),
        # then one FMA per element + LeakyReLU(0.1) as a max.
        mean = jnp.mean(y, axis=0, keepdims=True)              # (1, C)
        mean_sq = jnp.mean(y * y, axis=0, keepdims=True)       # (1, C)
        var = mean_sq - mean * mean
        scale = gamma * jax.lax.rsqrt(var + EPS)               # (1, C)
        shift = beta - mean * scale                            # (1, C)
        z = y * scale + shift
        return jnp.maximum(z, NEG_SLOPE * z)

    def conv3x3_same(h, C, pad_ref, col_ref, w_mat):
        # h: (P, C).  Zero-pad spatially into VMEM scratch, build the im2col
        # patch matrix (P, 9*C) in VMEM scratch, then a single MXU matmul.
        pad_ref[...] = jnp.zeros_like(pad_ref)
        pad_ref[:, 1:Hd + 1, 1:Wd + 1, :] = h.reshape(N, Hd, Wd, C)
        for dy in range(3):
            for dx in range(3):
                t = dy * 3 + dx
                col_ref[:, t * C:(t + 1) * C] = (
                    pad_ref[:, dy:dy + Hd, dx:dx + Wd, :].reshape(P, C))
        return jnp.dot(col_ref[...], w_mat,
                       preferred_element_type=jnp.float32)

    # -- stage 0: stride-2 down-conv (im2col built by the wrapper) ----------
    h = jnp.dot(xcol_ref[...], w0_ref[...],
                preferred_element_type=jnp.float32)            # (P, C0)
    h = bn_lrelu(h, g0_ref[...], be0_ref[...])

    # -- stage 1: DoubleConv first conv --------------------------------------
    h = conv3x3_same(h, C0, pad1_ref, col1_ref, w1_ref[...])   # (P, C1)
    h = bn_lrelu(h, g1_ref[...], be1_ref[...])

    # -- stage 2: DoubleConv second conv -------------------------------------
    h = conv3x3_same(h, C1, pad2_ref, col2_ref, w2_ref[...])   # (P, C2)
    h = bn_lrelu(h, g2_ref[...], be2_ref[...])

    o_ref[...] = h                                             # (P, C2)


# ---------------------------------------------------------------------------
# Wrapper: layout plumbing + stride-2 im2col of the raw input, one pallas_call.
# ---------------------------------------------------------------------------
def down_forward(x_nchw, params):
    """Down(in_ch, out_ch): (N, Cin, H, W) -> (N, Cout, ceil(H/2), ceil(W/2))."""
    N, Cin, H, W = x_nchw.shape
    Cmid = params["w1"].shape[-1]
    Cout = params["w2"].shape[-1]
    Hd = (H + 2 - 3) // 2 + 1
    Wd = (W + 2 - 3) // 2 + 1
    P = N * Hd * Wd

    # ---- tiny XLA prep on the raw input (8 KB): pad + stride-2 im2col ------
    x = jnp.transpose(x_nchw, (0, 2, 3, 1)).astype(jnp.float32)   # NHWC
    xp = jnp.pad(x, ((0, 0), (1, 1), (1, 1), (0, 0)))
    taps = [xp[:, dy:dy + 2 * (Hd - 1) + 1:2, dx:dx + 2 * (Wd - 1) + 1:2, :]
            for dy in range(3) for dx in range(3)]
    xcol = jnp.concatenate(taps, axis=-1).reshape(P, 9 * Cin)     # (P, 9*Cin)

    # conv weights (kH, kW, Cin, Cout) -> (9*Cin, Cout) matmul operands
    w0 = params["w0"].reshape(9 * Cin, Cin)
    w1 = params["w1"].reshape(9 * Cin, Cmid)
    w2 = params["w2"].reshape(9 * Cmid, Cout)

    kern = functools.partial(_down_kernel, N=N, Hd=Hd, Wd=Wd,
                             C0=Cin, C1=Cmid, C2=Cout)

    def full(shape):
        # full-array block at the single grid point
        return pl.BlockSpec(shape, lambda i: (0,) * len(shape))

    out = pl.pallas_call(
        kern,
        out_shape=jax.ShapeDtypeStruct((P, Cout), jnp.float32),
        grid=(1,),
        in_specs=[
            full((P, 9 * Cin)),                                   # im2col(x)
            full((9 * Cin, Cin)), full((9 * Cin, Cmid)), full((9 * Cmid, Cout)),
            full((1, Cin)), full((1, Cin)),                       # BN0 gamma/beta
            full((1, Cmid)), full((1, Cmid)),                     # BN1 gamma/beta
            full((1, Cout)), full((1, Cout)),                     # BN2 gamma/beta
        ],
        out_specs=full((P, Cout)),
        scratch_shapes=[
            pltpu.VMEM((N, Hd + 2, Wd + 2, Cin), jnp.float32),    # pad buf 1
            pltpu.VMEM((P, 9 * Cin), jnp.float32),                # im2col 1
            pltpu.VMEM((N, Hd + 2, Wd + 2, Cmid), jnp.float32),   # pad buf 2
            pltpu.VMEM((P, 9 * Cmid), jnp.float32),               # im2col 2
        ],
        compiler_params=pltpu.CompilerParams(
            dimension_semantics=("arbitrary",)),
    )(xcol, w0, w1, w2,
      params["g0"].reshape(1, Cin), params["beta0"].reshape(1, Cin),
      params["g1"].reshape(1, Cmid), params["beta1"].reshape(1, Cmid),
      params["g2"].reshape(1, Cout), params["beta2"].reshape(1, Cout))

    # (P, Cout) -> (N, Hd, Wd, Cout) -> NCHW
    return out.reshape(N, Hd, Wd, Cout).transpose(0, 3, 1, 2)


def init_params(key, in_channels, out_channels):
    """Parameters for Down(in_channels, out_channels).

    Conv weights are stored as (kH, kW, Cin, Cout) (= PyTorch
    weight.permute(2, 3, 1, 0)).  Conv biases are kept for interface parity
    with nn.Conv2d but are never applied: a per-channel constant added right
    before a training-mode BatchNorm is removed exactly by the batch-mean
    subtraction, so the forward output is identical without them.
    """
    mid = out_channels                         # DoubleConv default mid_channels
    ks = jax.random.split(key, 6)
    return dict(
        w0=0.1 * jax.random.normal(ks[0], (3, 3, in_channels, in_channels), jnp.float32),
        b0=0.1 * jax.random.normal(ks[1], (in_channels,), jnp.float32),   # unused (cancelled by BN)
        g0=jnp.ones((in_channels,), jnp.float32),
        beta0=jnp.zeros((in_channels,), jnp.float32),
        w1=0.1 * jax.random.normal(ks[2], (3, 3, in_channels, mid), jnp.float32),
        b1=0.1 * jax.random.normal(ks[3], (mid,), jnp.float32),           # unused (cancelled by BN)
        g1=jnp.ones((mid,), jnp.float32),
        beta1=jnp.zeros((mid,), jnp.float32),
        w2=0.1 * jax.random.normal(ks[4], (3, 3, mid, out_channels), jnp.float32),
        b2=0.1 * jax.random.normal(ks[5], (out_channels,), jnp.float32),  # unused (cancelled by BN)
        g2=jnp.ones((out_channels,), jnp.float32),
        beta2=jnp.zeros((out_channels,), jnp.float32),
    )


def _reference_forward(x_nchw, params):
    """Pure-XLA reference (same math, no Pallas) for a correctness check."""
    def conv(y, w, stride):
        return jax.lax.conv_general_dilated(
            y, w, window_strides=(stride, stride), padding=((1, 1), (1, 1)),
            dimension_numbers=("NCHW", "HWIO", "NCHW"))

    def bn_lrelu(y, g, b):
        mean = y.mean(axis=(0, 2, 3), keepdims=True)
        var = ((y - mean) ** 2).mean(axis=(0, 2, 3), keepdims=True)
        z = (y - mean) * jax.lax.rsqrt(var + EPS) * g.reshape(1, -1, 1, 1) \
            + b.reshape(1, -1, 1, 1)
        return jnp.where(z > 0, z, NEG_SLOPE * z)

    y = bn_lrelu(conv(x_nchw, params["w0"], 2), params["g0"], params["beta0"])
    y = bn_lrelu(conv(y, params["w1"], 1), params["g1"], params["beta1"])
    y = bn_lrelu(conv(y, params["w2"], 1), params["g2"], params["beta2"])
    return y


if __name__ == "__main__":
    key = jax.random.PRNGKey(0)
    kx, kp = jax.random.split(key)

    N, Cin, H, W = 2, 4, 16, 16
    Cout = 8

    x = jax.random.normal(kx, (N, Cin, H, W), jnp.float32)
    params = init_params(kp, Cin, Cout)

    out = jax.jit(down_forward)(x, params)
    out = jax.block_until_ready(out)

    assert out.shape == (N, Cout, H // 2, W // 2), out.shape
    assert out.dtype == jnp.float32

    ref = _reference_forward(x, params)
    err = float(jnp.max(jnp.abs(out - ref)))
    assert err < 1e-3, f"max abs err vs XLA reference: {err}"

    print("KERNEL_OK")
</pallas_src>

<mosaic_0001>
module attributes {stable_mosaic.version = 11 : i64} {
  func.func @_down_kernel(%arg0: i32, %arg1: memref<128x36xf32, #tpu.memory_space<vmem>>, %arg2: memref<36x4xf32, #tpu.memory_space<vmem>>, %arg3: memref<36x8xf32, #tpu.memory_space<vmem>>, %arg4: memref<72x8xf32, #tpu.memory_space<vmem>>, %arg5: memref<1x4xf32, #tpu.memory_space<vmem>>, %arg6: memref<1x4xf32, #tpu.memory_space<vmem>>, %arg7: memref<1x8xf32, #tpu.memory_space<vmem>>, %arg8: memref<1x8xf32, #tpu.memory_space<vmem>>, %arg9: memref<1x8xf32, #tpu.memory_space<vmem>>, %arg10: memref<1x8xf32, #tpu.memory_space<vmem>>, %arg11: memref<128x8xf32, #tpu.memory_space<vmem>>, %arg12: memref<2x10x10x4xf32, #tpu.memory_space<vmem>>, %arg13: memref<128x36xf32, #tpu.memory_space<vmem>>, %arg14: memref<2x10x10x8xf32, #tpu.memory_space<vmem>>, %arg15: memref<128x72xf32, #tpu.memory_space<vmem>>) attributes {dimension_semantics = [#tpu.dimension_semantics<arbitrary>], iteration_bounds = array<i64: 1>, scalar_prefetch = 0 : i64, scratch_operands = 4 : i64, tpu.core_type = #tpu.core_type<tc>, window_params = [{pipeline_mode = #tpu.pipeline_mode<synchronous>, transform_indices = @transform_0, window_bounds = array<i64: 128, 36>}, {pipeline_mode = #tpu.pipeline_mode<synchronous>, transform_indices = @transform_1, window_bounds = array<i64: 36, 4>}, {pipeline_mode = #tpu.pipeline_mode<synchronous>, transform_indices = @transform_2, window_bounds = array<i64: 36, 8>}, {pipeline_mode = #tpu.pipeline_mode<synchronous>, transform_indices = @transform_3, window_bounds = array<i64: 72, 8>}, {pipeline_mode = #tpu.pipeline_mode<synchronous>, transform_indices = @transform_4, window_bounds = array<i64: 1, 4>}, {pipeline_mode = #tpu.pipeline_mode<synchronous>, transform_indices = @transform_5, window_bounds = array<i64: 1, 4>}, {pipeline_mode = #tpu.pipeline_mode<synchronous>, transform_indices = @transform_6, window_bounds = array<i64: 1, 8>}, {pipeline_mode = #tpu.pipeline_mode<synchronous>, transform_indices = @transform_7, window_bounds = array<i64: 1, 8>}, {pipeline_mode = #tpu.pipeline_mode<synchronous>, transform_indices = @transform_8, window_bounds = array<i64: 1, 8>}, {pipeline_mode = #tpu.pipeline_mode<synchronous>, transform_indices = @transform_9, window_bounds = array<i64: 1, 8>}, {pipeline_mode = #tpu.pipeline_mode<synchronous>, transform_indices = @transform_10, window_bounds = array<i64: 128, 8>}]} {
    %c0 = arith.constant 0 : index
    %c0_0 = arith.constant 0 : index
    %0 = vector.load %arg1[%c0, %c0_0] : memref<128x36xf32, #tpu.memory_space<vmem>>, vector<128x36xf32>
    %c0_1 = arith.constant 0 : index
    %c0_2 = arith.constant 0 : index
    %1 = vector.load %arg2[%c0_1, %c0_2] : memref<36x4xf32, #tpu.memory_space<vmem>>, vector<36x4xf32>
    %cst = arith.constant dense<0.000000e+00> : vector<128x4xf32>
    %2 = tpu.matmul %0, %1, %cst {dimension_numbers = #tpu.dot_dimension_numbers<[1], [0], [0], [1], [0, 0, 1, 1], [], []>} : vector<128x36xf32>, vector<36x4xf32>, vector<128x4xf32> -> vector<128x4xf32>
    %c0_3 = arith.constant 0 : index
    %c0_4 = arith.constant 0 : index
    %3 = vector.load %arg5[%c0_3, %c0_4] : memref<1x4xf32, #tpu.memory_space<vmem>>, vector<1x4xf32>
    %c0_5 = arith.constant 0 : index
    %c0_6 = arith.constant 0 : index
    %4 = vector.load %arg6[%c0_5, %c0_6] : memref<1x4xf32, #tpu.memory_space<vmem>>, vector<1x4xf32>
    %cst_7 = arith.constant dense<0.000000e+00> : vector<4xf32>
    %5 = vector.multi_reduction <add>, %2, %cst_7 [0] : vector<128x4xf32> to vector<4xf32>
    %6 = vector.shape_cast %5 : vector<4xf32> to vector<1x4xf32>
    %cst_8 = arith.constant 1.280000e+02 : f32
    %7 = vector.broadcast %cst_8 : f32 to vector<1x4xf32>
    %8 = arith.divf %6, %7 : vector<1x4xf32>
    %9 = arith.mulf %2, %2 : vector<128x4xf32>
    %cst_9 = arith.constant dense<0.000000e+00> : vector<4xf32>
    %10 = vector.multi_reduction <add>, %9, %cst_9 [0] : vector<128x4xf32> to vector<4xf32>
    %11 = vector.shape_cast %10 : vector<4xf32> to vector<1x4xf32>
    %cst_10 = arith.constant 1.280000e+02 : f32
    %12 = vector.broadcast %cst_10 : f32 to vector<1x4xf32>
    %13 = arith.divf %11, %12 : vector<1x4xf32>
    %14 = arith.mulf %8, %8 : vector<1x4xf32>
    %15 = arith.subf %13, %14 : vector<1x4xf32>
    %cst_11 = arith.constant 9.99999974E-6 : f32
    %16 = vector.broadcast %cst_11 : f32 to vector<1x4xf32>
    %17 = arith.addf %15, %16 : vector<1x4xf32>
    %18 = math.rsqrt %17 : vector<1x4xf32>
    %19 = arith.mulf %3, %18 : vector<1x4xf32>
    %20 = arith.mulf %8, %19 : vector<1x4xf32>
    %21 = arith.subf %4, %20 : vector<1x4xf32>
    %22 = vector.broadcast %19 : vector<1x4xf32> to vector<128x4xf32>
    %23 = arith.mulf %2, %22 : vector<128x4xf32>
    %24 = vector.broadcast %21 : vector<1x4xf32> to vector<128x4xf32>
    %25 = arith.addf %23, %24 : vector<128x4xf32>
    %cst_12 = arith.constant 1.000000e-01 : f32
    %26 = vector.broadcast %cst_12 : f32 to vector<128x4xf32>
    %27 = arith.mulf %26, %25 : vector<128x4xf32>
    %28 = arith.maximumf %25, %27 : vector<128x4xf32>
    %c0_13 = arith.constant 0 : index
    %c0_14 = arith.constant 0 : index
    %29 = vector.load %arg3[%c0_13, %c0_14] : memref<36x8xf32, #tpu.memory_space<vmem>>, vector<36x8xf32>
    %cst_15 = arith.constant 0.000000e+00 : f32
    %30 = vector.broadcast %cst_15 : f32 to vector<2x10x10x4xf32>
    %c0_16 = arith.constant 0 : index
    %c0_17 = arith.constant 0 : index
    %c0_18 = arith.constant 0 : index
    %c0_19 = arith.constant 0 : index
    %31 = vector.load %arg12[%c0_16, %c0_17, %c0_18, %c0_19] : memref<2x10x10x4xf32, #tpu.memory_space<vmem>>, vector<2x10x10x4xf32>
    tpu.vector_store %arg12[%c0_16, %c0_17, %c0_18, %c0_19], %30 {strides = array<i32>} : memref<2x10x10x4xf32, #tpu.memory_space<vmem>>, vector<2x10x10x4xf32>,
    %32 = vector.shape_cast %28 : vector<128x4xf32> to vector<2x8x8x4xf32>
    %c0_20 = arith.constant 0 : index
    %c1 = arith.constant 1 : index
    %c1_21 = arith.constant 1 : index
    %c0_22 = arith.constant 0 : index
    %33 = vector.load %arg12[%c0_20, %c1, %c1_21, %c0_22] : memref<2x10x10x4xf32, #tpu.memory_space<vmem>>, vector<2x8x8x4xf32>
    tpu.vector_store %arg12[%c0_20, %c1, %c1_21, %c0_22], %32 {strides = array<i32>} : memref<2x10x10x4xf32, #tpu.memory_space<vmem>>, vector<2x8x8x4xf32>,
    %c0_23 = arith.constant 0 : index
    %c0_24 = arith.constant 0 : index
    %c0_25 = arith.constant 0 : index
    %c0_26 = arith.constant 0 : index
    %34 = vector.load %arg12[%c0_23, %c0_24, %c0_25, %c0_26] : memref<2x10x10x4xf32, #tpu.memory_space<vmem>>, vector<2x8x8x4xf32>
    %35 = vector.shape_cast %34 : vector<2x8x8x4xf32> to vector<128x4xf32>
    %c0_27 = arith.constant 0 : index
    %c0_28 = arith.constant 0 : index
    %36 = vector.load %arg13[%c0_27, %c0_28] : memref<128x36xf32, #tpu.memory_space<vmem>>, vector<128x4xf32>
    tpu.vector_store %arg13[%c0_27, %c0_28], %35 {strides = array<i32>} : memref<128x36xf32, #tpu.memory_space<vmem>>, vector<128x4xf32>,
    %c0_29 = arith.constant 0 : index
    %c0_30 = arith.constant 0 : index
    %c1_31 = arith.constant 1 : index
    %c0_32 = arith.constant 0 : index
    %37 = vector.load %arg12[%c0_29, %c0_30, %c1_31, %c0_32] : memref<2x10x10x4xf32, #tpu.memory_space<vmem>>, vector<2x8x8x4xf32>
    %38 = vector.shape_cast %37 : vector<2x8x8x4xf32> to vector<128x4xf32>
    %c0_33 = arith.constant 0 : index
    %c4 = arith.constant 4 : index
    %39 = vector.load %arg13[%c0_33, %c4] : memref<128x36xf32, #tpu.memory_space<vmem>>, vector<128x4xf32>
    tpu.vector_store %arg13[%c0_33, %c4], %38 {strides = array<i32>} : memref<128x36xf32, #tpu.memory_space<vmem>>, vector<128x4xf32>,
    %c0_34 = arith.constant 0 : index
    %c0_35 = arith.constant 0 : index
    %c2 = arith.constant 2 : index
    %c0_36 = arith.constant 0 : index
    %40 = vector.load %arg12[%c0_34, %c0_35, %c2, %c0_36] : memref<2x10x10x4xf32, #tpu.memory_space<vmem>>, vector<2x8x8x4xf32>
    %41 = vector.shape_cast %40 : vector<2x8x8x4xf32> to vector<128x4xf32>
    %c0_37 = arith.constant 0 : index
    %c8 = arith.constant 8 : index
    %42 = vector.load %arg13[%c0_37, %c8] : memref<128x36xf32, #tpu.memory_space<vmem>>, vector<128x4xf32>
    tpu.vector_store %arg13[%c0_37, %c8], %41 {strides = array<i32>} : memref<128x36xf32, #tpu.memory_space<vmem>>, vector<128x4xf32>,
    %c0_38 = arith.constant 0 : index
    %c1_39 = arith.constant 1 : index
    %c0_40 = arith.constant 0 : index
    %c0_41 = arith.constant 0 : index
    %43 = vector.load %arg12[%c0_38, %c1_39, %c0_40, %c0_41] : memref<2x10x10x4xf32, #tpu.memory_space<vmem>>, vector<2x8x8x4xf32>
    %44 = vector.shape_cast %43 : vector<2x8x8x4xf32> to vector<128x4xf32>
    %c0_42 = arith.constant 0 : index
    %c12 = arith.constant 12 : index
    %45 = vector.load %arg13[%c0_42, %c12] : memref<128x36xf32, #tpu.memory_space<vmem>>, vector<128x4xf32>
    tpu.vector_store %arg13[%c0_42, %c12], %44 {strides = array<i32>} : memref<128x36xf32, #tpu.memory_space<vmem>>, vector<128x4xf32>,
    %c0_43 = arith.constant 0 : index
    %c1_44 = arith.constant 1 : index
    %c1_45 = arith.constant 1 : index
    %c0_46 = arith.constant 0 : index
    %46 = vector.load %arg12[%c0_43, %c1_44, %c1_45, %c0_46] : memref<2x10x10x4xf32, #tpu.memory_space<vmem>>, vector<2x8x8x4xf32>
    %47 = vector.shape_cast %46 : vector<2x8x8x4xf32> to vector<128x4xf32>
    %c0_47 = arith.constant 0 : index
    %c16 = arith.constant 16 : index
    %48 = vector.load %arg13[%c0_47, %c16] : memref<128x36xf32, #tpu.memory_space<vmem>>, vector<128x4xf32>
    tpu.vector_store %arg13[%c0_47, %c16], %47 {strides = array<i32>} : memref<128x36xf32, #tpu.memory_space<vmem>>, vector<128x4xf32>,
    %c0_48 = arith.constant 0 : index
    %c1_49 = arith.constant 1 : index
    %c2_50 = arith.constant 2 : index
    %c0_51 = arith.constant 0 : index
    %49 = vector.load %arg12[%c0_48, %c1_49, %c2_50, %c0_51] : memref<2x10x10x4xf32, #tpu.memory_space<vmem>>, vector<2x8x8x4xf32>
    %50 = vector.shape_cast %49 : vector<2x8x8x4xf32> to vector<128x4xf32>
    %c0_52 = arith.constant 0 : index
    %c20 = arith.constant 20 : index
    %51 = vector.load %arg13[%c0_52, %c20] : memref<128x36xf32, #tpu.memory_space<vmem>>, vector<128x4xf32>
    tpu.vector_store %arg13[%c0_52, %c20], %50 {strides = array<i32>} : memref<128x36xf32, #tpu.memory_space<vmem>>, vector<128x4xf32>,
    %c0_53 = arith.constant 0 : index
    %c2_54 = arith.constant 2 : index
    %c0_55 = arith.constant 0 : index
    %c0_56 = arith.constant 0 : index
    %52 = vector.load %arg12[%c0_53, %c2_54, %c0_55, %c0_56] : memref<2x10x10x4xf32, #tpu.memory_space<vmem>>, vector<2x8x8x4xf32>
    %53 = vector.shape_cast %52 : vector<2x8x8x4xf32> to vector<128x4xf32>
    %c0_57 = arith.constant 0 : index
    %c24 = arith.constant 24 : index
    %54 = vector.load %arg13[%c0_57, %c24] : memref<128x36xf32, #tpu.memory_space<vmem>>, vector<128x4xf32>
    tpu.vector_store %arg13[%c0_57, %c24], %53 {strides = array<i32>} : memref<128x36xf32, #tpu.memory_space<vmem>>, vector<128x4xf32>,
    %c0_58 = arith.constant 0 : index
    %c2_59 = arith.constant 2 : index
    %c1_60 = arith.constant 1 : index
    %c0_61 = arith.constant 0 : index
    %55 = vector.load %arg12[%c0_58, %c2_59, %c1_60, %c0_61] : memref<2x10x10x4xf32, #tpu.memory_space<vmem>>, vector<2x8x8x4xf32>
    %56 = vector.shape_cast %55 : vector<2x8x8x4xf32> to vector<128x4xf32>
    %c0_62 = arith.constant 0 : index
    %c28 = arith.constant 28 : index
    %57 = vector.load %arg13[%c0_62, %c28] : memref<128x36xf32, #tpu.memory_space<vmem>>, vector<128x4xf32>
    tpu.vector_store %arg13[%c0_62, %c28], %56 {strides = array<i32>} : memref<128x36xf32, #tpu.memory_space<vmem>>, vector<128x4xf32>,
    %c0_63 = arith.constant 0 : index
    %c2_64 = arith.constant 2 : index
    %c2_65 = arith.constant 2 : index
    %c0_66 = arith.constant 0 : index
    %58 = vector.load %arg12[%c0_63, %c2_64, %c2_65, %c0_66] : memref<2x10x10x4xf32, #tpu.memory_space<vmem>>, vector<2x8x8x4xf32>
    %59 = vector.shape_cast %58 : vector<2x8x8x4xf32> to vector<128x4xf32>
    %c0_67 = arith.constant 0 : index
    %c32 = arith.constant 32 : index
    %60 = vector.load %arg13[%c0_67, %c32] : memref<128x36xf32, #tpu.memory_space<vmem>>, vector<128x4xf32>
    tpu.vector_store %arg13[%c0_67, %c32], %59 {strides = array<i32>} : memref<128x36xf32, #tpu.memory_space<vmem>>, vector<128x4xf32>,
    %c0_68 = arith.constant 0 : index
    %c0_69 = arith.constant 0 : index
    %61 = vector.load %arg13[%c0_68, %c0_69] : memref<128x36xf32, #tpu.memory_space<vmem>>, vector<128x36xf32>
    %cst_70 = arith.constant dense<0.000000e+00> : vector<128x8xf32>
    %62 = tpu.matmul %61, %29, %cst_70 {dimension_numbers = #tpu.dot_dimension_numbers<[1], [0], [0], [1], [0, 0, 1, 1], [], []>} : vector<128x36xf32>, vector<36x8xf32>, vector<128x8xf32> -> vector<128x8xf32>
    %c0_71 = arith.constant 0 : index
    %c0_72 = arith.constant 0 : index
    %63 = vector.load %arg7[%c0_71, %c0_72] : memref<1x8xf32, #tpu.memory_space<vmem>>, vector<1x8xf32>
    %c0_73 = arith.constant 0 : index
    %c0_74 = arith.constant 0 : index
    %64 = vector.load %arg8[%c0_73, %c0_74] : memref<1x8xf32, #tpu.memory_space<vmem>>, vector<1x8xf32>
    %cst_75 = arith.constant dense<0.000000e+00> : vector<8xf32>
    %65 = vector.multi_reduction <add>, %62, %cst_75 [0] : vector<128x8xf32> to vector<8xf32>
    %66 = vector.shape_cast %65 : vector<8xf32> to vector<1x8xf32>
    %cst_76 = arith.constant 1.280000e+02 : f32
    %67 = vector.broadcast %cst_76 : f32 to vector<1x8xf32>
    %68 = arith.divf %66, %67 : vector<1x8xf32>
    %69 = arith.mulf %62, %62 : vector<128x8xf32>
    %cst_77 = arith.constant dense<0.000000e+00> : vector<8xf32>
    %70 = vector.multi_reduction <add>, %69, %cst_77 [0] : vector<128x8xf32> to vector<8xf32>
    %71 = vector.shape_cast %70 : vector<8xf32> to vector<1x8xf32>
    %cst_78 = arith.constant 1.280000e+02 : f32
    %72 = vector.broadcast %cst_78 : f32 to vector<1x8xf32>
    %73 = arith.divf %71, %72 : vector<1x8xf32>
    %74 = arith.mulf %68, %68 : vector<1x8xf32>
    %75 = arith.subf %73, %74 : vector<1x8xf32>
    %cst_79 = arith.constant 9.99999974E-6 : f32
    %76 = vector.broadcast %cst_79 : f32 to vector<1x8xf32>
    %77 = arith.addf %75, %76 : vector<1x8xf32>
    %78 = math.rsqrt %77 : vector<1x8xf32>
    %79 = arith.mulf %63, %78 : vector<1x8xf32>
    %80 = arith.mulf %68, %79 : vector<1x8xf32>
    %81 = arith.subf %64, %80 : vector<1x8xf32>
    %82 = vector.broadcast %79 : vector<1x8xf32> to vector<128x8xf32>
    %83 = arith.mulf %62, %82 : vector<128x8xf32>
    %84 = vector.broadcast %81 : vector<1x8xf32> to vector<128x8xf32>
    %85 = arith.addf %83, %84 : vector<128x8xf32>
    %cst_80 = arith.constant 1.000000e-01 : f32
    %86 = vector.broadcast %cst_80 : f32 to vector<128x8xf32>
    %87 = arith.mulf %86, %85 : vector<128x8xf32>
    %88 = arith.maximumf %85, %87 : vector<128x8xf32>
    %c0_81 = arith.constant 0 : index
    %c0_82 = arith.constant 0 : index
    %89 = vector.load %arg4[%c0_81, %c0_82] : memref<72x8xf32, #tpu.memory_space<vmem>>, vector<72x8xf32>
    %cst_83 = arith.constant 0.000000e+00 : f32
    %90 = vector.broadcast %cst_83 : f32 to vector<2x10x10x8xf32>
    %c0_84 = arith.constant 0 : index
    %c0_85 = arith.constant 0 : index
    %c0_86 = arith.constant 0 : index
    %c0_87 = arith.constant 0 : index
    %91 = vector.load %arg14[%c0_84, %c0_85, %c0_86, %c0_87] : memref<2x10x10x8xf32, #tpu.memory_space<vmem>>, vector<2x10x10x8xf32>
    tpu.vector_store %arg14[%c0_84, %c0_85, %c0_86, %c0_87], %90 {strides = array<i32>} : memref<2x10x10x8xf32, #tpu.memory_space<vmem>>, vector<2x10x10x8xf32>,
    %92 = vector.shape_cast %88 : vector<128x8xf32> to vector<2x8x8x8xf32>
    %c0_88 = arith.constant 0 : index
    %c1_89 = arith.constant 1 : index
    %c1_90 = arith.constant 1 : index
    %c0_91 = arith.constant 0 : index
    %93 = vector.load %arg14[%c0_88, %c1_89, %c1_90, %c0_91] : memref<2x10x10x8xf32, #tpu.memory_space<vmem>>, vector<2x8x8x8xf32>
    tpu.vector_store %arg14[%c0_88, %c1_89, %c1_90, %c0_91], %92 {strides = array<i32>} : memref<2x10x10x8xf32, #tpu.memory_space<vmem>>, vector<2x8x8x8xf32>,
    %c0_92 = arith.constant 0 : index
    %c0_93 = arith.constant 0 : index
    %c0_94 = arith.constant 0 : index
    %c0_95 = arith.constant 0 : index
    %94 = vector.load %arg14[%c0_92, %c0_93, %c0_94, %c0_95] : memref<2x10x10x8xf32, #tpu.memory_space<vmem>>, vector<2x8x8x8xf32>
    %95 = vector.shape_cast %94 : vector<2x8x8x8xf32> to vector<128x8xf32>
    %c0_96 = arith.constant 0 : index
    %c0_97 = arith.constant 0 : index
    %96 = vector.load %arg15[%c0_96, %c0_97] : memref<128x72xf32, #tpu.memory_space<vmem>>, vector<128x8xf32>
    tpu.vector_store %arg15[%c0_96, %c0_97], %95 {strides = array<i32>} : memref<128x72xf32, #tpu.memory_space<vmem>>, vector<128x8xf32>,
    %c0_98 = arith.constant 0 : index
    %c0_99 = arith.constant 0 : index
    %c1_100 = arith.constant 1 : index
    %c0_101 = arith.constant 0 : index
    %97 = vector.load %arg14[%c0_98, %c0_99, %c1_100, %c0_101] : memref<2x10x10x8xf32, #tpu.memory_space<vmem>>, vector<2x8x8x8xf32>
    %98 = vector.shape_cast %97 : vector<2x8x8x8xf32> to vector<128x8xf32>
    %c0_102 = arith.constant 0 : index
    %c8_103 = arith.constant 8 : index
    %99 = vector.load %arg15[%c0_102, %c8_103] : memref<128x72xf32, #tpu.memory_space<vmem>>, vector<128x8xf32>
    tpu.vector_store %arg15[%c0_102, %c8_103], %98 {strides = array<i32>} : memref<128x72xf32, #tpu.memory_space<vmem>>, vector<128x8xf32>,
    %c0_104 = arith.constant 0 : index
    %c0_105 = arith.constant 0 : index
    %c2_106 = arith.constant 2 : index
    %c0_107 = arith.constant 0 : index
    %100 = vector.load %arg14[%c0_104, %c0_105, %c2_106, %c0_107] : memref<2x10x10x8xf32, #tpu.memory_space<vmem>>, vector<2x8x8x8xf32>
    %101 = vector.shape_cast %100 : vector<2x8x8x8xf32> to vector<128x8xf32>
    %c0_108 = arith.constant 0 : index
    %c16_109 = arith.constant 16 : index
    %102 = vector.load %arg15[%c0_108, %c16_109] : memref<128x72xf32, #tpu.memory_space<vmem>>, vector<128x8xf32>
    tpu.vector_store %arg15[%c0_108, %c16_109], %101 {strides = array<i32>} : memref<128x72xf32, #tpu.memory_space<vmem>>, vector<128x8xf32>,
    %c0_110 = arith.constant 0 : index
    %c1_111 = arith.constant 1 : index
    %c0_112 = arith.constant 0 : index
    %c0_113 = arith.constant 0 : index
    %103 = vector.load %arg14[%c0_110, %c1_111, %c0_112, %c0_113] : memref<2x10x10x8xf32, #tpu.memory_space<vmem>>, vector<2x8x8x8xf32>
    %104 = vector.shape_cast %103 : vector<2x8x8x8xf32> to vector<128x8xf32>
    %c0_114 = arith.constant 0 : index
    %c24_115 = arith.constant 24 : index
    %105 = vector.load %arg15[%c0_114, %c24_115] : memref<128x72xf32, #tpu.memory_space<vmem>>, vector<128x8xf32>
    tpu.vector_store %arg15[%c0_114, %c24_115], %104 {strides = array<i32>} : memref<128x72xf32, #tpu.memory_space<vmem>>, vector<128x8xf32>,
    %c0_116 = arith.constant 0 : index
    %c1_117 = arith.constant 1 : index
    %c1_118 = arith.constant 1 : index
    %c0_119 = arith.constant 0 : index
    %106 = vector.load %arg14[%c0_116, %c1_117, %c1_118, %c0_119] : memref<2x10x10x8xf32, #tpu.memory_space<vmem>>, vector<2x8x8x8xf32>
    %107 = vector.shape_cast %106 : vector<2x8x8x8xf32> to vector<128x8xf32>
    %c0_120 = arith.constant 0 : index
    %c32_121 = arith.constant 32 : index
    %108 = vector.load %arg15[%c0_120, %c32_121] : memref<128x72xf32, #tpu.memory_space<vmem>>, vector<128x8xf32>
    tpu.vector_store %arg15[%c0_120, %c32_121], %107 {strides = array<i32>} : memref<128x72xf32, #tpu.memory_space<vmem>>, vector<128x8xf32>,
    %c0_122 = arith.constant 0 : index
    %c1_123 = arith.constant 1 : index
    %c2_124 = arith.constant 2 : index
    %c0_125 = arith.constant 0 : index
    %109 = vector.load %arg14[%c0_122, %c1_123, %c2_124, %c0_125] : memref<2x10x10x8xf32, #tpu.memory_space<vmem>>, vector<2x8x8x8xf32>
    %110 = vector.shape_cast %109 : vector<2x8x8x8xf32> to vector<128x8xf32>
    %c0_126 = arith.constant 0 : index
    %c40 = arith.constant 40 : index
    %111 = vector.load %arg15[%c0_126, %c40] : memref<128x72xf32, #tpu.memory_space<vmem>>, vector<128x8xf32>
    tpu.vector_store %arg15[%c0_126, %c40], %110 {strides = array<i32>} : memref<128x72xf32, #tpu.memory_space<vmem>>, vector<128x8xf32>,
    %c0_127 = arith.constant 0 : index
    %c2_128 = arith.constant 2 : index
    %c0_129 = arith.constant 0 : index
    %c0_130 = arith.constant 0 : index
    %112 = vector.load %arg14[%c0_127, %c2_128, %c0_129, %c0_130] : memref<2x10x10x8xf32, #tpu.memory_space<vmem>>, vector<2x8x8x8xf32>
    %113 = vector.shape_cast %112 : vector<2x8x8x8xf32> to vector<128x8xf32>
    %c0_131 = arith.constant 0 : index
    %c48 = arith.constant 48 : index
    %114 = vector.load %arg15[%c0_131, %c48] : memref<128x72xf32, #tpu.memory_space<vmem>>, vector<128x8xf32>
    tpu.vector_store %arg15[%c0_131, %c48], %113 {strides = array<i32>} : memref<128x72xf32, #tpu.memory_space<vmem>>, vector<128x8xf32>,
    %c0_132 = arith.constant 0 : index
    %c2_133 = arith.constant 2 : index
    %c1_134 = arith.constant 1 : index
    %c0_135 = arith.constant 0 : index
    %115 = vector.load %arg14[%c0_132, %c2_133, %c1_134, %c0_135] : memref<2x10x10x8xf32, #tpu.memory_space<vmem>>, vector<2x8x8x8xf32>
    %116 = vector.shape_cast %115 : vector<2x8x8x8xf32> to vector<128x8xf32>
    %c0_136 = arith.constant 0 : index
    %c56 = arith.constant 56 : index
    %117 = vector.load %arg15[%c0_136, %c56] : memref<128x72xf32, #tpu.memory_space<vmem>>, vector<128x8xf32>
    tpu.vector_store %arg15[%c0_136, %c56], %116 {strides = array<i32>} : memref<128x72xf32, #tpu.memory_space<vmem>>, vector<128x8xf32>,
    %c0_137 = arith.constant 0 : index
    %c2_138 = arith.constant 2 : index
    %c2_139 = arith.constant 2 : index
    %c0_140 = arith.constant 0 : index
    %118 = vector.load %arg14[%c0_137, %c2_138, %c2_139, %c0_140] : memref<2x10x10x8xf32, #tpu.memory_space<vmem>>, vector<2x8x8x8xf32>
    %119 = vector.shape_cast %118 : vector<2x8x8x8xf32> to vector<128x8xf32>
    %c0_141 = arith.constant 0 : index
    %c64 = arith.constant 64 : index
    %120 = vector.load %arg15[%c0_141, %c64] : memref<128x72xf32, #tpu.memory_space<vmem>>, vector<128x8xf32>
    tpu.vector_store %arg15[%c0_141, %c64], %119 {strides = array<i32>} : memref<128x72xf32, #tpu.memory_space<vmem>>, vector<128x8xf32>,
    %c0_142 = arith.constant 0 : index
    %c0_143 = arith.constant 0 : index
    %121 = vector.load %arg15[%c0_142, %c0_143] : memref<128x72xf32, #tpu.memory_space<vmem>>, vector<128x72xf32>
    %cst_144 = arith.constant dense<0.000000e+00> : vector<128x8xf32>
    %122 = tpu.matmul %121, %89, %cst_144 {dimension_numbers = #tpu.dot_dimension_numbers<[1], [0], [0], [1], [0, 0, 1, 1], [], []>} : vector<128x72xf32>, vector<72x8xf32>, vector<128x8xf32> -> vector<128x8xf32>
    %c0_145 = arith.constant 0 : index
    %c0_146 = arith.constant 0 : index
    %123 = vector.load %arg9[%c0_145, %c0_146] : memref<1x8xf32, #tpu.memory_space<vmem>>, vector<1x8xf32>
    %c0_147 = arith.constant 0 : index
    %c0_148 = arith.constant 0 : index
    %124 = vector.load %arg10[%c0_147, %c0_148] : memref<1x8xf32, #tpu.memory_space<vmem>>, vector<1x8xf32>
    %cst_149 = arith.constant dense<0.000000e+00> : vector<8xf32>
    %125 = vector.multi_reduction <add>, %122, %cst_149 [0] : vector<128x8xf32> to vector<8xf32>
    %126 = vector.shape_cast %125 : vector<8xf32> to vector<1x8xf32>
    %cst_150 = arith.constant 1.280000e+02 : f32
    %127 = vector.broadcast %cst_150 : f32 to vector<1x8xf32>
    %128 = arith.divf %126, %127 : vector<1x8xf32>
    %129 = arith.mulf %122, %122 : vector<128x8xf32>
    %cst_151 = arith.constant dense<0.000000e+00> : vector<8xf32>
    %130 = vector.multi_reduction <add>, %129, %cst_151 [0] : vector<128x8xf32> to vector<8xf32>
    %131 = vector.shape_cast %130 : vector<8xf32> to vector<1x8xf32>
    %cst_152 = arith.constant 1.280000e+02 : f32
    %132 = vector.broadcast %cst_152 : f32 to vector<1x8xf32>
    %133 = arith.divf %131, %132 : vector<1x8xf32>
    %134 = arith.mulf %128, %128 : vector<1x8xf32>
    %135 = arith.subf %133, %134 : vector<1x8xf32>
    %cst_153 = arith.constant 9.99999974E-6 : f32
    %136 = vector.broadcast %cst_153 : f32 to vector<1x8xf32>
    %137 = arith.addf %135, %136 : vector<1x8xf32>
    %138 = math.rsqrt %137 : vector<1x8xf32>
    %139 = arith.mulf %123, %138 : vector<1x8xf32>
    %140 = arith.mulf %128, %139 : vector<1x8xf32>
    %141 = arith.subf %124, %140 : vector<1x8xf32>
    %142 = vector.broadcast %139 : vector<1x8xf32> to vector<128x8xf32>
    %143 = arith.mulf %122, %142 : vector<128x8xf32>
    %144 = vector.broadcast %141 : vector<1x8xf32> to vector<128x8xf32>
    %145 = arith.addf %143, %144 : vector<128x8xf32>
    %cst_154 = arith.constant 1.000000e-01 : f32
    %146 = vector.broadcast %cst_154 : f32 to vector<128x8xf32>
    %147 = arith.mulf %146, %145 : vector<128x8xf32>
    %148 = arith.maximumf %145, %147 : vector<128x8xf32>
    %c0_155 = arith.constant 0 : index
    %c0_156 = arith.constant 0 : index
    %149 = vector.load %arg11[%c0_155, %c0_156] : memref<128x8xf32, #tpu.memory_space<vmem>>, vector<128x8xf32>
    tpu.vector_store %arg11[%c0_155, %c0_156], %148 {strides = array<i32>} : memref<128x8xf32, #tpu.memory_space<vmem>>, vector<128x8xf32>,
    return
  }
  func.func @transform_0(%arg0: i32) -> (i32, i32) {
    %c0_i32 = arith.constant 0 : i32
    %c0_i32_0 = arith.constant 0 : i32
    %c0_i32_1 = arith.constant 0 : i32
    return %c0_i32, %c0_i32_0 : i32, i32
  }
  func.func @transform_1(%arg0: i32) -> (i32, i32) {
    %c0_i32 = arith.constant 0 : i32
    %c0_i32_0 = arith.constant 0 : i32
    %c0_i32_1 = arith.constant 0 : i32
    return %c0_i32, %c0_i32_0 : i32, i32
  }
  func.func @transform_2(%arg0: i32) -> (i32, i32) {
    %c0_i32 = arith.constant 0 : i32
    %c0_i32_0 = arith.constant 0 : i32
    %c0_i32_1 = arith.constant 0 : i32
    return %c0_i32, %c0_i32_0 : i32, i32
  }
  func.func @transform_3(%arg0: i32) -> (i32, i32) {
    %c0_i32 = arith.constant 0 : i32
    %c0_i32_0 = arith.constant 0 : i32
    %c0_i32_1 = arith.constant 0 : i32
    return %c0_i32, %c0_i32_0 : i32, i32
  }
  func.func @transform_4(%arg0: i32) -> (i32, i32) {
    %c0_i32 = arith.constant 0 : i32
    %c0_i32_0 = arith.constant 0 : i32
    %c0_i32_1 = arith.constant 0 : i32
    return %c0_i32, %c0_i32_0 : i32, i32
  }
  func.func @transform_5(%arg0: i32) -> (i32, i32) {
    %c0_i32 = arith.constant 0 : i32
    %c0_i32_0 = arith.constant 0 : i32
    %c0_i32_1 = arith.constant 0 : i32
    return %c0_i32, %c0_i32_0 : i32, i32
  }
  func.func @transform_6(%arg0: i32) -> (i32, i32) {
    %c0_i32 = arith.constant 0 : i32
    %c0_i32_0 = arith.constant 0 : i32
    %c0_i32_1 = arith.constant 0 : i32
    return %c0_i32, %c0_i32_0 : i32, i32
  }
  func.func @transform_7(%arg0: i32) -> (i32, i32) {
    %c0_i32 = arith.constant 0 : i32
    %c0_i32_0 = arith.constant 0 : i32
    %c0_i32_1 = arith.constant 0 : i32
    return %c0_i32, %c0_i32_0 : i32, i32
  }
  func.func @transform_8(%arg0: i32) -> (i32, i32) {
    %c0_i32 = arith.constant 0 : i32
    %c0_i32_0 = arith.constant 0 : i32
    %c0_i32_1 = arith.constant 0 : i32
    return %c0_i32, %c0_i32_0 : i32, i32
  }
  func.func @transform_9(%arg0: i32) -> (i32, i32) {
    %c0_i32 = arith.constant 0 : i32
    %c0_i32_0 = arith.constant 0 : i32
    %c0_i32_1 = arith.constant 0 : i32
    return %c0_i32, %c0_i32_0 : i32, i32
  }
  func.func @transform_10(%arg0: i32) -> (i32, i32) {
    %c0_i32 = arith.constant 0 : i32
    %c0_i32_0 = arith.constant 0 : i32
    %c0_i32_1 = arith.constant 0 : i32
    return %c0_i32, %c0_i32_0 : i32, i32
  }
}

</mosaic_0001>

<llo_original>
// kernel: down_forward.1
$region0: #{down_forward.1}
  #allocation0 [shape = 'u32[]', space=smem, size = 0x4, offset = 0x4, fixed_abs, tag = 'smem constant byte address 0x4 - core index']
  #allocation1 [shape = 'u32[72,128]{1,0:T(1,128)}', space=vmem, size = 0x9000, scoped, tag = 'internal scratch']
  #allocation2 [shape = 'f32[2,10,10,4]{3,2,1,0:T(8,128)}', space=vmem, size = 0x28000, scoped, tag = 'scratch operand']
  #allocation3 [shape = 'f32[128,36]{1,0:T(8,128)}', space=vmem, size = 0x10000, scoped, tag = 'scratch operand']
  #allocation4 [shape = 'f32[2,10,10,8]{3,2,1,0:T(8,128)}', space=vmem, size = 0x28000, scoped, tag = 'scratch operand']
  #allocation5 [shape = 'f32[128,72]{1,0:T(8,128)}', space=vmem, size = 0x10000, scoped, tag = 'scratch operand']
  %s0 = inlined_call_operand.vmem [shape: f32[128,36], index: 0, kind: input, shape index: {}]
  %s1 = inlined_call_operand.vmem [shape: f32[36,4], index: 1, kind: input, shape index: {}]
  %s2 = inlined_call_operand.vmem [shape: f32[36,8], index: 2, kind: input, shape index: {}]
  %s3 = inlined_call_operand.vmem [shape: f32[72,8], index: 3, kind: input, shape index: {}]
  %s4 = inlined_call_operand.vmem [shape: f32[1,4], index: 4, kind: input, shape index: {}]
  %s5 = inlined_call_operand.vmem [shape: f32[1,4], index: 5, kind: input, shape index: {}]
  %s6 = inlined_call_operand.vmem [shape: f32[1,8], index: 6, kind: input, shape index: {}]
  %s7 = inlined_call_operand.vmem [shape: f32[1,8], index: 7, kind: input, shape index: {}]
  %s8 = inlined_call_operand.vmem [shape: f32[1,8], index: 8, kind: input, shape index: {}]
  %s9 = inlined_call_operand.vmem [shape: f32[1,8], index: 9, kind: input, shape index: {}]
  %s10 = inlined_call_operand.vmem [shape: f32[128,8], index: 10, kind: output, shape index: {}]
  %s11 = sld [smem:[#allocation0]]
  $region50: #{down_forward.1} parent=0
    _
  %s13 = ssub.s32 1, %s11
  %s14 = scalar_select 0, %s13, %s11
  // Predicated region
  $region2: #{down_forward.1} parent=0 // pred_check
    _
  $region3: #{down_forward.1} parent=0 // pred_check_branch
    %16 = sbr.rel (0) target = $region5
  $region4: #{down_forward.1} parent=0 // pred_region
    _
  $region5: #{down_forward.1} parent=0 // pred_fallthru
    _
  // Predicated region
  $region6: #{down_forward.1} parent=0 // pred_check
    _
  $region7: #{down_forward.1} parent=0 // pred_check_branch
    %18 = sbr.rel (0) target = $region9
  $region8: #{down_forward.1} parent=0 // pred_region
    _
  $region9: #{down_forward.1} parent=0 // pred_fallthru
    _
  // Predicated region
  $region10: #{down_forward.1} parent=0 // pred_check
    _
  $region11: #{down_forward.1} parent=0 // pred_check_branch
    %20 = sbr.rel (0) target = $region13
  $region12: #{down_forward.1} parent=0 // pred_region
    _
  $region13: #{down_forward.1} parent=0 // pred_fallthru
    _
  // Predicated region
  $region14: #{down_forward.1} parent=0 // pred_check
    _
  $region15: #{down_forward.1} parent=0 // pred_check_branch
    %22 = sbr.rel (0) target = $region17
  $region16: #{down_forward.1} parent=0 // pred_region
    _
  $region17: #{down_forward.1} parent=0 // pred_fallthru
    _
  // Predicated region
  $region18: #{down_forward.1} parent=0 // pred_check
    _
  $region19: #{down_forward.1} parent=0 // pred_check_branch
    %24 = sbr.rel (0) target = $region21
  $region20: #{down_forward.1} parent=0 // pred_region
    _
  $region21: #{down_forward.1} parent=0 // pred_fallthru
    _
  // Predicated region
  $region22: #{down_forward.1} parent=0 // pred_check
    _
  $region23: #{down_forward.1} parent=0 // pred_check_branch
    %26 = sbr.rel (0) target = $region25
  $region24: #{down_forward.1} parent=0 // pred_region
    _
  $region25: #{down_forward.1} parent=0 // pred_fallthru
    _
  // Predicated region
  $region26: #{down_forward.1} parent=0 // pred_check
    _
  $region27: #{down_forward.1} parent=0 // pred_check_branch
    %28 = sbr.rel (0) target = $region29
  $region28: #{down_forward.1} parent=0 // pred_region
    _
  $region29: #{down_forward.1} parent=0 // pred_fallthru
    _
  // Predicated region
  $region30: #{down_forward.1} parent=0 // pred_check
    _
  $region31: #{down_forward.1} parent=0 // pred_check_branch
    %30 = sbr.rel (0) target = $region33
  $region32: #{down_forward.1} parent=0 // pred_region
    _
  $region33: #{down_forward.1} parent=0 // pred_fallthru
    _
  // Predicated region
  $region34: #{down_forward.1} parent=0 // pred_check
    _
  $region35: #{down_forward.1} parent=0 // pred_check_branch
    %32 = sbr.rel (0) target = $region37
  $region36: #{down_forward.1} parent=0 // pred_region
    _
  $region37: #{down_forward.1} parent=0 // pred_fallthru
    _
  // Predicated region
  $region38: #{down_forward.1} parent=0 // pred_check
    _
  $region39: #{down_forward.1} parent=0 // pred_check_branch
    %34 = sbr.rel (0) target = $region41
  $region40: #{down_forward.1} parent=0 // pred_region
    _
  $region41: #{down_forward.1} parent=0 // pred_fallthru
    _
  %v35 = vld [vmem:[%s0] sm:$0xff]
  %v36 = vld [vmem:[%s0 + $0x8] sm:$0xff]
  %v37 = vld [vmem:[%s0 + $0x10] sm:$0xff]
  %v38 = vld [vmem:[%s0 + $0x18] sm:$0xff]
  %v39 = vld [vmem:[%s0 + $0x20] sm:$0xff]
  %v40 = vld [vmem:[%s0 + $0x28] sm:$0xff]
  %v41 = vld [vmem:[%s0 + $0x30] sm:$0xff]
  %v42 = vld [vmem:[%s0 + $0x38] sm:$0xff]
  %v43 = vld [vmem:[%s0 + $0x40] sm:$0xff]
  %v44 = vld [vmem:[%s0 + $0x48] sm:$0xff]
  %v45 = vld [vmem:[%s0 + $0x50] sm:$0xff]
  %v46 = vld [vmem:[%s0 + $0x58] sm:$0xff]
  %v47 = vld [vmem:[%s0 + $0x60] sm:$0xff]
  %v48 = vld [vmem:[%s0 + $0x68] sm:$0xff]
  %v49 = vld [vmem:[%s0 + $0x70] sm:$0xff]
  %v50 = vld [vmem:[%s0 + $0x78] sm:$0xff]
  %v51 = vld [vmem:[%s1] sm:$0xff]
  %v52 = vld [vmem:[%s1 + $0x8] sm:$0xff]
  %v53 = vld [vmem:[%s1 + $0x10] sm:$0xff]
  %v54 = vld [vmem:[%s1 + $0x18] sm:$0xff]
  %v55 = vld [vmem:[%s1 + $0x20] sm:$0xf]
  %vm56 = vcmask 293888
  %v58 = vsel %vm56, %v35, 0
  %v61 = vsel %vm56, %v36, 0
  %v64 = vsel %vm56, %v37, 0
  %v67 = vsel %vm56, %v38, 0
  %v70 = vsel %vm56, %v39, 0
  %v73 = vsel %vm56, %v40, 0
  %v76 = vsel %vm56, %v41, 0
  %v79 = vsel %vm56, %v42, 0
  %v82 = vsel %vm56, %v43, 0
  %v85 = vsel %vm56, %v44, 0
  %v88 = vsel %vm56, %v45, 0
  %v91 = vsel %vm56, %v46, 0
  %v94 = vsel %vm56, %v47, 0
  %v97 = vsel %vm56, %v48, 0
  %v100 = vsel %vm56, %v49, 0
  %v103 = vsel %vm56, %v50, 0
  %vm105 = vcmask 1043456
  %v107 = vsel %vm105, %v55, 0
  %109 = vmatpush.msra.mxu0 0.0
  %110 = vmatpush.msra.mxu0 0.0
  %111 = vmatpush.msra.mxu0 0.0
  %112 = vmatpush.msra.mxu0 0.0
  %113 = vmatpush.msra.mxu0 0.0
  %114 = vmatpush.msra.mxu0 0.0
  %115 = vmatpush.msra.mxu0 0.0
  %116 = vmatpush.msra.mxu0 0.0
  %117 = vmatpush.msra.mxu0 0.0
  %118 = vmatpush.msra.mxu0 0.0
  %119 = vmatpush.msra.mxu0 0.0
  %120 = vmatpush.msra.mxu0 %v107
  %121 = vmatpush.msra.mxu0 %v54
  %122 = vmatpush.msra.mxu0 %v53
  %123 = vmatpush.msra.mxu0 %v52
  %124 = vmatpush.msra.mxu0 %v51
  %125 = vmatmul.f32.gmra.mxu0 %v58
  %v126 = vpop.f32.mrf.mxu0
  %v127 = vadd.f32 0.0, %v126
  %128 = vmatmul.f32.gmra.mxu0 %v61
  %v129 = vpop.f32.mrf.mxu0
  %v130 = vadd.f32 0.0, %v129
  %131 = vmatmul.f32.gmra.mxu0 %v64
  %v132 = vpop.f32.mrf.mxu0
  %v133 = vadd.f32 0.0, %v132
  %134 = vmatmul.f32.gmra.mxu0 %v67
  %v135 = vpop.f32.mrf.mxu0
  %v136 = vadd.f32 0.0, %v135
  %137 = vmatmul.f32.gmra.mxu0 %v70
  %v138 = vpop.f32.mrf.mxu0
  %v139 = vadd.f32 0.0, %v138
  %140 = vmatmul.f32.gmra.mxu0 %v73
  %v141 = vpop.f32.mrf.mxu0
  %v142 = vadd.f32 0.0, %v141
  %143 = vmatmul.f32.gmra.mxu0 %v76
  %v144 = vpop.f32.mrf.mxu0
  %v145 = vadd.f32 0.0, %v144
  %146 = vmatmul.f32.gmra.mxu0 %v79
  %v147 = vpop.f32.mrf.mxu0
  %v148 = vadd.f32 0.0, %v147
  %149 = vmatmul.f32.gmra.mxu0 %v82
  %v150 = vpop.f32.mrf.mxu0
  %v151 = vadd.f32 0.0, %v150
  %152 = vmatmul.f32.gmra.mxu0 %v85
  %v153 = vpop.f32.mrf.mxu0
  %v154 = vadd.f32 0.0, %v153
  %155 = vmatmul.f32.gmra.mxu0 %v88
  %v156 = vpop.f32.mrf.mxu0
  %v157 = vadd.f32 0.0, %v156
  %158 = vmatmul.f32.gmra.mxu0 %v91
  %v159 = vpop.f32.mrf.mxu0
  %v160 = vadd.f32 0.0, %v159
  %161 = vmatmul.f32.gmra.mxu0 %v94
  %v162 = vpop.f32.mrf.mxu0
  %v163 = vadd.f32 0.0, %v162
  %164 = vmatmul.f32.gmra.mxu0 %v97
  %v165 = vpop.f32.mrf.mxu0
  %v166 = vadd.f32 0.0, %v165
  %167 = vmatmul.f32.gmra.mxu0 %v100
  %v168 = vpop.f32.mrf.mxu0
  %v169 = vadd.f32 0.0, %v168
  %170 = vmatmul.f32.gmra.mxu0 %v103
  %v171 = vpop.f32.mrf.mxu0
  %v172 = vadd.f32 0.0, %v171
  %173 = vdwg.mxu0
  %v174 = vld [vmem:[%s4] sm:$0x1]
  %v175 = vld [vmem:[%s5] sm:$0x1]
  %vm176 = vcmask 31744
  %v177 = vsel %vm176, %v127, 0.0
  %v178 = vsel %vm176, %v130, 0.0
  %v179 = vadd.f32 %v177, %v178
  %v180 = vsel %vm176, %v133, 0.0
  %v181 = vadd.f32 %v179, %v180
  %v182 = vsel %vm176, %v136, 0.0
  %v183 = vadd.f32 %v181, %v182
  %v184 = vsel %vm176, %v139, 0.0
  %v185 = vadd.f32 %v183, %v184
  %v186 = vsel %vm176, %v142, 0.0
  %v187 = vadd.f32 %v185, %v186
  %v188 = vsel %vm176, %v145, 0.0
  %v189 = vadd.f32 %v187, %v188
  %v190 = vsel %vm176, %v148, 0.0
  %v191 = vadd.f32 %v189, %v190
  %v192 = vsel %vm176, %v151, 0.0
  %v193 = vadd.f32 %v191, %v192
  %v194 = vsel %vm176, %v154, 0.0
  %v195 = vadd.f32 %v193, %v194
  %v196 = vsel %vm176, %v157, 0.0
  %v197 = vadd.f32 %v195, %v196
  %v198 = vsel %vm176, %v160, 0.0
  %v199 = vadd.f32 %v197, %v198
  %v200 = vsel %vm176, %v163, 0.0
  %v201 = vadd.f32 %v199, %v200
  %v202 = vsel %vm176, %v166, 0.0
  %v203 = vadd.f32 %v201, %v202
  %v204 = vsel %vm176, %v169, 0.0
  %v205 = vadd.f32 %v203, %v204
  %v206 = vsel %vm176, %v172, 0.0
  %v207 = vadd.f32 %v205, %v206
  %v208 = vrot.slane %v207, 4
  %v209 = vadd.f32 %v207, %v208
  %v210 = vrot.slane %v209, 2
  %v211 = vadd.f32 %v209, %v210
  %v212 = vrot.slane %v211, 1
  %v213 = vadd.f32 %v211, %v212
  %v214 = vrcp.pop 128.0
  %v215 = vmul.f32 128.0, %v214
  %v216 = vsub.f32 1.0, %v215
  %v217 = vmul.f32 %v214, %v216
  %v218 = vadd.f32 %v214, %v217
  %vm219 = vweird.f32 %v214
  %v220 = vsel %vm219, %v214, %v218
  %v221 = vmul.f32 %v213, %v220
  %v222 = vmul.f32 %v127, %v127
  %v223 = vmul.f32 %v130, %v130
  %v224 = vmul.f32 %v133, %v133
  %v225 = vmul.f32 %v136, %v136
  %v226 = vmul.f32 %v139, %v139
  %v227 = vmul.f32 %v142, %v142
  %v228 = vmul.f32 %v145, %v145
  %v229 = vmul.f32 %v148, %v148
  %v230 = vmul.f32 %v151, %v151
  %v231 = vmul.f32 %v154, %v154
  %v232 = vmul.f32 %v157, %v157
  %v233 = vmul.f32 %v160, %v160
  %v234 = vmul.f32 %v163, %v163
  %v235 = vmul.f32 %v166, %v166
  %v236 = vmul.f32 %v169, %v169
  %v237 = vmul.f32 %v172, %v172
  %v238 = vsel %vm176, %v222, 0.0
  %v239 = vsel %vm176, %v223, 0.0
  %v240 = vadd.f32 %v238, %v239
  %v241 = vsel %vm176, %v224, 0.0
  %v242 = vadd.f32 %v240, %v241
  %v243 = vsel %vm176, %v225, 0.0
  %v244 = vadd.f32 %v242, %v243
  %v245 = vsel %vm176, %v226, 0.0
  %v246 = vadd.f32 %v244, %v245
  %v247 = vsel %vm176, %v227, 0.0
  %v248 = vadd.f32 %v246, %v247
  %v249 = vsel %vm176, %v228, 0.0
  %v250 = vadd.f32 %v248, %v249
  %v251 = vsel %vm176, %v229, 0.0
  %v252 = vadd.f32 %v250, %v251
  %v253 = vsel %vm176, %v230, 0.0
  %v254 = vadd.f32 %v252, %v253
  %v255 = vsel %vm176, %v231, 0.0
  %v256 = vadd.f32 %v254, %v255
  %v257 = vsel %vm176, %v232, 0.0
  %v258 = vadd.f32 %v256, %v257
  %v259 = vsel %vm176, %v233, 0.0
  %v260 = vadd.f32 %v258, %v259
  %v261 = vsel %vm176, %v234, 0.0
  %v262 = vadd.f32 %v260, %v261
  %v263 = vsel %vm176, %v235, 0.0
  %v264 = vadd.f32 %v262, %v263
  %v265 = vsel %vm176, %v236, 0.0
  %v266 = vadd.f32 %v264, %v265
  %v267 = vsel %vm176, %v237, 0.0
  %v268 = vadd.f32 %v266, %v267
  %v269 = vrot.slane %v268, 4
  %v270 = vadd.f32 %v268, %v269
  %v271 = vrot.slane %v270, 2
  %v272 = vadd.f32 %v270, %v271
  %v273 = vrot.slane %v272, 1
  %v274 = vadd.f32 %v272, %v273
  %v275 = vmul.f32 %v274, %v220
  %v276 = vmul.f32 %v221, %v221
  %v277 = vsub.f32 %v275, %v276
  %v278 = vadd.f32 %v277, 1e-05
  %v279 = vrsqrt.pop %v278
  %v280 = vmul.f32 %v279, %v278
  %v281 = vmul.f32 %v280, %v279
  %v282 = vmul.f32 0.5, %v281
  %v283 = vsub.f32 1.5, %v282
  %v284 = vmul.f32 %v279, %v283
  %vm285 = vweird.f32 %v278
  %vm286 = vweird.f32 %v279
  %vm287 = vmor %vm285, %vm286
  %v288 = vsel %vm287, %v279, %v284
  %v289 = vmul.f32 %v174, %v288
  %v290 = vmul.f32 %v221, %v289
  %v291 = vsub.f32 %v175, %v290
  %v293 = vperm.slane %v289, 0
  %v295 = vmul.f32 %v127, %v293
  %v296 = vmul.f32 %v130, %v293
  %v297 = vmul.f32 %v133, %v293
  %v298 = vmul.f32 %v136, %v293
  %v299 = vmul.f32 %v139, %v293
  %v300 = vmul.f32 %v142, %v293
  %v301 = vmul.f32 %v145, %v293
  %v302 = vmul.f32 %v148, %v293
  %v303 = vmul.f32 %v151, %v293
  %v304 = vmul.f32 %v154, %v293
  %v305 = vmul.f32 %v157, %v293
  %v306 = vmul.f32 %v160, %v293
  %v307 = vmul.f32 %v163, %v293
  %v308 = vmul.f32 %v166, %v293
  %v309 = vmul.f32 %v169, %v293
  %v310 = vmul.f32 %v172, %v293
  %v312 = vperm.slane %v291, 0
  %v314 = vadd.f32 %v295, %v312
  %v315 = vadd.f32 %v296, %v312
  %v316 = vadd.f32 %v297, %v312
  %v317 = vadd.f32 %v298, %v312
  %v318 = vadd.f32 %v299, %v312
  %v319 = vadd.f32 %v300, %v312
  %v320 = vadd.f32 %v301, %v312
  %v321 = vadd.f32 %v302, %v312
  %v322 = vadd.f32 %v303, %v312
  %v323 = vadd.f32 %v304, %v312
  %v324 = vadd.f32 %v305, %v312
  %v325 = vadd.f32 %v306, %v312
  %v326 = vadd.f32 %v307, %v312
  %v327 = vadd.f32 %v308, %v312
  %v328 = vadd.f32 %v309, %v312
  %v329 = vadd.f32 %v310, %v312
  %v330 = vmul.f32 %v314, 0.1
  %v331 = vmul.f32 %v315, 0.1
  %v332 = vmul.f32 %v316, 0.1
  %v333 = vmul.f32 %v317, 0.1
  %v334 = vmul.f32 %v318, 0.1
  %v335 = vmul.f32 %v319, 0.1
  %v336 = vmul.f32 %v320, 0.1
  %v337 = vmul.f32 %v321, 0.1
  %v338 = vmul.f32 %v322, 0.1
  %v339 = vmul.f32 %v323, 0.1
  %v340 = vmul.f32 %v324, 0.1
  %v341 = vmul.f32 %v325, 0.1
  %v342 = vmul.f32 %v326, 0.1
  %v343 = vmul.f32 %v327, 0.1
  %v344 = vmul.f32 %v328, 0.1
  %v345 = vmul.f32 %v329, 0.1
  %v346 = vmax.f32 %v314, %v330
  %v347 = vmax.f32 %v315, %v331
  %v348 = vmax.f32 %v316, %v332
  %v349 = vmax.f32 %v317, %v333
  %v350 = vmax.f32 %v318, %v334
  %v351 = vmax.f32 %v319, %v335
  %v352 = vmax.f32 %v320, %v336
  %v353 = vmax.f32 %v321, %v337
  %v354 = vmax.f32 %v322, %v338
  %v355 = vmax.f32 %v323, %v339
  %v356 = vmax.f32 %v324, %v340
  %v357 = vmax.f32 %v325, %v341
  %v358 = vmax.f32 %v326, %v342
  %v359 = vmax.f32 %v327, %v343
  %v360 = vmax.f32 %v328, %v344
  %v361 = vmax.f32 %v329, %v345
  %v362 = vld [vmem:[%s2] sm:$0xff]
  %v363 = vld [vmem:[%s2 + $0x8] sm:$0xff]
  %v364 = vld [vmem:[%s2 + $0x10] sm:$0xff]
  %v365 = vld [vmem:[%s2 + $0x18] sm:$0xff]
  %v366 = vld [vmem:[%s2 + $0x20] sm:$0xf]
  %367 = vst.msk [vmem:[#allocation2] sm:$0xff] %vm176, 0.0
  %vm368 = vcmask 25600
  %369 = vst.msk [vmem:[#allocation2 + $0x8] sm:$0x3] %vm368, 0.0
  %370 = vst.msk [vmem:[#allocation2 + $0x10] sm:$0xff] %vm176, 0.0
  %371 = vst.msk [vmem:[#allocation2 + $0x18] sm:$0x3] %vm368, 0.0
  %372 = vst.msk [vmem:[#allocation2 + $0x20] sm:$0xff] %vm176, 0.0
  %373 = vst.msk [vmem:[#allocation2 + $0x28] sm:$0x3] %vm368, 0.0
  %374 = vst.msk [vmem:[#allocation2 + $0x30] sm:$0xff] %vm176, 0.0
  %375 = vst.msk [vmem:[#allocation2 + $0x38] sm:$0x3] %vm368, 0.0
  %376 = vst.msk [vmem:[#allocation2 + $0x40] sm:$0xff] %vm176, 0.0
  %377 = vst.msk [vmem:[#allocation2 + $0x48] sm:$0x3] %vm368, 0.0
  %378 = vst.msk [vmem:[#allocation2 + $0x50] sm:$0xff] %vm176, 0.0
  %379 = vst.msk [vmem:[#allocation2 + $0x58] sm:$0x3] %vm368, 0.0
  %380 = vst.msk [vmem:[#allocation2 + $0x60] sm:$0xff] %vm176, 0.0
  %381 = vst.msk [vmem:[#allocation2 + $0x68] sm:$0x3] %vm368, 0.0
  %382 = vst.msk [vmem:[#allocation2 + $0x70] sm:$0xff] %vm176, 0.0
  %383 = vst.msk [vmem:[#allocation2 + $0x78] sm:$0x3] %vm368, 0.0
  %384 = vst.msk [vmem:[#allocation2 + $0x80] sm:$0xff] %vm176, 0.0
  %385 = vst.msk [vmem:[#allocation2 + $0x88] sm:$0x3] %vm368, 0.0
  %386 = vst.msk [vmem:[#allocation2 + $0x90] sm:$0xff] %vm176, 0.0
  %387 = vst.msk [vmem:[#allocation2 + $0x98] sm:$0x3] %vm368, 0.0
  %388 = vst.msk [vmem:[#allocation2 + $0xa0] sm:$0xff] %vm176, 0.0
  %389 = vst.msk [vmem:[#allocation2 + $0xa8] sm:$0x3] %vm368, 0.0
  %390 = vst.msk [vmem:[#allocation2 + $0xb0] sm:$0xff] %vm176, 0.0
  %391 = vst.msk [vmem:[#allocation2 + $0xb8] sm:$0x3] %vm368, 0.0
  %392 = vst.msk [vmem:[#allocation2 + $0xc0] sm:$0xff] %vm176, 0.0
  %393 = vst.msk [vmem:[#allocation2 + $0xc8] sm:$0x3] %vm368, 0.0
  %394 = vst.msk [vmem:[#allocation2 + $0xd0] sm:$0xff] %vm176, 0.0
  %395 = vst.msk [vmem:[#allocation2 + $0xd8] sm:$0x3] %vm368, 0.0
  %396 = vst.msk [vmem:[#allocation2 + $0xe0] sm:$0xff] %vm176, 0.0
  %397 = vst.msk [vmem:[#allocation2 + $0xe8] sm:$0x3] %vm368, 0.0
  %398 = vst.msk [vmem:[#allocation2 + $0xf0] sm:$0xff] %vm176, 0.0
  %399 = vst.msk [vmem:[#allocation2 + $0xf8] sm:$0x3] %vm368, 0.0
  %400 = vst.msk [vmem:[#allocation2 + $0x100] sm:$0xff] %vm176, 0.0
  %401 = vst.msk [vmem:[#allocation2 + $0x108] sm:$0x3] %vm368, 0.0
  %402 = vst.msk [vmem:[#allocation2 + $0x110] sm:$0xff] %vm176, 0.0
  %403 = vst.msk [vmem:[#allocation2 + $0x118] sm:$0x3] %vm368, 0.0
  %404 = vst.msk [vmem:[#allocation2 + $0x120] sm:$0xff] %vm176, 0.0
  %405 = vst.msk [vmem:[#allocation2 + $0x128] sm:$0x3] %vm368, 0.0
  %406 = vst.msk [vmem:[#allocation2 + $0x130] sm:$0xff] %vm176, 0.0
  %407 = vst.msk [vmem:[#allocation2 + $0x138] sm:$0x3] %vm368, 0.0
  %s408 = scalar_lea.vmem [#allocation2], 16
  %409 = vst.msk [vmem:[%s408 + $0x1] sm:$0xff] %vm176, %v346
  %410 = vst.msk [vmem:[%s408 + $0x11] sm:$0xff] %vm176, %v347
  %411 = vst.msk [vmem:[%s408 + $0x21] sm:$0xff] %vm176, %v348
  %412 = vst.msk [vmem:[%s408 + $0x31] sm:$0xff] %vm176, %v349
  %413 = vst.msk [vmem:[%s408 + $0x41] sm:$0xff] %vm176, %v350
  %414 = vst.msk [vmem:[%s408 + $0x51] sm:$0xff] %vm176, %v351
  %415 = vst.msk [vmem:[%s408 + $0x61] sm:$0xff] %vm176, %v352
  %416 = vst.msk [vmem:[%s408 + $0x71] sm:$0xff] %vm176, %v353
  %417 = vst.msk [vmem:[%s408 + $0xa1] sm:$0xff] %vm176, %v354
  %418 = vst.msk [vmem:[%s408 + $0xb1] sm:$0xff] %vm176, %v355
  %419 = vst.msk [vmem:[%s408 + $0xc1] sm:$0xff] %vm176, %v356
  %420 = vst.msk [vmem:[%s408 + $0xd1] sm:$0xff] %vm176, %v357
  %421 = vst.msk [vmem:[%s408 + $0xe1] sm:$0xff] %vm176, %v358
  %422 = vst.msk [vmem:[%s408 + $0xf1] sm:$0xff] %vm176, %v359
  %423 = vst.msk [vmem:[%s408 + $0x101] sm:$0xff] %vm176, %v360
  %424 = vst.msk [vmem:[%s408 + $0x111] sm:$0xff] %vm176, %v361
  %v425 = vld [vmem:[#allocation2] sm:$0xff]
  %v426 = vld [vmem:[#allocation2 + $0x10] sm:$0xff]
  %v427 = vld [vmem:[#allocation2 + $0x20] sm:$0xff]
  %v428 = vld [vmem:[#allocation2 + $0x30] sm:$0xff]
  %v429 = vld [vmem:[#allocation2 + $0x40] sm:$0xff]
  %v430 = vld [vmem:[#allocation2 + $0x50] sm:$0xff]
  %v431 = vld [vmem:[#allocation2 + $0x60] sm:$0xff]
  %v432 = vld [vmem:[#allocation2 + $0x70] sm:$0xff]
  %v433 = vld [vmem:[#allocation2 + $0xa0] sm:$0xff]
  %v434 = vld [vmem:[#allocation2 + $0xb0] sm:$0xff]
  %v435 = vld [vmem:[#allocation2 + $0xc0] sm:$0xff]
  %v436 = vld [vmem:[#allocation2 + $0xd0] sm:$0xff]
  %v437 = vld [vmem:[#allocation2 + $0xe0] sm:$0xff]
  %v438 = vld [vmem:[#allocation2 + $0xf0] sm:$0xff]
  %v439 = vld [vmem:[#allocation2 + $0x100] sm:$0xff]
  %v440 = vld [vmem:[#allocation2 + $0x110] sm:$0xff]
  %441 = vst.msk [vmem:[#allocation3] sm:$0xff] %vm176, %v425
  %442 = vst.msk [vmem:[#allocation3 + $0x8] sm:$0xff] %vm176, %v426
  %443 = vst.msk [vmem:[#allocation3 + $0x10] sm:$0xff] %vm176, %v427
  %444 = vst.msk [vmem:[#allocation3 + $0x18] sm:$0xff] %vm176, %v428
  %445 = vst.msk [vmem:[#allocation3 + $0x20] sm:$0xff] %vm176, %v429
  %446 = vst.msk [vmem:[#allocation3 + $0x28] sm:$0xff] %vm176, %v430
  %447 = vst.msk [vmem:[#allocation3 + $0x30] sm:$0xff] %vm176, %v431
  %448 = vst.msk [vmem:[#allocation3 + $0x38] sm:$0xff] %vm176, %v432
  %449 = vst.msk [vmem:[#allocation3 + $0x40] sm:$0xff] %vm176, %v433
  %450 = vst.msk [vmem:[#allocation3 + $0x48] sm:$0xff] %vm176, %v434
  %451 = vst.msk [vmem:[#allocation3 + $0x50] sm:$0xff] %vm176, %v435
  %452 = vst.msk [vmem:[#allocation3 + $0x58] sm:$0xff] %vm176, %v436
  %453 = vst.msk [vmem:[#allocation3 + $0x60] sm:$0xff] %vm176, %v437
  %454 = vst.msk [vmem:[#allocation3 + $0x68] sm:$0xff] %vm176, %v438
  %455 = vst.msk [vmem:[#allocation3 + $0x70] sm:$0xff] %vm176, %v439
  %456 = vst.msk [vmem:[#allocation3 + $0x78] sm:$0xff] %vm176, %v440
  %v457 = vld [vmem:[#allocation2 + $0x1] sm:$0xff]
  %v458 = vld [vmem:[#allocation2 + $0x11] sm:$0xff]
  %v459 = vld [vmem:[#allocation2 + $0x21] sm:$0xff]
  %v460 = vld [vmem:[#allocation2 + $0x31] sm:$0xff]
  %v461 = vld [vmem:[#allocation2 + $0x41] sm:$0xff]
  %v462 = vld [vmem:[#allocation2 + $0x51] sm:$0xff]
  %v463 = vld [vmem:[#allocation2 + $0x61] sm:$0xff]
  %v464 = vld [vmem:[#allocation2 + $0x71] sm:$0xff]
  %v465 = vld [vmem:[#allocation2 + $0xa1] sm:$0xff]
  %v466 = vld [vmem:[#allocation2 + $0xb1] sm:$0xff]
  %v467 = vld [vmem:[#allocation2 + $0xc1] sm:$0xff]
  %v468 = vld [vmem:[#allocation2 + $0xd1] sm:$0xff]
  %v469 = vld [vmem:[#allocation2 + $0xe1] sm:$0xff]
  %v470 = vld [vmem:[#allocation2 + $0xf1] sm:$0xff]
  %v471 = vld [vmem:[#allocation2 + $0x101] sm:$0xff]
  %v472 = vld [vmem:[#allocation2 + $0x111] sm:$0xff]
  %489 = vrot.lane.b32.xlu0 %v457, 4
  %v490 = vpop.permute.xlu0 %489
  %491 = vrot.lane.b32.xlu0 %v458, 4
  %v492 = vpop.permute.xlu0 %491
  %493 = vrot.lane.b32.xlu0 %v459, 4
  %v494 = vpop.permute.xlu0 %493
  %495 = vrot.lane.b32.xlu0 %v460, 4
  %v496 = vpop.permute.xlu0 %495
  %497 = vrot.lane.b32.xlu0 %v461, 4
  %v498 = vpop.permute.xlu0 %497
  %499 = vrot.lane.b32.xlu0 %v462, 4
  %v500 = vpop.permute.xlu0 %499
  %501 = vrot.lane.b32.xlu0 %v463, 4
  %v502 = vpop.permute.xlu0 %501
  %503 = vrot.lane.b32.xlu0 %v464, 4
  %v504 = vpop.permute.xlu0 %503
  %505 = vrot.lane.b32.xlu0 %v465, 4
  %v506 = vpop.permute.xlu0 %505
  %507 = vrot.lane.b32.xlu0 %v466, 4
  %v508 = vpop.permute.xlu0 %507
  %509 = vrot.lane.b32.xlu0 %v467, 4
  %v510 = vpop.permute.xlu0 %509
  %511 = vrot.lane.b32.xlu0 %v468, 4
  %v512 = vpop.permute.xlu0 %511
  %513 = vrot.lane.b32.xlu0 %v469, 4
  %v514 = vpop.permute.xlu0 %513
  %515 = vrot.lane.b32.xlu0 %v470, 4
  %v516 = vpop.permute.xlu0 %515
  %517 = vrot.lane.b32.xlu0 %v471, 4
  %v518 = vpop.permute.xlu0 %517
  %519 = vrot.lane.b32.xlu0 %v472, 4
  %v520 = vpop.permute.xlu0 %519
  %vm537 = vcmask 64544
  %538 = vst.msk [vmem:[#allocation3] sm:$0xff] %vm537, %v490
  %539 = vst.msk [vmem:[#allocation3 + $0x8] sm:$0xff] %vm537, %v492
  %540 = vst.msk [vmem:[#allocation3 + $0x10] sm:$0xff] %vm537, %v494
  %541 = vst.msk [vmem:[#allocation3 + $0x18] sm:$0xff] %vm537, %v496
  %542 = vst.msk [vmem:[#allocation3 + $0x20] sm:$0xff] %vm537, %v498
  %543 = vst.msk [vmem:[#allocation3 + $0x28] sm:$0xff] %vm537, %v500
  %544 = vst.msk [vmem:[#allocation3 + $0x30] sm:$0xff] %vm537, %v502
  %545 = vst.msk [vmem:[#allocation3 + $0x38] sm:$0xff] %vm537, %v504
  %546 = vst.msk [vmem:[#allocation3 + $0x40] sm:$0xff] %vm537, %v506
  %547 = vst.msk [vmem:[#allocation3 + $0x48] sm:$0xff] %vm537, %v508
  %548 = vst.msk [vmem:[#allocation3 + $0x50] sm:$0xff] %vm537, %v510
  %549 = vst.msk [vmem:[#allocation3 + $0x58] sm:$0xff] %vm537, %v512
  %550 = vst.msk [vmem:[#allocation3 + $0x60] sm:$0xff] %vm537, %v514
  %551 = vst.msk [vmem:[#allocation3 + $0x68] sm:$0xff] %vm537, %v516
  %552 = vst.msk [vmem:[#allocation3 + $0x70] sm:$0xff] %vm537, %v518
  %553 = vst.msk [vmem:[#allocation3 + $0x78] sm:$0xff] %vm537, %v520
  %v554 = vld [vmem:[#allocation2 + $0x2] sm:$0xff]
  %v555 = vld [vmem:[#allocation2 + $0x12] sm:$0xff]
  %v556 = vld [vmem:[#allocation2 + $0x22] sm:$0xff]
  %v557 = vld [vmem:[#allocation2 + $0x32] sm:$0xff]
  %v558 = vld [vmem:[#allocation2 + $0x42] sm:$0xff]
  %v559 = vld [vmem:[#allocation2 + $0x52] sm:$0xff]
  %v560 = vld [vmem:[#allocation2 + $0x62] sm:$0xff]
  %v561 = vld [vmem:[#allocation2 + $0x72] sm:$0xff]
  %v562 = vld [vmem:[#allocation2 + $0xa2] sm:$0xff]
  %v563 = vld [vmem:[#allocation2 + $0xb2] sm:$0xff]
  %v564 = vld [vmem:[#allocation2 + $0xc2] sm:$0xff]
  %v565 = vld [vmem:[#allocation2 + $0xd2] sm:$0xff]
  %v566 = vld [vmem:[#allocation2 + $0xe2] sm:$0xff]
  %v567 = vld [vmem:[#allocation2 + $0xf2] sm:$0xff]
  %v568 = vld [vmem:[#allocation2 + $0x102] sm:$0xff]
  %v569 = vld [vmem:[#allocation2 + $0x112] sm:$0xff]
  %586 = vrot.lane.b32.xlu0 %v554, 8
  %v587 = vpop.permute.xlu0 %586
  %588 = vrot.lane.b32.xlu0 %v555, 8
  %v589 = vpop.permute.xlu0 %588
  %590 = vrot.lane.b32.xlu0 %v556, 8
  %v591 = vpop.permute.xlu0 %590
  %592 = vrot.lane.b32.xlu0 %v557, 8
  %v593 = vpop.permute.xlu0 %592
  %594 = vrot.lane.b32.xlu0 %v558, 8
  %v595 = vpop.permute.xlu0 %594
  %596 = vrot.lane.b32.xlu0 %v559, 8
  %v597 = vpop.permute.xlu0 %596
  %598 = vrot.lane.b32.xlu0 %v560, 8
  %v599 = vpop.permute.xlu0 %598
  %600 = vrot.lane.b32.xlu0 %v561, 8
  %v601 = vpop.permute.xlu0 %600
  %602 = vrot.lane.b32.xlu0 %v562, 8
  %v603 = vpop.permute.xlu0 %602
  %604 = vrot.lane.b32.xlu0 %v563, 8
  %v605 = vpop.permute.xlu0 %604
  %606 = vrot.lane.b32.xlu0 %v564, 8
  %v607 = vpop.permute.xlu0 %606
  %608 = vrot.lane.b32.xlu0 %v565, 8
  %v609 = vpop.permute.xlu0 %608
  %610 = vrot.lane.b32.xlu0 %v566, 8
  %v611 = vpop.permute.xlu0 %610
  %612 = vrot.lane.b32.xlu0 %v567, 8
  %v613 = vpop.permute.xlu0 %612
  %614 = vrot.lane.b32.xlu0 %v568, 8
  %v615 = vpop.permute.xlu0 %614
  %616 = vrot.lane.b32.xlu0 %v569, 8
  %v617 = vpop.permute.xlu0 %616
  %vm634 = vcmask 97344
  %635 = vst.msk [vmem:[#allocation3] sm:$0xff] %vm634, %v587
  %636 = vst.msk [vmem:[#allocation3 + $0x8] sm:$0xff] %vm634, %v589
  %637 = vst.msk [vmem:[#allocation3 + $0x10] sm:$0xff] %vm634, %v591
  %638 = vst.msk [vmem:[#allocation3 + $0x18] sm:$0xff] %vm634, %v593
  %639 = vst.msk [vmem:[#allocation3 + $0x20] sm:$0xff] %vm634, %v595
  %640 = vst.msk [vmem:[#allocation3 + $0x28] sm:$0xff] %vm634, %v597
  %641 = vst.msk [vmem:[#allocation3 + $0x30] sm:$0xff] %vm634, %v599
  %642 = vst.msk [vmem:[#allocation3 + $0x38] sm:$0xff] %vm634, %v601
  %643 = vst.msk [vmem:[#allocation3 + $0x40] sm:$0xff] %vm634, %v603
  %644 = vst.msk [vmem:[#allocation3 + $0x48] sm:$0xff] %vm634, %v605
  %645 = vst.msk [vmem:[#allocation3 + $0x50] sm:$0xff] %vm634, %v607
  %646 = vst.msk [vmem:[#allocation3 + $0x58] sm:$0xff] %vm634, %v609
  %647 = vst.msk [vmem:[#allocation3 + $0x60] sm:$0xff] %vm634, %v611
  %648 = vst.msk [vmem:[#allocation3 + $0x68] sm:$0xff] %vm634, %v613
  %649 = vst.msk [vmem:[#allocation3 + $0x70] sm:$0xff] %vm634, %v615
  %650 = vst.msk [vmem:[#allocation3 + $0x78] sm:$0xff] %vm634, %v617
  %v651 = vld [vmem:[%s408] sm:$0xff]
  %v652 = vld [vmem:[%s408 + $0x10] sm:$0xff]
  %v653 = vld [vmem:[%s408 + $0x20] sm:$0xff]
  %v654 = vld [vmem:[%s408 + $0x30] sm:$0xff]
  %v655 = vld [vmem:[%s408 + $0x40] sm:$0xff]
  %v656 = vld [vmem:[%s408 + $0x50] sm:$0xff]
  %v657 = vld [vmem:[%s408 + $0x60] sm:$0xff]
  %v658 = vld [vmem:[%s408 + $0x70] sm:$0xff]
  %v659 = vld [vmem:[%s408 + $0xa0] sm:$0xff]
  %v660 = vld [vmem:[%s408 + $0xb0] sm:$0xff]
  %v661 = vld [vmem:[%s408 + $0xc0] sm:$0xff]
  %v662 = vld [vmem:[%s408 + $0xd0] sm:$0xff]
  %v663 = vld [vmem:[%s408 + $0xe0] sm:$0xff]
  %v664 = vld [vmem:[%s408 + $0xf0] sm:$0xff]
  %v665 = vld [vmem:[%s408 + $0x100] sm:$0xff]
  %v666 = vld [vmem:[%s408 + $0x110] sm:$0xff]
  %683 = vrot.lane.b32.xlu0 %v651, 12
  %v684 = vpop.permute.xlu0 %683
  %685 = vrot.lane.b32.xlu0 %v652, 12
  %v686 = vpop.permute.xlu0 %685
  %687 = vrot.lane.b32.xlu0 %v653, 12
  %v688 = vpop.permute.xlu0 %687
  %689 = vrot.lane.b32.xlu0 %v654, 12
  %v690 = vpop.permute.xlu0 %689
  %691 = vrot.lane.b32.xlu0 %v655, 12
  %v692 = vpop.permute.xlu0 %691
  %693 = vrot.lane.b32.xlu0 %v656, 12
  %v694 = vpop.permute.xlu0 %693
  %695 = vrot.lane.b32.xlu0 %v657, 12
  %v696 = vpop.permute.xlu0 %695
  %697 = vrot.lane.b32.xlu0 %v658, 12
  %v698 = vpop.permute.xlu0 %697
  %699 = vrot.lane.b32.xlu0 %v659, 12
  %v700 = vpop.permute.xlu0 %699
  %701 = vrot.lane.b32.xlu0 %v660, 12
  %v702 = vpop.permute.xlu0 %701
  %703 = vrot.lane.b32.xlu0 %v661, 12
  %v704 = vpop.permute.xlu0 %703
  %705 = vrot.lane.b32.xlu0 %v662, 12
  %v706 = vpop.permute.xlu0 %705
  %707 = vrot.lane.b32.xlu0 %v663, 12
  %v708 = vpop.permute.xlu0 %707
  %709 = vrot.lane.b32.xlu0 %v664, 12
  %v710 = vpop.permute.xlu0 %709
  %711 = vrot.lane.b32.xlu0 %v665, 12
  %v712 = vpop.permute.xlu0 %711
  %713 = vrot.lane.b32.xlu0 %v666, 12
  %v714 = vpop.permute.xlu0 %713
  %vm731 = vcmask 130144
  %732 = vst.msk [vmem:[#allocation3] sm:$0xff] %vm731, %v684
  %733 = vst.msk [vmem:[#allocation3 + $0x8] sm:$0xff] %vm731, %v686
  %734 = vst.msk [vmem:[#allocation3 + $0x10] sm:$0xff] %vm731, %v688
  %735 = vst.msk [vmem:[#allocation3 + $0x18] sm:$0xff] %vm731, %v690
  %736 = vst.msk [vmem:[#allocation3 + $0x20] sm:$0xff] %vm731, %v692
  %737 = vst.msk [vmem:[#allocation3 + $0x28] sm:$0xff] %vm731, %v694
  %738 = vst.msk [vmem:[#allocation3 + $0x30] sm:$0xff] %vm731, %v696
  %739 = vst.msk [vmem:[#allocation3 + $0x38] sm:$0xff] %vm731, %v698
  %740 = vst.msk [vmem:[#allocation3 + $0x40] sm:$0xff] %vm731, %v700
  %741 = vst.msk [vmem:[#allocation3 + $0x48] sm:$0xff] %vm731, %v702
  %742 = vst.msk [vmem:[#allocation3 + $0x50] sm:$0xff] %vm731, %v704
  %743 = vst.msk [vmem:[#allocation3 + $0x58] sm:$0xff] %vm731, %v706
  %744 = vst.msk [vmem:[#allocation3 + $0x60] sm:$0xff] %vm731, %v708
  %745 = vst.msk [vmem:[#allocation3 + $0x68] sm:$0xff] %vm731, %v710
  %746 = vst.msk [vmem:[#allocation3 + $0x70] sm:$0xff] %vm731, %v712
  %747 = vst.msk [vmem:[#allocation3 + $0x78] sm:$0xff] %vm731, %v714
  %v748 = vld [vmem:[%s408 + $0x1] sm:$0xff]
  %v749 = vld [vmem:[%s408 + $0x11] sm:$0xff]
  %v750 = vld [vmem:[%s408 + $0x21] sm:$0xff]
  %v751 = vld [vmem:[%s408 + $0x31] sm:$0xff]
  %v752 = vld [vmem:[%s408 + $0x41] sm:$0xff]
  %v753 = vld [vmem:[%s408 + $0x51] sm:$0xff]
  %v754 = vld [vmem:[%s408 + $0x61] sm:$0xff]
  %v755 = vld [vmem:[%s408 + $0x71] sm:$0xff]
  %v756 = vld [vmem:[%s408 + $0xa1] sm:$0xff]
  %v757 = vld [vmem:[%s408 + $0xb1] sm:$0xff]
  %v758 = vld [vmem:[%s408 + $0xc1] sm:$0xff]
  %v759 = vld [vmem:[%s408 + $0xd1] sm:$0xff]
  %v760 = vld [vmem:[%s408 + $0xe1] sm:$0xff]
  %v761 = vld [vmem:[%s408 + $0xf1] sm:$0xff]
  %v762 = vld [vmem:[%s408 + $0x101] sm:$0xff]
  %v763 = vld [vmem:[%s408 + $0x111] sm:$0xff]
  %780 = vrot.lane.b32.xlu0 %v748, 16
  %v781 = vpop.permute.xlu0 %780
  %782 = vrot.lane.b32.xlu0 %v749, 16
  %v783 = vpop.permute.xlu0 %782
  %784 = vrot.lane.b32.xlu0 %v750, 16
  %v785 = vpop.permute.xlu0 %784
  %786 = vrot.lane.b32.xlu0 %v751, 16
  %v787 = vpop.permute.xlu0 %786
  %788 = vrot.lane.b32.xlu0 %v752, 16
  %v789 = vpop.permute.xlu0 %788
  %790 = vrot.lane.b32.xlu0 %v753, 16
  %v791 = vpop.permute.xlu0 %790
  %792 = vrot.lane.b32.xlu0 %v754, 16
  %v793 = vpop.permute.xlu0 %792
  %794 = vrot.lane.b32.xlu0 %v755, 16
  %v795 = vpop.permute.xlu0 %794
  %796 = vrot.lane.b32.xlu0 %v756, 16
  %v797 = vpop.permute.xlu0 %796
  %798 = vrot.lane.b32.xlu0 %v757, 16
  %v799 = vpop.permute.xlu0 %798
  %800 = vrot.lane.b32.xlu0 %v758, 16
  %v801 = vpop.permute.xlu0 %800
  %802 = vrot.lane.b32.xlu0 %v759, 16
  %v803 = vpop.permute.xlu0 %802
  %804 = vrot.lane.b32.xlu0 %v760, 16
  %v805 = vpop.permute.xlu0 %804
  %806 = vrot.lane.b32.xlu0 %v761, 16
  %v807 = vpop.permute.xlu0 %806
  %808 = vrot.lane.b32.xlu0 %v762, 16
  %v809 = vpop.permute.xlu0 %808
  %810 = vrot.lane.b32.xlu0 %v763, 16
  %v811 = vpop.permute.xlu0 %810
  %vm828 = vcmask 162944
  %829 = vst.msk [vmem:[#allocation3] sm:$0xff] %vm828, %v781
  %830 = vst.msk [vmem:[#allocation3 + $0x8] sm:$0xff] %vm828, %v783
  %831 = vst.msk [vmem:[#allocation3 + $0x10] sm:$0xff] %vm828, %v785
  %832 = vst.msk [vmem:[#allocation3 + $0x18] sm:$0xff] %vm828, %v787
  %833 = vst.msk [vmem:[#allocation3 + $0x20] sm:$0xff] %vm828, %v789
  %834 = vst.msk [vmem:[#allocation3 + $0x28] sm:$0xff] %vm828, %v791
  %835 = vst.msk [vmem:[#allocation3 + $0x30] sm:$0xff] %vm828, %v793
  %836 = vst.msk [vmem:[#allocation3 + $0x38] sm:$0xff] %vm828, %v795
  %837 = vst.msk [vmem:[#allocation3 + $0x40] sm:$0xff] %vm828, %v797
  %838 = vst.msk [vmem:[#allocation3 + $0x48] sm:$0xff] %vm828, %v799
  %839 = vst.msk [vmem:[#allocation3 + $0x50] sm:$0xff] %vm828, %v801
  %840 = vst.msk [vmem:[#allocation3 + $0x58] sm:$0xff] %vm828, %v803
  %841 = vst.msk [vmem:[#allocation3 + $0x60] sm:$0xff] %vm828, %v805
  %842 = vst.msk [vmem:[#allocation3 + $0x68] sm:$0xff] %vm828, %v807
  %843 = vst.msk [vmem:[#allocation3 + $0x70] sm:$0xff] %vm828, %v809
  %844 = vst.msk [vmem:[#allocation3 + $0x78] sm:$0xff] %vm828, %v811
  %v845 = vld [vmem:[%s408 + $0x2] sm:$0xff]
  %v846 = vld [vmem:[%s408 + $0x12] sm:$0xff]
  %v847 = vld [vmem:[%s408 + $0x22] sm:$0xff]
  %v848 = vld [vmem:[%s408 + $0x32] sm:$0xff]
  %v849 = vld [vmem:[%s408 + $0x42] sm:$0xff]
  %v850 = vld [vmem:[%s408 + $0x52] sm:$0xff]
  %v851 = vld [vmem:[%s408 + $0x62] sm:$0xff]
  %v852 = vld [vmem:[%s408 + $0x72] sm:$0xff]
  %v853 = vld [vmem:[%s408 + $0xa2] sm:$0xff]
  %v854 = vld [vmem:[%s408 + $0xb2] sm:$0xff]
  %v855 = vld [vmem:[%s408 + $0xc2] sm:$0xff]
  %v856 = vld [vmem:[%s408 + $0xd2] sm:$0xff]
  %v857 = vld [vmem:[%s408 + $0xe2] sm:$0xff]
  %v858 = vld [vmem:[%s408 + $0xf2] sm:$0xff]
  %v859 = vld [vmem:[%s408 + $0x102] sm:$0xff]
  %v860 = vld [vmem:[%s408 + $0x112] sm:$0xff]
  %877 = vrot.lane.b32.xlu0 %v845, 20
  %v878 = vpop.permute.xlu0 %877
  %879 = vrot.lane.b32.xlu0 %v846, 20
  %v880 = vpop.permute.xlu0 %879
  %881 = vrot.lane.b32.xlu0 %v847, 20
  %v882 = vpop.permute.xlu0 %881
  %883 = vrot.lane.b32.xlu0 %v848, 20
  %v884 = vpop.permute.xlu0 %883
  %885 = vrot.lane.b32.xlu0 %v849, 20
  %v886 = vpop.permute.xlu0 %885
  %887 = vrot.lane.b32.xlu0 %v850, 20
  %v888 = vpop.permute.xlu0 %887
  %889 = vrot.lane.b32.xlu0 %v851, 20
  %v890 = vpop.permute.xlu0 %889
  %891 = vrot.lane.b32.xlu0 %v852, 20
  %v892 = vpop.permute.xlu0 %891
  %893 = vrot.lane.b32.xlu0 %v853, 20
  %v894 = vpop.permute.xlu0 %893
  %895 = vrot.lane.b32.xlu0 %v854, 20
  %v896 = vpop.permute.xlu0 %895
  %897 = vrot.lane.b32.xlu0 %v855, 20
  %v898 = vpop.permute.xlu0 %897
  %899 = vrot.lane.b32.xlu0 %v856, 20
  %v900 = vpop.permute.xlu0 %899
  %901 = vrot.lane.b32.xlu0 %v857, 20
  %v902 = vpop.permute.xlu0 %901
  %903 = vrot.lane.b32.xlu0 %v858, 20
  %v904 = vpop.permute.xlu0 %903
  %905 = vrot.lane.b32.xlu0 %v859, 20
  %v906 = vpop.permute.xlu0 %905
  %907 = vrot.lane.b32.xlu0 %v860, 20
  %v908 = vpop.permute.xlu0 %907
  %vm925 = vcmask 195744
  %926 = vst.msk [vmem:[#allocation3] sm:$0xff] %vm925, %v878
  %927 = vst.msk [vmem:[#allocation3 + $0x8] sm:$0xff] %vm925, %v880
  %928 = vst.msk [vmem:[#allocation3 + $0x10] sm:$0xff] %vm925, %v882
  %929 = vst.msk [vmem:[#allocation3 + $0x18] sm:$0xff] %vm925, %v884
  %930 = vst.msk [vmem:[#allocation3 + $0x20] sm:$0xff] %vm925, %v886
  %931 = vst.msk [vmem:[#allocation3 + $0x28] sm:$0xff] %vm925, %v888
  %932 = vst.msk [vmem:[#allocation3 + $0x30] sm:$0xff] %vm925, %v890
  %933 = vst.msk [vmem:[#allocation3 + $0x38] sm:$0xff] %vm925, %v892
  %934 = vst.msk [vmem:[#allocation3 + $0x40] sm:$0xff] %vm925, %v894
  %935 = vst.msk [vmem:[#allocation3 + $0x48] sm:$0xff] %vm925, %v896
  %936 = vst.msk [vmem:[#allocation3 + $0x50] sm:$0xff] %vm925, %v898
  %937 = vst.msk [vmem:[#allocation3 + $0x58] sm:$0xff] %vm925, %v900
  %938 = vst.msk [vmem:[#allocation3 + $0x60] sm:$0xff] %vm925, %v902
  %939 = vst.msk [vmem:[#allocation3 + $0x68] sm:$0xff] %vm925, %v904
  %940 = vst.msk [vmem:[#allocation3 + $0x70] sm:$0xff] %vm925, %v906
  %941 = vst.msk [vmem:[#allocation3 + $0x78] sm:$0xff] %vm925, %v908
  %s942 = scalar_lea.vmem [#allocation2], 32
  %v943 = vld [vmem:[%s942] sm:$0xff]
  %v944 = vld [vmem:[%s942 + $0x10] sm:$0xff]
  %v945 = vld [vmem:[%s942 + $0x20] sm:$0xff]
  %v946 = vld [vmem:[%s942 + $0x30] sm:$0xff]
  %v947 = vld [vmem:[%s942 + $0x40] sm:$0xff]
  %v948 = vld [vmem:[%s942 + $0x50] sm:$0xff]
  %v949 = vld [vmem:[%s942 + $0x60] sm:$0xff]
  %v950 = vld [vmem:[%s942 + $0x70] sm:$0xff]
  %v951 = vld [vmem:[%s942 + $0xa0] sm:$0xff]
  %v952 = vld [vmem:[%s942 + $0xb0] sm:$0xff]
  %v953 = vld [vmem:[%s942 + $0xc0] sm:$0xff]
  %v954 = vld [vmem:[%s942 + $0xd0] sm:$0xff]
  %v955 = vld [vmem:[%s942 + $0xe0] sm:$0xff]
  %v956 = vld [vmem:[%s942 + $0xf0] sm:$0xff]
  %v957 = vld [vmem:[%s942 + $0x100] sm:$0xff]
  %v958 = vld [vmem:[%s942 + $0x110] sm:$0xff]
  %975 = vrot.lane.b32.xlu0 %v943, 24
  %v976 = vpop.permute.xlu0 %975
  %977 = vrot.lane.b32.xlu0 %v944, 24
  %v978 = vpop.permute.xlu0 %977
  %979 = vrot.lane.b32.xlu0 %v945, 24
  %v980 = vpop.permute.xlu0 %979
  %981 = vrot.lane.b32.xlu0 %v946, 24
  %v982 = vpop.permute.xlu0 %981
  %983 = vrot.lane.b32.xlu0 %v947, 24
  %v984 = vpop.permute.xlu0 %983
  %985 = vrot.lane.b32.xlu0 %v948, 24
  %v986 = vpop.permute.xlu0 %985
  %987 = vrot.lane.b32.xlu0 %v949, 24
  %v988 = vpop.permute.xlu0 %987
  %989 = vrot.lane.b32.xlu0 %v950, 24
  %v990 = vpop.permute.xlu0 %989
  %991 = vrot.lane.b32.xlu0 %v951, 24
  %v992 = vpop.permute.xlu0 %991
  %993 = vrot.lane.b32.xlu0 %v952, 24
  %v994 = vpop.permute.xlu0 %993
  %995 = vrot.lane.b32.xlu0 %v953, 24
  %v996 = vpop.permute.xlu0 %995
  %997 = vrot.lane.b32.xlu0 %v954, 24
  %v998 = vpop.permute.xlu0 %997
  %999 = vrot.lane.b32.xlu0 %v955, 24
  %v1000 = vpop.permute.xlu0 %999
  %1001 = vrot.lane.b32.xlu0 %v956, 24
  %v1002 = vpop.permute.xlu0 %1001
  %1003 = vrot.lane.b32.xlu0 %v957, 24
  %v1004 = vpop.permute.xlu0 %1003
  %1005 = vrot.lane.b32.xlu0 %v958, 24
  %v1006 = vpop.permute.xlu0 %1005
  %vm1023 = vcmask 228544
  %1024 = vst.msk [vmem:[#allocation3] sm:$0xff] %vm1023, %v976
  %1025 = vst.msk [vmem:[#allocation3 + $0x8] sm:$0xff] %vm1023, %v978
  %1026 = vst.msk [vmem:[#allocation3 + $0x10] sm:$0xff] %vm1023, %v980
  %1027 = vst.msk [vmem:[#allocation3 + $0x18] sm:$0xff] %vm1023, %v982
  %1028 = vst.msk [vmem:[#allocation3 + $0x20] sm:$0xff] %vm1023, %v984
  %1029 = vst.msk [vmem:[#allocation3 + $0x28] sm:$0xff] %vm1023, %v986
  %1030 = vst.msk [vmem:[#allocation3 + $0x30] sm:$0xff] %vm1023, %v988
  %1031 = vst.msk [vmem:[#allocation3 + $0x38] sm:$0xff] %vm1023, %v990
  %1032 = vst.msk [vmem:[#allocation3 + $0x40] sm:$0xff] %vm1023, %v992
  %1033 = vst.msk [vmem:[#allocation3 + $0x48] sm:$0xff] %vm1023, %v994
  %1034 = vst.msk [vmem:[#allocation3 + $0x50] sm:$0xff] %vm1023, %v996
  %1035 = vst.msk [vmem:[#allocation3 + $0x58] sm:$0xff] %vm1023, %v998
  %1036 = vst.msk [vmem:[#allocation3 + $0x60] sm:$0xff] %vm1023, %v1000
  %1037 = vst.msk [vmem:[#allocation3 + $0x68] sm:$0xff] %vm1023, %v1002
  %1038 = vst.msk [vmem:[#allocation3 + $0x70] sm:$0xff] %vm1023, %v1004
  %1039 = vst.msk [vmem:[#allocation3 + $0x78] sm:$0xff] %vm1023, %v1006
  %v1040 = vld [vmem:[%s942 + $0x1] sm:$0xff]
  %v1041 = vld [vmem:[%s942 + $0x11] sm:$0xff]
  %v1042 = vld [vmem:[%s942 + $0x21] sm:$0xff]
  %v1043 = vld [vmem:[%s942 + $0x31] sm:$0xff]
  %v1044 = vld [vmem:[%s942 + $0x41] sm:$0xff]
  %v1045 = vld [vmem:[%s942 + $0x51] sm:$0xff]
  %v1046 = vld [vmem:[%s942 + $0x61] sm:$0xff]
  %v1047 = vld [vmem:[%s942 + $0x71] sm:$0xff]
  %v1048 = vld [vmem:[%s942 + $0xa1] sm:$0xff]
  %v1049 = vld [vmem:[%s942 + $0xb1] sm:$0xff]
  %v1050 = vld [vmem:[%s942 + $0xc1] sm:$0xff]
  %v1051 = vld [vmem:[%s942 + $0xd1] sm:$0xff]
  %v1052 = vld [vmem:[%s942 + $0xe1] sm:$0xff]
  %v1053 = vld [vmem:[%s942 + $0xf1] sm:$0xff]
  %v1054 = vld [vmem:[%s942 + $0x101] sm:$0xff]
  %v1055 = vld [vmem:[%s942 + $0x111] sm:$0xff]
  %1072 = vrot.lane.b32.xlu0 %v1040, 28
  %v1073 = vpop.permute.xlu0 %1072
  %1074 = vrot.lane.b32.xlu0 %v1041, 28
  %v1075 = vpop.permute.xlu0 %1074
  %1076 = vrot.lane.b32.xlu0 %v1042, 28
  %v1077 = vpop.permute.xlu0 %1076
  %1078 = vrot.lane.b32.xlu0 %v1043, 28
  %v1079 = vpop.permute.xlu0 %1078
  %1080 = vrot.lane.b32.xlu0 %v1044, 28
  %v1081 = vpop.permute.xlu0 %1080
  %1082 = vrot.lane.b32.xlu0 %v1045, 28
  %v1083 = vpop.permute.xlu0 %1082
  %1084 = vrot.lane.b32.xlu0 %v1046, 28
  %v1085 = vpop.permute.xlu0 %1084
  %1086 = vrot.lane.b32.xlu0 %v1047, 28
  %v1087 = vpop.permute.xlu0 %1086
  %1088 = vrot.lane.b32.xlu0 %v1048, 28
  %v1089 = vpop.permute.xlu0 %1088
  %1090 = vrot.lane.b32.xlu0 %v1049, 28
  %v1091 = vpop.permute.xlu0 %1090
  %1092 = vrot.lane.b32.xlu0 %v1050, 28
  %v1093 = vpop.permute.xlu0 %1092
  %1094 = vrot.lane.b32.xlu0 %v1051, 28
  %v1095 = vpop.permute.xlu0 %1094
  %1096 = vrot.lane.b32.xlu0 %v1052, 28
  %v1097 = vpop.permute.xlu0 %1096
  %1098 = vrot.lane.b32.xlu0 %v1053, 28
  %v1099 = vpop.permute.xlu0 %1098
  %1100 = vrot.lane.b32.xlu0 %v1054, 28
  %v1101 = vpop.permute.xlu0 %1100
  %1102 = vrot.lane.b32.xlu0 %v1055, 28
  %v1103 = vpop.permute.xlu0 %1102
  %vm1120 = vcmask 261344
  %1121 = vst.msk [vmem:[#allocation3] sm:$0xff] %vm1120, %v1073
  %1122 = vst.msk [vmem:[#allocation3 + $0x8] sm:$0xff] %vm1120, %v1075
  %1123 = vst.msk [vmem:[#allocation3 + $0x10] sm:$0xff] %vm1120, %v1077
  %1124 = vst.msk [vmem:[#allocation3 + $0x18] sm:$0xff] %vm1120, %v1079
  %1125 = vst.msk [vmem:[#allocation3 + $0x20] sm:$0xff] %vm1120, %v1081
  %1126 = vst.msk [vmem:[#allocation3 + $0x28] sm:$0xff] %vm1120, %v1083
  %1127 = vst.msk [vmem:[#allocation3 + $0x30] sm:$0xff] %vm1120, %v1085
  %1128 = vst.msk [vmem:[#allocation3 + $0x38] sm:$0xff] %vm1120, %v1087
  %1129 = vst.msk [vmem:[#allocation3 + $0x40] sm:$0xff] %vm1120, %v1089
  %1130 = vst.msk [vmem:[#allocation3 + $0x48] sm:$0xff] %vm1120, %v1091
  %1131 = vst.msk [vmem:[#allocation3 + $0x50] sm:$0xff] %vm1120, %v1093
  %1132 = vst.msk [vmem:[#allocation3 + $0x58] sm:$0xff] %vm1120, %v1095
  %1133 = vst.msk [vmem:[#allocation3 + $0x60] sm:$0xff] %vm1120, %v1097
  %1134 = vst.msk [vmem:[#allocation3 + $0x68] sm:$0xff] %vm1120, %v1099
  %1135 = vst.msk [vmem:[#allocation3 + $0x70] sm:$0xff] %vm1120, %v1101
  %1136 = vst.msk [vmem:[#allocation3 + $0x78] sm:$0xff] %vm1120, %v1103
  %v1137 = vld [vmem:[%s942 + $0x2] sm:$0xff]
  %v1138 = vld [vmem:[%s942 + $0x12] sm:$0xff]
  %v1139 = vld [vmem:[%s942 + $0x22] sm:$0xff]
  %v1140 = vld [vmem:[%s942 + $0x32] sm:$0xff]
  %v1141 = vld [vmem:[%s942 + $0x42] sm:$0xff]
  %v1142 = vld [vmem:[%s942 + $0x52] sm:$0xff]
  %v1143 = vld [vmem:[%s942 + $0x62] sm:$0xff]
  %v1144 = vld [vmem:[%s942 + $0x72] sm:$0xff]
  %v1145 = vld [vmem:[%s942 + $0xa2] sm:$0xff]
  %v1146 = vld [vmem:[%s942 + $0xb2] sm:$0xff]
  %v1147 = vld [vmem:[%s942 + $0xc2] sm:$0xff]
  %v1148 = vld [vmem:[%s942 + $0xd2] sm:$0xff]
  %v1149 = vld [vmem:[%s942 + $0xe2] sm:$0xff]
  %v1150 = vld [vmem:[%s942 + $0xf2] sm:$0xff]
  %v1151 = vld [vmem:[%s942 + $0x102] sm:$0xff]
  %v1152 = vld [vmem:[%s942 + $0x112] sm:$0xff]
  %1169 = vrot.lane.b32.xlu0 %v1137, 32
  %v1170 = vpop.permute.xlu0 %1169
  %1171 = vrot.lane.b32.xlu0 %v1138, 32
  %v1172 = vpop.permute.xlu0 %1171
  %1173 = vrot.lane.b32.xlu0 %v1139, 32
  %v1174 = vpop.permute.xlu0 %1173
  %1175 = vrot.lane.b32.xlu0 %v1140, 32
  %v1176 = vpop.permute.xlu0 %1175
  %1177 = vrot.lane.b32.xlu0 %v1141, 32
  %v1178 = vpop.permute.xlu0 %1177
  %1179 = vrot.lane.b32.xlu0 %v1142, 32
  %v1180 = vpop.permute.xlu0 %1179
  %1181 = vrot.lane.b32.xlu0 %v1143, 32
  %v1182 = vpop.permute.xlu0 %1181
  %1183 = vrot.lane.b32.xlu0 %v1144, 32
  %v1184 = vpop.permute.xlu0 %1183
  %1185 = vrot.lane.b32.xlu0 %v1145, 32
  %v1186 = vpop.permute.xlu0 %1185
  %1187 = vrot.lane.b32.xlu0 %v1146, 32
  %v1188 = vpop.permute.xlu0 %1187
  %1189 = vrot.lane.b32.xlu0 %v1147, 32
  %v1190 = vpop.permute.xlu0 %1189
  %1191 = vrot.lane.b32.xlu0 %v1148, 32
  %v1192 = vpop.permute.xlu0 %1191
  %1193 = vrot.lane.b32.xlu0 %v1149, 32
  %v1194 = vpop.permute.xlu0 %1193
  %1195 = vrot.lane.b32.xlu0 %v1150, 32
  %v1196 = vpop.permute.xlu0 %1195
  %1197 = vrot.lane.b32.xlu0 %v1151, 32
  %v1198 = vpop.permute.xlu0 %1197
  %1199 = vrot.lane.b32.xlu0 %v1152, 32
  %v1200 = vpop.permute.xlu0 %1199
  %vm1217 = vcmask 294144
  %1218 = vst.msk [vmem:[#allocation3] sm:$0xff] %vm1217, %v1170
  %1219 = vst.msk [vmem:[#allocation3 + $0x8] sm:$0xff] %vm1217, %v1172
  %1220 = vst.msk [vmem:[#allocation3 + $0x10] sm:$0xff] %vm1217, %v1174
  %1221 = vst.msk [vmem:[#allocation3 + $0x18] sm:$0xff] %vm1217, %v1176
  %1222 = vst.msk [vmem:[#allocation3 + $0x20] sm:$0xff] %vm1217, %v1178
  %1223 = vst.msk [vmem:[#allocation3 + $0x28] sm:$0xff] %vm1217, %v1180
  %1224 = vst.msk [vmem:[#allocation3 + $0x30] sm:$0xff] %vm1217, %v1182
  %1225 = vst.msk [vmem:[#allocation3 + $0x38] sm:$0xff] %vm1217, %v1184
  %1226 = vst.msk [vmem:[#allocation3 + $0x40] sm:$0xff] %vm1217, %v1186
  %1227 = vst.msk [vmem:[#allocation3 + $0x48] sm:$0xff] %vm1217, %v1188
  %1228 = vst.msk [vmem:[#allocation3 + $0x50] sm:$0xff] %vm1217, %v1190
  %1229 = vst.msk [vmem:[#allocation3 + $0x58] sm:$0xff] %vm1217, %v1192
  %1230 = vst.msk [vmem:[#allocation3 + $0x60] sm:$0xff] %vm1217, %v1194
  %1231 = vst.msk [vmem:[#allocation3 + $0x68] sm:$0xff] %vm1217, %v1196
  %1232 = vst.msk [vmem:[#allocation3 + $0x70] sm:$0xff] %vm1217, %v1198
  %1233 = vst.msk [vmem:[#allocation3 + $0x78] sm:$0xff] %vm1217, %v1200
  %v1234 = vld [vmem:[#allocation3] sm:$0xff]
  %v1235 = vld [vmem:[#allocation3 + $0x8] sm:$0xff]
  %v1236 = vld [vmem:[#allocation3 + $0x10] sm:$0xff]
  %v1237 = vld [vmem:[#allocation3 + $0x18] sm:$0xff]
  %v1238 = vld [vmem:[#allocation3 + $0x20] sm:$0xff]
  %v1239 = vld [vmem:[#allocation3 + $0x28] sm:$0xff]
  %v1240 = vld [vmem:[#allocation3 + $0x30] sm:$0xff]
  %v1241 = vld [vmem:[#allocation3 + $0x38] sm:$0xff]
  %v1242 = vld [vmem:[#allocation3 + $0x40] sm:$0xff]
  %v1243 = vld [vmem:[#allocation3 + $0x48] sm:$0xff]
  %v1244 = vld [vmem:[#allocation3 + $0x50] sm:$0xff]
  %v1245 = vld [vmem:[#allocation3 + $0x58] sm:$0xff]
  %v1246 = vld [vmem:[#allocation3 + $0x60] sm:$0xff]
  %v1247 = vld [vmem:[#allocation3 + $0x68] sm:$0xff]
  %v1248 = vld [vmem:[#allocation3 + $0x70] sm:$0xff]
  %v1249 = vld [vmem:[#allocation3 + $0x78] sm:$0xff]
  %v1251 = vsel %vm56, %v1234, 0
  %v1254 = vsel %vm56, %v1235, 0
  %v1257 = vsel %vm56, %v1236, 0
  %v1260 = vsel %vm56, %v1237, 0
  %v1263 = vsel %vm56, %v1238, 0
  %v1266 = vsel %vm56, %v1239, 0
  %v1269 = vsel %vm56, %v1240, 0
  %v1272 = vsel %vm56, %v1241, 0
  %v1275 = vsel %vm56, %v1242, 0
  %v1278 = vsel %vm56, %v1243, 0
  %v1281 = vsel %vm56, %v1244, 0
  %v1284 = vsel %vm56, %v1245, 0
  %v1287 = vsel %vm56, %v1246, 0
  %v1290 = vsel %vm56, %v1247, 0
  %v1293 = vsel %vm56, %v1248, 0
  %v1296 = vsel %vm56, %v1249, 0
  %v1299 = vsel %vm105, %v366, 0
  %1301 = vmatpush.msra.mxu0 0.0
  %1302 = vmatpush.msra.mxu0 0.0
  %1303 = vmatpush.msra.mxu0 0.0
  %1304 = vmatpush.msra.mxu0 0.0
  %1305 = vmatpush.msra.mxu0 0.0
  %1306 = vmatpush.msra.mxu0 0.0
  %1307 = vmatpush.msra.mxu0 0.0
  %1308 = vmatpush.msra.mxu0 0.0
  %1309 = vmatpush.msra.mxu0 0.0
  %1310 = vmatpush.msra.mxu0 0.0
  %1311 = vmatpush.msra.mxu0 0.0
  %1312 = vmatpush.msra.mxu0 %v1299
  %1313 = vmatpush.msra.mxu0 %v365
  %1314 = vmatpush.msra.mxu0 %v364
  %1315 = vmatpush.msra.mxu0 %v363
  %1316 = vmatpush.msra.mxu0 %v362
  %1317 = vmatmul.f32.gmra.mxu0 %v1251
  %v1318 = vpop.f32.mrf.mxu0
  %v1319 = vadd.f32 0.0, %v1318
  %1320 = vmatmul.f32.gmra.mxu0 %v1254
  %v1321 = vpop.f32.mrf.mxu0
  %v1322 = vadd.f32 0.0, %v1321
  %1323 = vmatmul.f32.gmra.mxu0 %v1257
  %v1324 = vpop.f32.mrf.mxu0
  %v1325 = vadd.f32 0.0, %v1324
  %1326 = vmatmul.f32.gmra.mxu0 %v1260
  %v1327 = vpop.f32.mrf.mxu0
  %v1328 = vadd.f32 0.0, %v1327
  %1329 = vmatmul.f32.gmra.mxu0 %v1263
  %v1330 = vpop.f32.mrf.mxu0
  %v1331 = vadd.f32 0.0, %v1330
  %1332 = vmatmul.f32.gmra.mxu0 %v1266
  %v1333 = vpop.f32.mrf.mxu0
  %v1334 = vadd.f32 0.0, %v1333
  %1335 = vmatmul.f32.gmra.mxu0 %v1269
  %v1336 = vpop.f32.mrf.mxu0
  %v1337 = vadd.f32 0.0, %v1336
  %1338 = vmatmul.f32.gmra.mxu0 %v1272
  %v1339 = vpop.f32.mrf.mxu0
  %v1340 = vadd.f32 0.0, %v1339
  %1341 = vmatmul.f32.gmra.mxu0 %v1275
  %v1342 = vpop.f32.mrf.mxu0
  %v1343 = vadd.f32 0.0, %v1342
  %1344 = vmatmul.f32.gmra.mxu0 %v1278
  %v1345 = vpop.f32.mrf.mxu0
  %v1346 = vadd.f32 0.0, %v1345
  %1347 = vmatmul.f32.gmra.mxu0 %v1281
  %v1348 = vpop.f32.mrf.mxu0
  %v1349 = vadd.f32 0.0, %v1348
  %1350 = vmatmul.f32.gmra.mxu0 %v1284
  %v1351 = vpop.f32.mrf.mxu0
  %v1352 = vadd.f32 0.0, %v1351
  %1353 = vmatmul.f32.gmra.mxu0 %v1287
  %v1354 = vpop.f32.mrf.mxu0
  %v1355 = vadd.f32 0.0, %v1354
  %1356 = vmatmul.f32.gmra.mxu0 %v1290
  %v1357 = vpop.f32.mrf.mxu0
  %v1358 = vadd.f32 0.0, %v1357
  %1359 = vmatmul.f32.gmra.mxu0 %v1293
  %v1360 = vpop.f32.mrf.mxu0
  %v1361 = vadd.f32 0.0, %v1360
  %1362 = vmatmul.f32.gmra.mxu0 %v1296
  %v1363 = vpop.f32.mrf.mxu0
  %v1364 = vadd.f32 0.0, %v1363
  %1365 = vdwg.mxu0
  %v1366 = vld [vmem:[%s6] sm:$0x1]
  %v1367 = vld [vmem:[%s7] sm:$0x1]
  %vm1368 = vcmask 64512
  %v1369 = vsel %vm1368, %v1319, 0.0
  %v1370 = vsel %vm1368, %v1322, 0.0
  %v1371 = vadd.f32 %v1369, %v1370
  %v1372 = vsel %vm1368, %v1325, 0.0
  %v1373 = vadd.f32 %v1371, %v1372
  %v1374 = vsel %vm1368, %v1328, 0.0
  %v1375 = vadd.f32 %v1373, %v1374
  %v1376 = vsel %vm1368, %v1331, 0.0
  %v1377 = vadd.f32 %v1375, %v1376
  %v1378 = vsel %vm1368, %v1334, 0.0
  %v1379 = vadd.f32 %v1377, %v1378
  %v1380 = vsel %vm1368, %v1337, 0.0
  %v1381 = vadd.f32 %v1379, %v1380
  %v1382 = vsel %vm1368, %v1340, 0.0
  %v1383 = vadd.f32 %v1381, %v1382
  %v1384 = vsel %vm1368, %v1343, 0.0
  %v1385 = vadd.f32 %v1383, %v1384
  %v1386 = vsel %vm1368, %v1346, 0.0
  %v1387 = vadd.f32 %v1385, %v1386
  %v1388 = vsel %vm1368, %v1349, 0.0
  %v1389 = vadd.f32 %v1387, %v1388
  %v1390 = vsel %vm1368, %v1352, 0.0
  %v1391 = vadd.f32 %v1389, %v1390
  %v1392 = vsel %vm1368, %v1355, 0.0
  %v1393 = vadd.f32 %v1391, %v1392
  %v1394 = vsel %vm1368, %v1358, 0.0
  %v1395 = vadd.f32 %v1393, %v1394
  %v1396 = vsel %vm1368, %v1361, 0.0
  %v1397 = vadd.f32 %v1395, %v1396
  %v1398 = vsel %vm1368, %v1364, 0.0
  %v1399 = vadd.f32 %v1397, %v1398
  %v1400 = vrot.slane %v1399, 4
  %v1401 = vadd.f32 %v1399, %v1400
  %v1402 = vrot.slane %v1401, 2
  %v1403 = vadd.f32 %v1401, %v1402
  %v1404 = vrot.slane %v1403, 1
  %v1405 = vadd.f32 %v1403, %v1404
  %v1406 = vmul.f32 %v1405, %v220
  %v1407 = vmul.f32 %v1319, %v1319
  %v1408 = vmul.f32 %v1322, %v1322
  %v1409 = vmul.f32 %v1325, %v1325
  %v1410 = vmul.f32 %v1328, %v1328
  %v1411 = vmul.f32 %v1331, %v1331
  %v1412 = vmul.f32 %v1334, %v1334
  %v1413 = vmul.f32 %v1337, %v1337
  %v1414 = vmul.f32 %v1340, %v1340
  %v1415 = vmul.f32 %v1343, %v1343
  %v1416 = vmul.f32 %v1346, %v1346
  %v1417 = vmul.f32 %v1349, %v1349
  %v1418 = vmul.f32 %v1352, %v1352
  %v1419 = vmul.f32 %v1355, %v1355
  %v1420 = vmul.f32 %v1358, %v1358
  %v1421 = vmul.f32 %v1361, %v1361
  %v1422 = vmul.f32 %v1364, %v1364
  %v1423 = vsel %vm1368, %v1407, 0.0
  %v1424 = vsel %vm1368, %v1408, 0.0
  %v1425 = vadd.f32 %v1423, %v1424
  %v1426 = vsel %vm1368, %v1409, 0.0
  %v1427 = vadd.f32 %v1425, %v1426
  %v1428 = vsel %vm1368, %v1410, 0.0
  %v1429 = vadd.f32 %v1427, %v1428
  %v1430 = vsel %vm1368, %v1411, 0.0
  %v1431 = vadd.f32 %v1429, %v1430
  %v1432 = vsel %vm1368, %v1412, 0.0
  %v1433 = vadd.f32 %v1431, %v1432
  %v1434 = vsel %vm1368, %v1413, 0.0
  %v1435 = vadd.f32 %v1433, %v1434
  %v1436 = vsel %vm1368, %v1414, 0.0
  %v1437 = vadd.f32 %v1435, %v1436
  %v1438 = vsel %vm1368, %v1415, 0.0
  %v1439 = vadd.f32 %v1437, %v1438
  %v1440 = vsel %vm1368, %v1416, 0.0
  %v1441 = vadd.f32 %v1439, %v1440
  %v1442 = vsel %vm1368, %v1417, 0.0
  %v1443 = vadd.f32 %v1441, %v1442
  %v1444 = vsel %vm1368, %v1418, 0.0
  %v1445 = vadd.f32 %v1443, %v1444
  %v1446 = vsel %vm1368, %v1419, 0.0
  %v1447 = vadd.f32 %v1445, %v1446
  %v1448 = vsel %vm1368, %v1420, 0.0
  %v1449 = vadd.f32 %v1447, %v1448
  %v1450 = vsel %vm1368, %v1421, 0.0
  %v1451 = vadd.f32 %v1449, %v1450
  %v1452 = vsel %vm1368, %v1422, 0.0
  %v1453 = vadd.f32 %v1451, %v1452
  %v1454 = vrot.slane %v1453, 4
  %v1455 = vadd.f32 %v1453, %v1454
  %v1456 = vrot.slane %v1455, 2
  %v1457 = vadd.f32 %v1455, %v1456
  %v1458 = vrot.slane %v1457, 1
  %v1459 = vadd.f32 %v1457, %v1458
  %v1460 = vmul.f32 %v1459, %v220
  %v1461 = vmul.f32 %v1406, %v1406
  %v1462 = vsub.f32 %v1460, %v1461
  %v1463 = vadd.f32 %v1462, 1e-05
  %v1464 = vrsqrt.pop %v1463
  %v1465 = vmul.f32 %v1464, %v1463
  %v1466 = vmul.f32 %v1465, %v1464
  %v1467 = vmul.f32 0.5, %v1466
  %v1468 = vsub.f32 1.5, %v1467
  %v1469 = vmul.f32 %v1464, %v1468
  %vm1470 = vweird.f32 %v1463
  %vm1471 = vweird.f32 %v1464
  %vm1472 = vmor %vm1470, %vm1471
  %v1473 = vsel %vm1472, %v1464, %v1469
  %v1474 = vmul.f32 %v1366, %v1473
  %v1475 = vmul.f32 %v1406, %v1474
  %v1476 = vsub.f32 %v1367, %v1475
  %v1478 = vperm.slane %v1474, 0
  %v1480 = vmul.f32 %v1319, %v1478
  %v1481 = vmul.f32 %v1322, %v1478
  %v1482 = vmul.f32 %v1325, %v1478
  %v1483 = vmul.f32 %v1328, %v1478
  %v1484 = vmul.f32 %v1331, %v1478
  %v1485 = vmul.f32 %v1334, %v1478
  %v1486 = vmul.f32 %v1337, %v1478
  %v1487 = vmul.f32 %v1340, %v1478
  %v1488 = vmul.f32 %v1343, %v1478
  %v1489 = vmul.f32 %v1346, %v1478
  %v1490 = vmul.f32 %v1349, %v1478
  %v1491 = vmul.f32 %v1352, %v1478
  %v1492 = vmul.f32 %v1355, %v1478
  %v1493 = vmul.f32 %v1358, %v1478
  %v1494 = vmul.f32 %v1361, %v1478
  %v1495 = vmul.f32 %v1364, %v1478
  %v1497 = vperm.slane %v1476, 0
  %v1499 = vadd.f32 %v1480, %v1497
  %v1500 = vadd.f32 %v1481, %v1497
  %v1501 = vadd.f32 %v1482, %v1497
  %v1502 = vadd.f32 %v1483, %v1497
  %v1503 = vadd.f32 %v1484, %v1497
  %v1504 = vadd.f32 %v1485, %v1497
  %v1505 = vadd.f32 %v1486, %v1497
  %v1506 = vadd.f32 %v1487, %v1497
  %v1507 = vadd.f32 %v1488, %v1497
  %v1508 = vadd.f32 %v1489, %v1497
  %v1509 = vadd.f32 %v1490, %v1497
  %v1510 = vadd.f32 %v1491, %v1497
  %v1511 = vadd.f32 %v1492, %v1497
  %v1512 = vadd.f32 %v1493, %v1497
  %v1513 = vadd.f32 %v1494, %v1497
  %v1514 = vadd.f32 %v1495, %v1497
  %v1515 = vmul.f32 %v1499, 0.1
  %v1516 = vmul.f32 %v1500, 0.1
  %v1517 = vmul.f32 %v1501, 0.1
  %v1518 = vmul.f32 %v1502, 0.1
  %v1519 = vmul.f32 %v1503, 0.1
  %v1520 = vmul.f32 %v1504, 0.1
  %v1521 = vmul.f32 %v1505, 0.1
  %v1522 = vmul.f32 %v1506, 0.1
  %v1523 = vmul.f32 %v1507, 0.1
  %v1524 = vmul.f32 %v1508, 0.1
  %v1525 = vmul.f32 %v1509, 0.1
  %v1526 = vmul.f32 %v1510, 0.1
  %v1527 = vmul.f32 %v1511, 0.1
  %v1528 = vmul.f32 %v1512, 0.1
  %v1529 = vmul.f32 %v1513, 0.1
  %v1530 = vmul.f32 %v1514, 0.1
  %v1531 = vmax.f32 %v1499, %v1515
  %v1532 = vmax.f32 %v1500, %v1516
  %v1533 = vmax.f32 %v1501, %v1517
  %v1534 = vmax.f32 %v1502, %v1518
  %v1535 = vmax.f32 %v1503, %v1519
  %v1536 = vmax.f32 %v1504, %v1520
  %v1537 = vmax.f32 %v1505, %v1521
  %v1538 = vmax.f32 %v1506, %v1522
  %v1539 = vmax.f32 %v1507, %v1523
  %v1540 = vmax.f32 %v1508, %v1524
  %v1541 = vmax.f32 %v1509, %v1525
  %v1542 = vmax.f32 %v1510, %v1526
  %v1543 = vmax.f32 %v1511, %v1527
  %v1544 = vmax.f32 %v1512, %v1528
  %v1545 = vmax.f32 %v1513, %v1529
  %v1546 = vmax.f32 %v1514, %v1530
  %v1547 = vld [vmem:[%s3] sm:$0xff]
  %v1548 = vld [vmem:[%s3 + $0x8] sm:$0xff]
  %v1549 = vld [vmem:[%s3 + $0x10] sm:$0xff]
  %v1550 = vld [vmem:[%s3 + $0x18] sm:$0xff]
  %v1551 = vld [vmem:[%s3 + $0x20] sm:$0xff]
  %v1552 = vld [vmem:[%s3 + $0x28] sm:$0xff]
  %v1553 = vld [vmem:[%s3 + $0x30] sm:$0xff]
  %v1554 = vld [vmem:[%s3 + $0x38] sm:$0xff]
  %v1555 = vld [vmem:[%s3 + $0x40] sm:$0xff]
  %1556 = vst.msk [vmem:[#allocation4] sm:$0xff] %vm1368, 0.0
  %vm1557 = vcmask 58368
  %1558 = vst.msk [vmem:[#allocation4 + $0x8] sm:$0x3] %vm1557, 0.0
  %1559 = vst.msk [vmem:[#allocation4 + $0x10] sm:$0xff] %vm1368, 0.0
  %1560 = vst.msk [vmem:[#allocation4 + $0x18] sm:$0x3] %vm1557, 0.0
  %1561 = vst.msk [vmem:[#allocation4 + $0x20] sm:$0xff] %vm1368, 0.0
  %1562 = vst.msk [vmem:[#allocation4 + $0x28] sm:$0x3] %vm1557, 0.0
  %1563 = vst.msk [vmem:[#allocation4 + $0x30] sm:$0xff] %vm1368, 0.0
  %1564 = vst.msk [vmem:[#allocation4 + $0x38] sm:$0x3] %vm1557, 0.0
  %1565 = vst.msk [vmem:[#allocation4 + $0x40] sm:$0xff] %vm1368, 0.0
  %1566 = vst.msk [vmem:[#allocation4 + $0x48] sm:$0x3] %vm1557, 0.0
  %1567 = vst.msk [vmem:[#allocation4 + $0x50] sm:$0xff] %vm1368, 0.0
  %1568 = vst.msk [vmem:[#allocation4 + $0x58] sm:$0x3] %vm1557, 0.0
  %1569 = vst.msk [vmem:[#allocation4 + $0x60] sm:$0xff] %vm1368, 0.0
  %1570 = vst.msk [vmem:[#allocation4 + $0x68] sm:$0x3] %vm1557, 0.0
  %1571 = vst.msk [vmem:[#allocation4 + $0x70] sm:$0xff] %vm1368, 0.0
  %1572 = vst.msk [vmem:[#allocation4 + $0x78] sm:$0x3] %vm1557, 0.0
  %1573 = vst.msk [vmem:[#allocation4 + $0x80] sm:$0xff] %vm1368, 0.0
  %1574 = vst.msk [vmem:[#allocation4 + $0x88] sm:$0x3] %vm1557, 0.0
  %1575 = vst.msk [vmem:[#allocation4 + $0x90] sm:$0xff] %vm1368, 0.0
  %1576 = vst.msk [vmem:[#allocation4 + $0x98] sm:$0x3] %vm1557, 0.0
  %1577 = vst.msk [vmem:[#allocation4 + $0xa0] sm:$0xff] %vm1368, 0.0
  %1578 = vst.msk [vmem:[#allocation4 + $0xa8] sm:$0x3] %vm1557, 0.0
  %1579 = vst.msk [vmem:[#allocation4 + $0xb0] sm:$0xff] %vm1368, 0.0
  %1580 = vst.msk [vmem:[#allocation4 + $0xb8] sm:$0x3] %vm1557, 0.0
  %1581 = vst.msk [vmem:[#allocation4 + $0xc0] sm:$0xff] %vm1368, 0.0
  %1582 = vst.msk [vmem:[#allocation4 + $0xc8] sm:$0x3] %vm1557, 0.0
  %1583 = vst.msk [vmem:[#allocation4 + $0xd0] sm:$0xff] %vm1368, 0.0
  %1584 = vst.msk [vmem:[#allocation4 + $0xd8] sm:$0x3] %vm1557, 0.0
  %1585 = vst.msk [vmem:[#allocation4 + $0xe0] sm:$0xff] %vm1368, 0.0
  %1586 = vst.msk [vmem:[#allocation4 + $0xe8] sm:$0x3] %vm1557, 0.0
  %1587 = vst.msk [vmem:[#allocation4 + $0xf0] sm:$0xff] %vm1368, 0.0
  %1588 = vst.msk [vmem:[#allocation4 + $0xf8] sm:$0x3] %vm1557, 0.0
  %1589 = vst.msk [vmem:[#allocation4 + $0x100] sm:$0xff] %vm1368, 0.0
  %1590 = vst.msk [vmem:[#allocation4 + $0x108] sm:$0x3] %vm1557, 0.0
  %1591 = vst.msk [vmem:[#allocation4 + $0x110] sm:$0xff] %vm1368, 0.0
  %1592 = vst.msk [vmem:[#allocation4 + $0x118] sm:$0x3] %vm1557, 0.0
  %1593 = vst.msk [vmem:[#allocation4 + $0x120] sm:$0xff] %vm1368, 0.0
  %1594 = vst.msk [vmem:[#allocation4 + $0x128] sm:$0x3] %vm1557, 0.0
  %1595 = vst.msk [vmem:[#allocation4 + $0x130] sm:$0xff] %vm1368, 0.0
  %1596 = vst.msk [vmem:[#allocation4 + $0x138] sm:$0x3] %vm1557, 0.0
  %s1597 = scalar_lea.vmem [#allocation4], 16
  %1598 = vst.msk [vmem:[%s1597 + $0x1] sm:$0xff] %vm1368, %v1531
  %1599 = vst.msk [vmem:[%s1597 + $0x11] sm:$0xff] %vm1368, %v1532
  %1600 = vst.msk [vmem:[%s1597 + $0x21] sm:$0xff] %vm1368, %v1533
  %1601 = vst.msk [vmem:[%s1597 + $0x31] sm:$0xff] %vm1368, %v1534
  %1602 = vst.msk [vmem:[%s1597 + $0x41] sm:$0xff] %vm1368, %v1535
  %1603 = vst.msk [vmem:[%s1597 + $0x51] sm:$0xff] %vm1368, %v1536
  %1604 = vst.msk [vmem:[%s1597 + $0x61] sm:$0xff] %vm1368, %v1537
  %1605 = vst.msk [vmem:[%s1597 + $0x71] sm:$0xff] %vm1368, %v1538
  %1606 = vst.msk [vmem:[%s1597 + $0xa1] sm:$0xff] %vm1368, %v1539
  %1607 = vst.msk [vmem:[%s1597 + $0xb1] sm:$0xff] %vm1368, %v1540
  %1608 = vst.msk [vmem:[%s1597 + $0xc1] sm:$0xff] %vm1368, %v1541
  %1609 = vst.msk [vmem:[%s1597 + $0xd1] sm:$0xff] %vm1368, %v1542
  %1610 = vst.msk [vmem:[%s1597 + $0xe1] sm:$0xff] %vm1368, %v1543
  %1611 = vst.msk [vmem:[%s1597 + $0xf1] sm:$0xff] %vm1368, %v1544
  %1612 = vst.msk [vmem:[%s1597 + $0x101] sm:$0xff] %vm1368, %v1545
  %1613 = vst.msk [vmem:[%s1597 + $0x111] sm:$0xff] %vm1368, %v1546
  %v1614 = vld [vmem:[#allocation4] sm:$0xff]
  %v1615 = vld [vmem:[#allocation4 + $0x10] sm:$0xff]
  %v1616 = vld [vmem:[#allocation4 + $0x20] sm:$0xff]
  %v1617 = vld [vmem:[#allocation4 + $0x30] sm:$0xff]
  %v1618 = vld [vmem:[#allocation4 + $0x40] sm:$0xff]
  %v1619 = vld [vmem:[#allocation4 + $0x50] sm:$0xff]
  %v1620 = vld [vmem:[#allocation4 + $0x60] sm:$0xff]
  %v1621 = vld [vmem:[#allocation4 + $0x70] sm:$0xff]
  %v1622 = vld [vmem:[#allocation4 + $0xa0] sm:$0xff]
  %v1623 = vld [vmem:[#allocation4 + $0xb0] sm:$0xff]
  %v1624 = vld [vmem:[#allocation4 + $0xc0] sm:$0xff]
  %v1625 = vld [vmem:[#allocation4 + $0xd0] sm:$0xff]
  %v1626 = vld [vmem:[#allocation4 + $0xe0] sm:$0xff]
  %v1627 = vld [vmem:[#allocation4 + $0xf0] sm:$0xff]
  %v1628 = vld [vmem:[#allocation4 + $0x100] sm:$0xff]
  %v1629 = vld [vmem:[#allocation4 + $0x110] sm:$0xff]
  %1630 = vst.msk [vmem:[#allocation5] sm:$0xff] %vm1368, %v1614
  %1631 = vst.msk [vmem:[#allocation5 + $0x8] sm:$0xff] %vm1368, %v1615
  %1632 = vst.msk [vmem:[#allocation5 + $0x10] sm:$0xff] %vm1368, %v1616
  %1633 = vst.msk [vmem:[#allocation5 + $0x18] sm:$0xff] %vm1368, %v1617
  %1634 = vst.msk [vmem:[#allocation5 + $0x20] sm:$0xff] %vm1368, %v1618
  %1635 = vst.msk [vmem:[#allocation5 + $0x28] sm:$0xff] %vm1368, %v1619
  %1636 = vst.msk [vmem:[#allocation5 + $0x30] sm:$0xff] %vm1368, %v1620
  %1637 = vst.msk [vmem:[#allocation5 + $0x38] sm:$0xff] %vm1368, %v1621
  %1638 = vst.msk [vmem:[#allocation5 + $0x40] sm:$0xff] %vm1368, %v1622
  %1639 = vst.msk [vmem:[#allocation5 + $0x48] sm:$0xff] %vm1368, %v1623
  %1640 = vst.msk [vmem:[#allocation5 + $0x50] sm:$0xff] %vm1368, %v1624
  %1641 = vst.msk [vmem:[#allocation5 + $0x58] sm:$0xff] %vm1368, %v1625
  %1642 = vst.msk [vmem:[#allocation5 + $0x60] sm:$0xff] %vm1368, %v1626
  %1643 = vst.msk [vmem:[#allocation5 + $0x68] sm:$0xff] %vm1368, %v1627
  %1644 = vst.msk [vmem:[#allocation5 + $0x70] sm:$0xff] %vm1368, %v1628
  %1645 = vst.msk [vmem:[#allocation5 + $0x78] sm:$0xff] %vm1368, %v1629
  %v1646 = vld [vmem:[#allocation4 + $0x1] sm:$0xff]
  %v1647 = vld [vmem:[#allocation4 + $0x11] sm:$0xff]
  %v1648 = vld [vmem:[#allocation4 + $0x21] sm:$0xff]
  %v1649 = vld [vmem:[#allocation4 + $0x31] sm:$0xff]
  %v1650 = vld [vmem:[#allocation4 + $0x41] sm:$0xff]
  %v1651 = vld [vmem:[#allocation4 + $0x51] sm:$0xff]
  %v1652 = vld [vmem:[#allocation4 + $0x61] sm:$0xff]
  %v1653 = vld [vmem:[#allocation4 + $0x71] sm:$0xff]
  %v1654 = vld [vmem:[#allocation4 + $0xa1] sm:$0xff]
  %v1655 = vld [vmem:[#allocation4 + $0xb1] sm:$0xff]
  %v1656 = vld [vmem:[#allocation4 + $0xc1] sm:$0xff]
  %v1657 = vld [vmem:[#allocation4 + $0xd1] sm:$0xff]
  %v1658 = vld [vmem:[#allocation4 + $0xe1] sm:$0xff]
  %v1659 = vld [vmem:[#allocation4 + $0xf1] sm:$0xff]
  %v1660 = vld [vmem:[#allocation4 + $0x101] sm:$0xff]
  %v1661 = vld [vmem:[#allocation4 + $0x111] sm:$0xff]
  %1678 = vrot.lane.b32.xlu0 %v1646, 8
  %v1679 = vpop.permute.xlu0 %1678
  %1680 = vrot.lane.b32.xlu0 %v1647, 8
  %v1681 = vpop.permute.xlu0 %1680
  %1682 = vrot.lane.b32.xlu0 %v1648, 8
  %v1683 = vpop.permute.xlu0 %1682
  %1684 = vrot.lane.b32.xlu0 %v1649, 8
  %v1685 = vpop.permute.xlu0 %1684
  %1686 = vrot.lane.b32.xlu0 %v1650, 8
  %v1687 = vpop.permute.xlu0 %1686
  %1688 = vrot.lane.b32.xlu0 %v1651, 8
  %v1689 = vpop.permute.xlu0 %1688
  %1690 = vrot.lane.b32.xlu0 %v1652, 8
  %v1691 = vpop.permute.xlu0 %1690
  %1692 = vrot.lane.b32.xlu0 %v1653, 8
  %v1693 = vpop.permute.xlu0 %1692
  %1694 = vrot.lane.b32.xlu0 %v1654, 8
  %v1695 = vpop.permute.xlu0 %1694
  %1696 = vrot.lane.b32.xlu0 %v1655, 8
  %v1697 = vpop.permute.xlu0 %1696
  %1698 = vrot.lane.b32.xlu0 %v1656, 8
  %v1699 = vpop.permute.xlu0 %1698
  %1700 = vrot.lane.b32.xlu0 %v1657, 8
  %v1701 = vpop.permute.xlu0 %1700
  %1702 = vrot.lane.b32.xlu0 %v1658, 8
  %v1703 = vpop.permute.xlu0 %1702
  %1704 = vrot.lane.b32.xlu0 %v1659, 8
  %v1705 = vpop.permute.xlu0 %1704
  %1706 = vrot.lane.b32.xlu0 %v1660, 8
  %v1707 = vpop.permute.xlu0 %1706
  %1708 = vrot.lane.b32.xlu0 %v1661, 8
  %v1709 = vpop.permute.xlu0 %1708
  %vm1726 = vcmask 130112
  %1727 = vst.msk [vmem:[#allocation5] sm:$0xff] %vm1726, %v1679
  %1728 = vst.msk [vmem:[#allocation5 + $0x8] sm:$0xff] %vm1726, %v1681
  %1729 = vst.msk [vmem:[#allocation5 + $0x10] sm:$0xff] %vm1726, %v1683
  %1730 = vst.msk [vmem:[#allocation5 + $0x18] sm:$0xff] %vm1726, %v1685
  %1731 = vst.msk [vmem:[#allocation5 + $0x20] sm:$0xff] %vm1726, %v1687
  %1732 = vst.msk [vmem:[#allocation5 + $0x28] sm:$0xff] %vm1726, %v1689
  %1733 = vst.msk [vmem:[#allocation5 + $0x30] sm:$0xff] %vm1726, %v1691
  %1734 = vst.msk [vmem:[#allocation5 + $0x38] sm:$0xff] %vm1726, %v1693
  %1735 = vst.msk [vmem:[#allocation5 + $0x40] sm:$0xff] %vm1726, %v1695
  %1736 = vst.msk [vmem:[#allocation5 + $0x48] sm:$0xff] %vm1726, %v1697
  %1737 = vst.msk [vmem:[#allocation5 + $0x50] sm:$0xff] %vm1726, %v1699
  %1738 = vst.msk [vmem:[#allocation5 + $0x58] sm:$0xff] %vm1726, %v1701
  %1739 = vst.msk [vmem:[#allocation5 + $0x60] sm:$0xff] %vm1726, %v1703
  %1740 = vst.msk [vmem:[#allocation5 + $0x68] sm:$0xff] %vm1726, %v1705
  %1741 = vst.msk [vmem:[#allocation5 + $0x70] sm:$0xff] %vm1726, %v1707
  %1742 = vst.msk [vmem:[#allocation5 + $0x78] sm:$0xff] %vm1726, %v1709
  %v1743 = vld [vmem:[#allocation4 + $0x2] sm:$0xff]
  %v1744 = vld [vmem:[#allocation4 + $0x12] sm:$0xff]
  %v1745 = vld [vmem:[#allocation4 + $0x22] sm:$0xff]
  %v1746 = vld [vmem:[#allocation4 + $0x32] sm:$0xff]
  %v1747 = vld [vmem:[#allocation4 + $0x42] sm:$0xff]
  %v1748 = vld [vmem:[#allocation4 + $0x52] sm:$0xff]
  %v1749 = vld [vmem:[#allocation4 + $0x62] sm:$0xff]
  %v1750 = vld [vmem:[#allocation4 + $0x72] sm:$0xff]
  %v1751 = vld [vmem:[#allocation4 + $0xa2] sm:$0xff]
  %v1752 = vld [vmem:[#allocation4 + $0xb2] sm:$0xff]
  %v1753 = vld [vmem:[#allocation4 + $0xc2] sm:$0xff]
  %v1754 = vld [vmem:[#allocation4 + $0xd2] sm:$0xff]
  %v1755 = vld [vmem:[#allocation4 + $0xe2] sm:$0xff]
  %v1756 = vld [vmem:[#allocation4 + $0xf2] sm:$0xff]
  %v1757 = vld [vmem:[#allocation4 + $0x102] sm:$0xff]
  %v1758 = vld [vmem:[#allocation4 + $0x112] sm:$0xff]
  %1775 = vrot.lane.b32.xlu0 %v1743, 16
  %v1776 = vpop.permute.xlu0 %1775
  %1777 = vrot.lane.b32.xlu0 %v1744, 16
  %v1778 = vpop.permute.xlu0 %1777
  %1779 = vrot.lane.b32.xlu0 %v1745, 16
  %v1780 = vpop.permute.xlu0 %1779
  %1781 = vrot.lane.b32.xlu0 %v1746, 16
  %v1782 = vpop.permute.xlu0 %1781
  %1783 = vrot.lane.b32.xlu0 %v1747, 16
  %v1784 = vpop.permute.xlu0 %1783
  %1785 = vrot.lane.b32.xlu0 %v1748, 16
  %v1786 = vpop.permute.xlu0 %1785
  %1787 = vrot.lane.b32.xlu0 %v1749, 16
  %v1788 = vpop.permute.xlu0 %1787
  %1789 = vrot.lane.b32.xlu0 %v1750, 16
  %v1790 = vpop.permute.xlu0 %1789
  %1791 = vrot.lane.b32.xlu0 %v1751, 16
  %v1792 = vpop.permute.xlu0 %1791
  %1793 = vrot.lane.b32.xlu0 %v1752, 16
  %v1794 = vpop.permute.xlu0 %1793
  %1795 = vrot.lane.b32.xlu0 %v1753, 16
  %v1796 = vpop.permute.xlu0 %1795
  %1797 = vrot.lane.b32.xlu0 %v1754, 16
  %v1798 = vpop.permute.xlu0 %1797
  %1799 = vrot.lane.b32.xlu0 %v1755, 16
  %v1800 = vpop.permute.xlu0 %1799
  %1801 = vrot.lane.b32.xlu0 %v1756, 16
  %v1802 = vpop.permute.xlu0 %1801
  %1803 = vrot.lane.b32.xlu0 %v1757, 16
  %v1804 = vpop.permute.xlu0 %1803
  %1805 = vrot.lane.b32.xlu0 %v1758, 16
  %v1806 = vpop.permute.xlu0 %1805
  %vm1823 = vcmask 195712
  %1824 = vst.msk [vmem:[#allocation5] sm:$0xff] %vm1823, %v1776
  %1825 = vst.msk [vmem:[#allocation5 + $0x8] sm:$0xff] %vm1823, %v1778
  %1826 = vst.msk [vmem:[#allocation5 + $0x10] sm:$0xff] %vm1823, %v1780
  %1827 = vst.msk [vmem:[#allocation5 + $0x18] sm:$0xff] %vm1823, %v1782
  %1828 = vst.msk [vmem:[#allocation5 + $0x20] sm:$0xff] %vm1823, %v1784
  %1829 = vst.msk [vmem:[#allocation5 + $0x28] sm:$0xff] %vm1823, %v1786
  %1830 = vst.msk [vmem:[#allocation5 + $0x30] sm:$0xff] %vm1823, %v1788
  %1831 = vst.msk [vmem:[#allocation5 + $0x38] sm:$0xff] %vm1823, %v1790
  %1832 = vst.msk [vmem:[#allocation5 + $0x40] sm:$0xff] %vm1823, %v1792
  %1833 = vst.msk [vmem:[#allocation5 + $0x48] sm:$0xff] %vm1823, %v1794
  %1834 = vst.msk [vmem:[#allocation5 + $0x50] sm:$0xff] %vm1823, %v1796
  %1835 = vst.msk [vmem:[#allocation5 + $0x58] sm:$0xff] %vm1823, %v1798
  %1836 = vst.msk [vmem:[#allocation5 + $0x60] sm:$0xff] %vm1823, %v1800
  %1837 = vst.msk [vmem:[#allocation5 + $0x68] sm:$0xff] %vm1823, %v1802
  %1838 = vst.msk [vmem:[#allocation5 + $0x70] sm:$0xff] %vm1823, %v1804
  %1839 = vst.msk [vmem:[#allocation5 + $0x78] sm:$0xff] %vm1823, %v1806
  %v1840 = vld [vmem:[%s1597] sm:$0xff]
  %v1841 = vld [vmem:[%s1597 + $0x10] sm:$0xff]
  %v1842 = vld [vmem:[%s1597 + $0x20] sm:$0xff]
  %v1843 = vld [vmem:[%s1597 + $0x30] sm:$0xff]
  %v1844 = vld [vmem:[%s1597 + $0x40] sm:$0xff]
  %v1845 = vld [vmem:[%s1597 + $0x50] sm:$0xff]
  %v1846 = vld [vmem:[%s1597 + $0x60] sm:$0xff]
  %v1847 = vld [vmem:[%s1597 + $0x70] sm:$0xff]
  %v1848 = vld [vmem:[%s1597 + $0xa0] sm:$0xff]
  %v1849 = vld [vmem:[%s1597 + $0xb0] sm:$0xff]
  %v1850 = vld [vmem:[%s1597 + $0xc0] sm:$0xff]
  %v1851 = vld [vmem:[%s1597 + $0xd0] sm:$0xff]
  %v1852 = vld [vmem:[%s1597 + $0xe0] sm:$0xff]
  %v1853 = vld [vmem:[%s1597 + $0xf0] sm:$0xff]
  %v1854 = vld [vmem:[%s1597 + $0x100] sm:$0xff]
  %v1855 = vld [vmem:[%s1597 + $0x110] sm:$0xff]
  %1872 = vrot.lane.b32.xlu0 %v1840, 24
  %v1873 = vpop.permute.xlu0 %1872
  %1874 = vrot.lane.b32.xlu0 %v1841, 24
  %v1875 = vpop.permute.xlu0 %1874
  %1876 = vrot.lane.b32.xlu0 %v1842, 24
  %v1877 = vpop.permute.xlu0 %1876
  %1878 = vrot.lane.b32.xlu0 %v1843, 24
  %v1879 = vpop.permute.xlu0 %1878
  %1880 = vrot.lane.b32.xlu0 %v1844, 24
  %v1881 = vpop.permute.xlu0 %1880
  %1882 = vrot.lane.b32.xlu0 %v1845, 24
  %v1883 = vpop.permute.xlu0 %1882
  %1884 = vrot.lane.b32.xlu0 %v1846, 24
  %v1885 = vpop.permute.xlu0 %1884
  %1886 = vrot.lane.b32.xlu0 %v1847, 24
  %v1887 = vpop.permute.xlu0 %1886
  %1888 = vrot.lane.b32.xlu0 %v1848, 24
  %v1889 = vpop.permute.xlu0 %1888
  %1890 = vrot.lane.b32.xlu0 %v1849, 24
  %v1891 = vpop.permute.xlu0 %1890
  %1892 = vrot.lane.b32.xlu0 %v1850, 24
  %v1893 = vpop.permute.xlu0 %1892
  %1894 = vrot.lane.b32.xlu0 %v1851, 24
  %v1895 = vpop.permute.xlu0 %1894
  %1896 = vrot.lane.b32.xlu0 %v1852, 24
  %v1897 = vpop.permute.xlu0 %1896
  %1898 = vrot.lane.b32.xlu0 %v1853, 24
  %v1899 = vpop.permute.xlu0 %1898
  %1900 = vrot.lane.b32.xlu0 %v1854, 24
  %v1901 = vpop.permute.xlu0 %1900
  %1902 = vrot.lane.b32.xlu0 %v1855, 24
  %v1903 = vpop.permute.xlu0 %1902
  %vm1920 = vcmask 261312
  %1921 = vst.msk [vmem:[#allocation5] sm:$0xff] %vm1920, %v1873
  %1922 = vst.msk [vmem:[#allocation5 + $0x8] sm:$0xff] %vm1920, %v1875
  %1923 = vst.msk [vmem:[#allocation5 + $0x10] sm:$0xff] %vm1920, %v1877
  %1924 = vst.msk [vmem:[#allocation5 + $0x18] sm:$0xff] %vm1920, %v1879
  %1925 = vst.msk [vmem:[#allocation5 + $0x20] sm:$0xff] %vm1920, %v1881
  %1926 = vst.msk [vmem:[#allocation5 + $0x28] sm:$0xff] %vm1920, %v1883
  %1927 = vst.msk [vmem:[#allocation5 + $0x30] sm:$0xff] %vm1920, %v1885
  %1928 = vst.msk [vmem:[#allocation5 + $0x38] sm:$0xff] %vm1920, %v1887
  %1929 = vst.msk [vmem:[#allocation5 + $0x40] sm:$0xff] %vm1920, %v1889
  %1930 = vst.msk [vmem:[#allocation5 + $0x48] sm:$0xff] %vm1920, %v1891
  %1931 = vst.msk [vmem:[#allocation5 + $0x50] sm:$0xff] %vm1920, %v1893
  %1932 = vst.msk [vmem:[#allocation5 + $0x58] sm:$0xff] %vm1920, %v1895
  %1933 = vst.msk [vmem:[#allocation5 + $0x60] sm:$0xff] %vm1920, %v1897
  %1934 = vst.msk [vmem:[#allocation5 + $0x68] sm:$0xff] %vm1920, %v1899
  %1935 = vst.msk [vmem:[#allocation5 + $0x70] sm:$0xff] %vm1920, %v1901
  %1936 = vst.msk [vmem:[#allocation5 + $0x78] sm:$0xff] %vm1920, %v1903
  %v1937 = vld [vmem:[%s1597 + $0x1] sm:$0xff]
  %v1938 = vld [vmem:[%s1597 + $0x11] sm:$0xff]
  %v1939 = vld [vmem:[%s1597 + $0x21] sm:$0xff]
  %v1940 = vld [vmem:[%s1597 + $0x31] sm:$0xff]
  %v1941 = vld [vmem:[%s1597 + $0x41] sm:$0xff]
  %v1942 = vld [vmem:[%s1597 + $0x51] sm:$0xff]
  %v1943 = vld [vmem:[%s1597 + $0x61] sm:$0xff]
  %v1944 = vld [vmem:[%s1597 + $0x71] sm:$0xff]
  %v1945 = vld [vmem:[%s1597 + $0xa1] sm:$0xff]
  %v1946 = vld [vmem:[%s1597 + $0xb1] sm:$0xff]
  %v1947 = vld [vmem:[%s1597 + $0xc1] sm:$0xff]
  %v1948 = vld [vmem:[%s1597 + $0xd1] sm:$0xff]
  %v1949 = vld [vmem:[%s1597 + $0xe1] sm:$0xff]
  %v1950 = vld [vmem:[%s1597 + $0xf1] sm:$0xff]
  %v1951 = vld [vmem:[%s1597 + $0x101] sm:$0xff]
  %v1952 = vld [vmem:[%s1597 + $0x111] sm:$0xff]
  %1969 = vrot.lane.b32.xlu0 %v1937, 32
  %v1970 = vpop.permute.xlu0 %1969
  %1971 = vrot.lane.b32.xlu0 %v1938, 32
  %v1972 = vpop.permute.xlu0 %1971
  %1973 = vrot.lane.b32.xlu0 %v1939, 32
  %v1974 = vpop.permute.xlu0 %1973
  %1975 = vrot.lane.b32.xlu0 %v1940, 32
  %v1976 = vpop.permute.xlu0 %1975
  %1977 = vrot.lane.b32.xlu0 %v1941, 32
  %v1978 = vpop.permute.xlu0 %1977
  %1979 = vrot.lane.b32.xlu0 %v1942, 32
  %v1980 = vpop.permute.xlu0 %1979
  %1981 = vrot.lane.b32.xlu0 %v1943, 32
  %v1982 = vpop.permute.xlu0 %1981
  %1983 = vrot.lane.b32.xlu0 %v1944, 32
  %v1984 = vpop.permute.xlu0 %1983
  %1985 = vrot.lane.b32.xlu0 %v1945, 32
  %v1986 = vpop.permute.xlu0 %1985
  %1987 = vrot.lane.b32.xlu0 %v1946, 32
  %v1988 = vpop.permute.xlu0 %1987
  %1989 = vrot.lane.b32.xlu0 %v1947, 32
  %v1990 = vpop.permute.xlu0 %1989
  %1991 = vrot.lane.b32.xlu0 %v1948, 32
  %v1992 = vpop.permute.xlu0 %1991
  %1993 = vrot.lane.b32.xlu0 %v1949, 32
  %v1994 = vpop.permute.xlu0 %1993
  %1995 = vrot.lane.b32.xlu0 %v1950, 32
  %v1996 = vpop.permute.xlu0 %1995
  %1997 = vrot.lane.b32.xlu0 %v1951, 32
  %v1998 = vpop.permute.xlu0 %1997
  %1999 = vrot.lane.b32.xlu0 %v1952, 32
  %v2000 = vpop.permute.xlu0 %1999
  %vm2017 = vcmask 326912
  %2018 = vst.msk [vmem:[#allocation5] sm:$0xff] %vm2017, %v1970
  %2019 = vst.msk [vmem:[#allocation5 + $0x8] sm:$0xff] %vm2017, %v1972
  %2020 = vst.msk [vmem:[#allocation5 + $0x10] sm:$0xff] %vm2017, %v1974
  %2021 = vst.msk [vmem:[#allocation5 + $0x18] sm:$0xff] %vm2017, %v1976
  %2022 = vst.msk [vmem:[#allocation5 + $0x20] sm:$0xff] %vm2017, %v1978
  %2023 = vst.msk [vmem:[#allocation5 + $0x28] sm:$0xff] %vm2017, %v1980
  %2024 = vst.msk [vmem:[#allocation5 + $0x30] sm:$0xff] %vm2017, %v1982
  %2025 = vst.msk [vmem:[#allocation5 + $0x38] sm:$0xff] %vm2017, %v1984
  %2026 = vst.msk [vmem:[#allocation5 + $0x40] sm:$0xff] %vm2017, %v1986
  %2027 = vst.msk [vmem:[#allocation5 + $0x48] sm:$0xff] %vm2017, %v1988
  %2028 = vst.msk [vmem:[#allocation5 + $0x50] sm:$0xff] %vm2017, %v1990
  %2029 = vst.msk [vmem:[#allocation5 + $0x58] sm:$0xff] %vm2017, %v1992
  %2030 = vst.msk [vmem:[#allocation5 + $0x60] sm:$0xff] %vm2017, %v1994
  %2031 = vst.msk [vmem:[#allocation5 + $0x68] sm:$0xff] %vm2017, %v1996
  %2032 = vst.msk [vmem:[#allocation5 + $0x70] sm:$0xff] %vm2017, %v1998
  %2033 = vst.msk [vmem:[#allocation5 + $0x78] sm:$0xff] %vm2017, %v2000
  %v2034 = vld [vmem:[%s1597 + $0x2] sm:$0xff]
  %v2035 = vld [vmem:[%s1597 + $0x12] sm:$0xff]
  %v2036 = vld [vmem:[%s1597 + $0x22] sm:$0xff]
  %v2037 = vld [vmem:[%s1597 + $0x32] sm:$0xff]
  %v2038 = vld [vmem:[%s1597 + $0x42] sm:$0xff]
  %v2039 = vld [vmem:[%s1597 + $0x52] sm:$0xff]
  %v2040 = vld [vmem:[%s1597 + $0x62] sm:$0xff]
  %v2041 = vld [vmem:[%s1597 + $0x72] sm:$0xff]
  %v2042 = vld [vmem:[%s1597 + $0xa2] sm:$0xff]
  %v2043 = vld [vmem:[%s1597 + $0xb2] sm:$0xff]
  %v2044 = vld [vmem:[%s1597 + $0xc2] sm:$0xff]
  %v2045 = vld [vmem:[%s1597 + $0xd2] sm:$0xff]
  %v2046 = vld [vmem:[%s1597 + $0xe2] sm:$0xff]
  %v2047 = vld [vmem:[%s1597 + $0xf2] sm:$0xff]
  %v2048 = vld [vmem:[%s1597 + $0x102] sm:$0xff]
  %v2049 = vld [vmem:[%s1597 + $0x112] sm:$0xff]
  %2066 = vrot.lane.b32.xlu0 %v2034, 40
  %v2067 = vpop.permute.xlu0 %2066
  %2068 = vrot.lane.b32.xlu0 %v2035, 40
  %v2069 = vpop.permute.xlu0 %2068
  %2070 = vrot.lane.b32.xlu0 %v2036, 40
  %v2071 = vpop.permute.xlu0 %2070
  %2072 = vrot.lane.b32.xlu0 %v2037, 40
  %v2073 = vpop.permute.xlu0 %2072
  %2074 = vrot.lane.b32.xlu0 %v2038, 40
  %v2075 = vpop.permute.xlu0 %2074
  %2076 = vrot.lane.b32.xlu0 %v2039, 40
  %v2077 = vpop.permute.xlu0 %2076
  %2078 = vrot.lane.b32.xlu0 %v2040, 40
  %v2079 = vpop.permute.xlu0 %2078
  %2080 = vrot.lane.b32.xlu0 %v2041, 40
  %v2081 = vpop.permute.xlu0 %2080
  %2082 = vrot.lane.b32.xlu0 %v2042, 40
  %v2083 = vpop.permute.xlu0 %2082
  %2084 = vrot.lane.b32.xlu0 %v2043, 40
  %v2085 = vpop.permute.xlu0 %2084
  %2086 = vrot.lane.b32.xlu0 %v2044, 40
  %v2087 = vpop.permute.xlu0 %2086
  %2088 = vrot.lane.b32.xlu0 %v2045, 40
  %v2089 = vpop.permute.xlu0 %2088
  %2090 = vrot.lane.b32.xlu0 %v2046, 40
  %v2091 = vpop.permute.xlu0 %2090
  %2092 = vrot.lane.b32.xlu0 %v2047, 40
  %v2093 = vpop.permute.xlu0 %2092
  %2094 = vrot.lane.b32.xlu0 %v2048, 40
  %v2095 = vpop.permute.xlu0 %2094
  %2096 = vrot.lane.b32.xlu0 %v2049, 40
  %v2097 = vpop.permute.xlu0 %2096
  %vm2114 = vcmask 392512
  %2115 = vst.msk [vmem:[#allocation5] sm:$0xff] %vm2114, %v2067
  %2116 = vst.msk [vmem:[#allocation5 + $0x8] sm:$0xff] %vm2114, %v2069
  %2117 = vst.msk [vmem:[#allocation5 + $0x10] sm:$0xff] %vm2114, %v2071
  %2118 = vst.msk [vmem:[#allocation5 + $0x18] sm:$0xff] %vm2114, %v2073
  %2119 = vst.msk [vmem:[#allocation5 + $0x20] sm:$0xff] %vm2114, %v2075
  %2120 = vst.msk [vmem:[#allocation5 + $0x28] sm:$0xff] %vm2114, %v2077
  %2121 = vst.msk [vmem:[#allocation5 + $0x30] sm:$0xff] %vm2114, %v2079
  %2122 = vst.msk [vmem:[#allocation5 + $0x38] sm:$0xff] %vm2114, %v2081
  %2123 = vst.msk [vmem:[#allocation5 + $0x40] sm:$0xff] %vm2114, %v2083
  %2124 = vst.msk [vmem:[#allocation5 + $0x48] sm:$0xff] %vm2114, %v2085
  %2125 = vst.msk [vmem:[#allocation5 + $0x50] sm:$0xff] %vm2114, %v2087
  %2126 = vst.msk [vmem:[#allocation5 + $0x58] sm:$0xff] %vm2114, %v2089
  %2127 = vst.msk [vmem:[#allocation5 + $0x60] sm:$0xff] %vm2114, %v2091
  %2128 = vst.msk [vmem:[#allocation5 + $0x68] sm:$0xff] %vm2114, %v2093
  %2129 = vst.msk [vmem:[#allocation5 + $0x70] sm:$0xff] %vm2114, %v2095
  %2130 = vst.msk [vmem:[#allocation5 + $0x78] sm:$0xff] %vm2114, %v2097
  %s2131 = scalar_lea.vmem [#allocation4], 32
  %v2132 = vld [vmem:[%s2131] sm:$0xff]
  %v2133 = vld [vmem:[%s2131 + $0x10] sm:$0xff]
  %v2134 = vld [vmem:[%s2131 + $0x20] sm:$0xff]
  %v2135 = vld [vmem:[%s2131 + $0x30] sm:$0xff]
  %v2136 = vld [vmem:[%s2131 + $0x40] sm:$0xff]
  %v2137 = vld [vmem:[%s2131 + $0x50] sm:$0xff]
  %v2138 = vld [vmem:[%s2131 + $0x60] sm:$0xff]
  %v2139 = vld [vmem:[%s2131 + $0x70] sm:$0xff]
  %v2140 = vld [vmem:[%s2131 + $0xa0] sm:$0xff]
  %v2141 = vld [vmem:[%s2131 + $0xb0] sm:$0xff]
  %v2142 = vld [vmem:[%s2131 + $0xc0] sm:$0xff]
  %v2143 = vld [vmem:[%s2131 + $0xd0] sm:$0xff]
  %v2144 = vld [vmem:[%s2131 + $0xe0] sm:$0xff]
  %v2145 = vld [vmem:[%s2131 + $0xf0] sm:$0xff]
  %v2146 = vld [vmem:[%s2131 + $0x100] sm:$0xff]
  %v2147 = vld [vmem:[%s2131 + $0x110] sm:$0xff]
  %2164 = vrot.lane.b32.xlu0 %v2132, 48
  %v2165 = vpop.permute.xlu0 %2164
  %2166 = vrot.lane.b32.xlu0 %v2133, 48
  %v2167 = vpop.permute.xlu0 %2166
  %2168 = vrot.lane.b32.xlu0 %v2134, 48
  %v2169 = vpop.permute.xlu0 %2168
  %2170 = vrot.lane.b32.xlu0 %v2135, 48
  %v2171 = vpop.permute.xlu0 %2170
  %2172 = vrot.lane.b32.xlu0 %v2136, 48
  %v2173 = vpop.permute.xlu0 %2172
  %2174 = vrot.lane.b32.xlu0 %v2137, 48
  %v2175 = vpop.permute.xlu0 %2174
  %2176 = vrot.lane.b32.xlu0 %v2138, 48
  %v2177 = vpop.permute.xlu0 %2176
  %2178 = vrot.lane.b32.xlu0 %v2139, 48
  %v2179 = vpop.permute.xlu0 %2178
  %2180 = vrot.lane.b32.xlu0 %v2140, 48
  %v2181 = vpop.permute.xlu0 %2180
  %2182 = vrot.lane.b32.xlu0 %v2141, 48
  %v2183 = vpop.permute.xlu0 %2182
  %2184 = vrot.lane.b32.xlu0 %v2142, 48
  %v2185 = vpop.permute.xlu0 %2184
  %2186 = vrot.lane.b32.xlu0 %v2143, 48
  %v2187 = vpop.permute.xlu0 %2186
  %2188 = vrot.lane.b32.xlu0 %v2144, 48
  %v2189 = vpop.permute.xlu0 %2188
  %2190 = vrot.lane.b32.xlu0 %v2145, 48
  %v2191 = vpop.permute.xlu0 %2190
  %2192 = vrot.lane.b32.xlu0 %v2146, 48
  %v2193 = vpop.permute.xlu0 %2192
  %2194 = vrot.lane.b32.xlu0 %v2147, 48
  %v2195 = vpop.permute.xlu0 %2194
  %vm2212 = vcmask 458112
  %2213 = vst.msk [vmem:[#allocation5] sm:$0xff] %vm2212, %v2165
  %2214 = vst.msk [vmem:[#allocation5 + $0x8] sm:$0xff] %vm2212, %v2167
  %2215 = vst.msk [vmem:[#allocation5 + $0x10] sm:$0xff] %vm2212, %v2169
  %2216 = vst.msk [vmem:[#allocation5 + $0x18] sm:$0xff] %vm2212, %v2171
  %2217 = vst.msk [vmem:[#allocation5 + $0x20] sm:$0xff] %vm2212, %v2173
  %2218 = vst.msk [vmem:[#allocation5 + $0x28] sm:$0xff] %vm2212, %v2175
  %2219 = vst.msk [vmem:[#allocation5 + $0x30] sm:$0xff] %vm2212, %v2177
  %2220 = vst.msk [vmem:[#allocation5 + $0x38] sm:$0xff] %vm2212, %v2179
  %2221 = vst.msk [vmem:[#allocation5 + $0x40] sm:$0xff] %vm2212, %v2181
  %2222 = vst.msk [vmem:[#allocation5 + $0x48] sm:$0xff] %vm2212, %v2183
  %2223 = vst.msk [vmem:[#allocation5 + $0x50] sm:$0xff] %vm2212, %v2185
  %2224 = vst.msk [vmem:[#allocation5 + $0x58] sm:$0xff] %vm2212, %v2187
  %2225 = vst.msk [vmem:[#allocation5 + $0x60] sm:$0xff] %vm2212, %v2189
  %2226 = vst.msk [vmem:[#allocation5 + $0x68] sm:$0xff] %vm2212, %v2191
  %2227 = vst.msk [vmem:[#allocation5 + $0x70] sm:$0xff] %vm2212, %v2193
  %2228 = vst.msk [vmem:[#allocation5 + $0x78] sm:$0xff] %vm2212, %v2195
  %v2229 = vld [vmem:[%s2131 + $0x1] sm:$0xff]
  %v2230 = vld [vmem:[%s2131 + $0x11] sm:$0xff]
  %v2231 = vld [vmem:[%s2131 + $0x21] sm:$0xff]
  %v2232 = vld [vmem:[%s2131 + $0x31] sm:$0xff]
  %v2233 = vld [vmem:[%s2131 + $0x41] sm:$0xff]
  %v2234 = vld [vmem:[%s2131 + $0x51] sm:$0xff]
  %v2235 = vld [vmem:[%s2131 + $0x61] sm:$0xff]
  %v2236 = vld [vmem:[%s2131 + $0x71] sm:$0xff]
  %v2237 = vld [vmem:[%s2131 + $0xa1] sm:$0xff]
  %v2238 = vld [vmem:[%s2131 + $0xb1] sm:$0xff]
  %v2239 = vld [vmem:[%s2131 + $0xc1] sm:$0xff]
  %v2240 = vld [vmem:[%s2131 + $0xd1] sm:$0xff]
  %v2241 = vld [vmem:[%s2131 + $0xe1] sm:$0xff]
  %v2242 = vld [vmem:[%s2131 + $0xf1] sm:$0xff]
  %v2243 = vld [vmem:[%s2131 + $0x101] sm:$0xff]
  %v2244 = vld [vmem:[%s2131 + $0x111] sm:$0xff]
  %2261 = vrot.lane.b32.xlu0 %v2229, 56
  %v2262 = vpop.permute.xlu0 %2261
  %2263 = vrot.lane.b32.xlu0 %v2230, 56
  %v2264 = vpop.permute.xlu0 %2263
  %2265 = vrot.lane.b32.xlu0 %v2231, 56
  %v2266 = vpop.permute.xlu0 %2265
  %2267 = vrot.lane.b32.xlu0 %v2232, 56
  %v2268 = vpop.permute.xlu0 %2267
  %2269 = vrot.lane.b32.xlu0 %v2233, 56
  %v2270 = vpop.permute.xlu0 %2269
  %2271 = vrot.lane.b32.xlu0 %v2234, 56
  %v2272 = vpop.permute.xlu0 %2271
  %2273 = vrot.lane.b32.xlu0 %v2235, 56
  %v2274 = vpop.permute.xlu0 %2273
  %2275 = vrot.lane.b32.xlu0 %v2236, 56
  %v2276 = vpop.permute.xlu0 %2275
  %2277 = vrot.lane.b32.xlu0 %v2237, 56
  %v2278 = vpop.permute.xlu0 %2277
  %2279 = vrot.lane.b32.xlu0 %v2238, 56
  %v2280 = vpop.permute.xlu0 %2279
  %2281 = vrot.lane.b32.xlu0 %v2239, 56
  %v2282 = vpop.permute.xlu0 %2281
  %2283 = vrot.lane.b32.xlu0 %v2240, 56
  %v2284 = vpop.permute.xlu0 %2283
  %2285 = vrot.lane.b32.xlu0 %v2241, 56
  %v2286 = vpop.permute.xlu0 %2285
  %2287 = vrot.lane.b32.xlu0 %v2242, 56
  %v2288 = vpop.permute.xlu0 %2287
  %2289 = vrot.lane.b32.xlu0 %v2243, 56
  %v2290 = vpop.permute.xlu0 %2289
  %2291 = vrot.lane.b32.xlu0 %v2244, 56
  %v2292 = vpop.permute.xlu0 %2291
  %vm2309 = vcmask 523712
  %2310 = vst.msk [vmem:[#allocation5] sm:$0xff] %vm2309, %v2262
  %2311 = vst.msk [vmem:[#allocation5 + $0x8] sm:$0xff] %vm2309, %v2264
  %2312 = vst.msk [vmem:[#allocation5 + $0x10] sm:$0xff] %vm2309, %v2266
  %2313 = vst.msk [vmem:[#allocation5 + $0x18] sm:$0xff] %vm2309, %v2268
  %2314 = vst.msk [vmem:[#allocation5 + $0x20] sm:$0xff] %vm2309, %v2270
  %2315 = vst.msk [vmem:[#allocation5 + $0x28] sm:$0xff] %vm2309, %v2272
  %2316 = vst.msk [vmem:[#allocation5 + $0x30] sm:$0xff] %vm2309, %v2274
  %2317 = vst.msk [vmem:[#allocation5 + $0x38] sm:$0xff] %vm2309, %v2276
  %2318 = vst.msk [vmem:[#allocation5 + $0x40] sm:$0xff] %vm2309, %v2278
  %2319 = vst.msk [vmem:[#allocation5 + $0x48] sm:$0xff] %vm2309, %v2280
  %2320 = vst.msk [vmem:[#allocation5 + $0x50] sm:$0xff] %vm2309, %v2282
  %2321 = vst.msk [vmem:[#allocation5 + $0x58] sm:$0xff] %vm2309, %v2284
  %2322 = vst.msk [vmem:[#allocation5 + $0x60] sm:$0xff] %vm2309, %v2286
  %2323 = vst.msk [vmem:[#allocation5 + $0x68] sm:$0xff] %vm2309, %v2288
  %2324 = vst.msk [vmem:[#allocation5 + $0x70] sm:$0xff] %vm2309, %v2290
  %2325 = vst.msk [vmem:[#allocation5 + $0x78] sm:$0xff] %vm2309, %v2292
  %v2326 = vld [vmem:[%s2131 + $0x2] sm:$0xff]
  %v2327 = vld [vmem:[%s2131 + $0x12] sm:$0xff]
  %v2328 = vld [vmem:[%s2131 + $0x22] sm:$0xff]
  %v2329 = vld [vmem:[%s2131 + $0x32] sm:$0xff]
  %v2330 = vld [vmem:[%s2131 + $0x42] sm:$0xff]
  %v2331 = vld [vmem:[%s2131 + $0x52] sm:$0xff]
  %v2332 = vld [vmem:[%s2131 + $0x62] sm:$0xff]
  %v2333 = vld [vmem:[%s2131 + $0x72] sm:$0xff]
  %v2334 = vld [vmem:[%s2131 + $0xa2] sm:$0xff]
  %v2335 = vld [vmem:[%s2131 + $0xb2] sm:$0xff]
  %v2336 = vld [vmem:[%s2131 + $0xc2] sm:$0xff]
  %v2337 = vld [vmem:[%s2131 + $0xd2] sm:$0xff]
  %v2338 = vld [vmem:[%s2131 + $0xe2] sm:$0xff]
  %v2339 = vld [vmem:[%s2131 + $0xf2] sm:$0xff]
  %v2340 = vld [vmem:[%s2131 + $0x102] sm:$0xff]
  %v2341 = vld [vmem:[%s2131 + $0x112] sm:$0xff]
  %2358 = vrot.lane.b32.xlu0 %v2326, 64
  %v2359 = vpop.permute.xlu0 %2358
  %2360 = vrot.lane.b32.xlu0 %v2327, 64
  %v2361 = vpop.permute.xlu0 %2360
  %2362 = vrot.lane.b32.xlu0 %v2328, 64
  %v2363 = vpop.permute.xlu0 %2362
  %2364 = vrot.lane.b32.xlu0 %v2329, 64
  %v2365 = vpop.permute.xlu0 %2364
  %2366 = vrot.lane.b32.xlu0 %v2330, 64
  %v2367 = vpop.permute.xlu0 %2366
  %2368 = vrot.lane.b32.xlu0 %v2331, 64
  %v2369 = vpop.permute.xlu0 %2368
  %2370 = vrot.lane.b32.xlu0 %v2332, 64
  %v2371 = vpop.permute.xlu0 %2370
  %2372 = vrot.lane.b32.xlu0 %v2333, 64
  %v2373 = vpop.permute.xlu0 %2372
  %2374 = vrot.lane.b32.xlu0 %v2334, 64
  %v2375 = vpop.permute.xlu0 %2374
  %2376 = vrot.lane.b32.xlu0 %v2335, 64
  %v2377 = vpop.permute.xlu0 %2376
  %2378 = vrot.lane.b32.xlu0 %v2336, 64
  %v2379 = vpop.permute.xlu0 %2378
  %2380 = vrot.lane.b32.xlu0 %v2337, 64
  %v2381 = vpop.permute.xlu0 %2380
  %2382 = vrot.lane.b32.xlu0 %v2338, 64
  %v2383 = vpop.permute.xlu0 %2382
  %2384 = vrot.lane.b32.xlu0 %v2339, 64
  %v2385 = vpop.permute.xlu0 %2384
  %2386 = vrot.lane.b32.xlu0 %v2340, 64
  %v2387 = vpop.permute.xlu0 %2386
  %2388 = vrot.lane.b32.xlu0 %v2341, 64
  %v2389 = vpop.permute.xlu0 %2388
  %vm2406 = vcmask 589312
  %2407 = vst.msk [vmem:[#allocation5] sm:$0xff] %vm2406, %v2359
  %2408 = vst.msk [vmem:[#allocation5 + $0x8] sm:$0xff] %vm2406, %v2361
  %2409 = vst.msk [vmem:[#allocation5 + $0x10] sm:$0xff] %vm2406, %v2363
  %2410 = vst.msk [vmem:[#allocation5 + $0x18] sm:$0xff] %vm2406, %v2365
  %2411 = vst.msk [vmem:[#allocation5 + $0x20] sm:$0xff] %vm2406, %v2367
  %2412 = vst.msk [vmem:[#allocation5 + $0x28] sm:$0xff] %vm2406, %v2369
  %2413 = vst.msk [vmem:[#allocation5 + $0x30] sm:$0xff] %vm2406, %v2371
  %2414 = vst.msk [vmem:[#allocation5 + $0x38] sm:$0xff] %vm2406, %v2373
  %2415 = vst.msk [vmem:[#allocation5 + $0x40] sm:$0xff] %vm2406, %v2375
  %2416 = vst.msk [vmem:[#allocation5 + $0x48] sm:$0xff] %vm2406, %v2377
  %2417 = vst.msk [vmem:[#allocation5 + $0x50] sm:$0xff] %vm2406, %v2379
  %2418 = vst.msk [vmem:[#allocation5 + $0x58] sm:$0xff] %vm2406, %v2381
  %2419 = vst.msk [vmem:[#allocation5 + $0x60] sm:$0xff] %vm2406, %v2383
  %2420 = vst.msk [vmem:[#allocation5 + $0x68] sm:$0xff] %vm2406, %v2385
  %2421 = vst.msk [vmem:[#allocation5 + $0x70] sm:$0xff] %vm2406, %v2387
  %2422 = vst.msk [vmem:[#allocation5 + $0x78] sm:$0xff] %vm2406, %v2389
  %v2423 = vld [vmem:[#allocation5] sm:$0xff]
  %v2424 = vld [vmem:[#allocation5 + $0x8] sm:$0xff]
  %v2425 = vld [vmem:[#allocation5 + $0x10] sm:$0xff]
  %v2426 = vld [vmem:[#allocation5 + $0x18] sm:$0xff]
  %v2427 = vld [vmem:[#allocation5 + $0x20] sm:$0xff]
  %v2428 = vld [vmem:[#allocation5 + $0x28] sm:$0xff]
  %v2429 = vld [vmem:[#allocation5 + $0x30] sm:$0xff]
  %v2430 = vld [vmem:[#allocation5 + $0x38] sm:$0xff]
  %v2431 = vld [vmem:[#allocation5 + $0x40] sm:$0xff]
  %v2432 = vld [vmem:[#allocation5 + $0x48] sm:$0xff]
  %v2433 = vld [vmem:[#allocation5 + $0x50] sm:$0xff]
  %v2434 = vld [vmem:[#allocation5 + $0x58] sm:$0xff]
  %v2435 = vld [vmem:[#allocation5 + $0x60] sm:$0xff]
  %v2436 = vld [vmem:[#allocation5 + $0x68] sm:$0xff]
  %v2437 = vld [vmem:[#allocation5 + $0x70] sm:$0xff]
  %v2438 = vld [vmem:[#allocation5 + $0x78] sm:$0xff]
  %vm2439 = vcmask 588800
  %v2441 = vsel %vm2439, %v2423, 0
  %v2444 = vsel %vm2439, %v2424, 0
  %v2447 = vsel %vm2439, %v2425, 0
  %v2450 = vsel %vm2439, %v2426, 0
  %v2453 = vsel %vm2439, %v2427, 0
  %v2456 = vsel %vm2439, %v2428, 0
  %v2459 = vsel %vm2439, %v2429, 0
  %v2462 = vsel %vm2439, %v2430, 0
  %v2465 = vsel %vm2439, %v2431, 0
  %v2468 = vsel %vm2439, %v2432, 0
  %v2471 = vsel %vm2439, %v2433, 0
  %v2474 = vsel %vm2439, %v2434, 0
  %v2477 = vsel %vm2439, %v2435, 0
  %v2480 = vsel %vm2439, %v2436, 0
  %v2483 = vsel %vm2439, %v2437, 0
  %v2486 = vsel %vm2439, %v2438, 0
  %2488 = vmatpush.msra.mxu0 0.0
  %2489 = vmatpush.msra.mxu0 0.0
  %2490 = vmatpush.msra.mxu0 0.0
  %2491 = vmatpush.msra.mxu0 0.0
  %2492 = vmatpush.msra.mxu0 0.0
  %2493 = vmatpush.msra.mxu0 0.0
  %2494 = vmatpush.msra.mxu0 0.0
  %2495 = vmatpush.msra.mxu0 %v1555
  %2496 = vmatpush.msra.mxu0 %v1554
  %2497 = vmatpush.msra.mxu0 %v1553
  %2498 = vmatpush.msra.mxu0 %v1552
  %2499 = vmatpush.msra.mxu0 %v1551
  %2500 = vmatpush.msra.mxu0 %v1550
  %2501 = vmatpush.msra.mxu0 %v1549
  %2502 = vmatpush.msra.mxu0 %v1548
  %2503 = vmatpush.msra.mxu0 %v1547
  %2504 = vmatmul.f32.gmra.mxu0 %v2441
  %v2505 = vpop.f32.mrf.mxu0
  %v2506 = vadd.f32 0.0, %v2505
  %2507 = vmatmul.f32.gmra.mxu0 %v2444
  %v2508 = vpop.f32.mrf.mxu0
  %v2509 = vadd.f32 0.0, %v2508
  %2510 = vmatmul.f32.gmra.mxu0 %v2447
  %v2511 = vpop.f32.mrf.mxu0
  %v2512 = vadd.f32 0.0, %v2511
  %2513 = vmatmul.f32.gmra.mxu0 %v2450
  %v2514 = vpop.f32.mrf.mxu0
  %v2515 = vadd.f32 0.0, %v2514
  %2516 = vmatmul.f32.gmra.mxu0 %v2453
  %v2517 = vpop.f32.mrf.mxu0
  %v2518 = vadd.f32 0.0, %v2517
  %2519 = vmatmul.f32.gmra.mxu0 %v2456
  %v2520 = vpop.f32.mrf.mxu0
  %v2521 = vadd.f32 0.0, %v2520
  %2522 = vmatmul.f32.gmra.mxu0 %v2459
  %v2523 = vpop.f32.mrf.mxu0
  %v2524 = vadd.f32 0.0, %v2523
  %2525 = vmatmul.f32.gmra.mxu0 %v2462
  %v2526 = vpop.f32.mrf.mxu0
  %v2527 = vadd.f32 0.0, %v2526
  %2528 = vmatmul.f32.gmra.mxu0 %v2465
  %v2529 = vpop.f32.mrf.mxu0
  %v2530 = vadd.f32 0.0, %v2529
  %2531 = vmatmul.f32.gmra.mxu0 %v2468
  %v2532 = vpop.f32.mrf.mxu0
  %v2533 = vadd.f32 0.0, %v2532
  %2534 = vmatmul.f32.gmra.mxu0 %v2471
  %v2535 = vpop.f32.mrf.mxu0
  %v2536 = vadd.f32 0.0, %v2535
  %2537 = vmatmul.f32.gmra.mxu0 %v2474
  %v2538 = vpop.f32.mrf.mxu0
  %v2539 = vadd.f32 0.0, %v2538
  %2540 = vmatmul.f32.gmra.mxu0 %v2477
  %v2541 = vpop.f32.mrf.mxu0
  %v2542 = vadd.f32 0.0, %v2541
  %2543 = vmatmul.f32.gmra.mxu0 %v2480
  %v2544 = vpop.f32.mrf.mxu0
  %v2545 = vadd.f32 0.0, %v2544
  %2546 = vmatmul.f32.gmra.mxu0 %v2483
  %v2547 = vpop.f32.mrf.mxu0
  %v2548 = vadd.f32 0.0, %v2547
  %2549 = vmatmul.f32.gmra.mxu0 %v2486
  %v2550 = vpop.f32.mrf.mxu0
  %v2551 = vadd.f32 0.0, %v2550
  %2552 = vdwg.mxu0
  %v2553 = vld [vmem:[%s8] sm:$0x1]
  %v2554 = vld [vmem:[%s9] sm:$0x1]
  %v2555 = vsel %vm1368, %v2506, 0.0
  %v2556 = vsel %vm1368, %v2509, 0.0
  %v2557 = vadd.f32 %v2555, %v2556
  %v2558 = vsel %vm1368, %v2512, 0.0
  %v2559 = vadd.f32 %v2557, %v2558
  %v2560 = vsel %vm1368, %v2515, 0.0
  %v2561 = vadd.f32 %v2559, %v2560
  %v2562 = vsel %vm1368, %v2518, 0.0
  %v2563 = vadd.f32 %v2561, %v2562
  %v2564 = vsel %vm1368, %v2521, 0.0
  %v2565 = vadd.f32 %v2563, %v2564
  %v2566 = vsel %vm1368, %v2524, 0.0
  %v2567 = vadd.f32 %v2565, %v2566
  %v2568 = vsel %vm1368, %v2527, 0.0
  %v2569 = vadd.f32 %v2567, %v2568
  %v2570 = vsel %vm1368, %v2530, 0.0
  %v2571 = vadd.f32 %v2569, %v2570
  %v2572 = vsel %vm1368, %v2533, 0.0
  %v2573 = vadd.f32 %v2571, %v2572
  %v2574 = vsel %vm1368, %v2536, 0.0
  %v2575 = vadd.f32 %v2573, %v2574
  %v2576 = vsel %vm1368, %v2539, 0.0
  %v2577 = vadd.f32 %v2575, %v2576
  %v2578 = vsel %vm1368, %v2542, 0.0
  %v2579 = vadd.f32 %v2577, %v2578
  %v2580 = vsel %vm1368, %v2545, 0.0
  %v2581 = vadd.f32 %v2579, %v2580
  %v2582 = vsel %vm1368, %v2548, 0.0
  %v2583 = vadd.f32 %v2581, %v2582
  %v2584 = vsel %vm1368, %v2551, 0.0
  %v2585 = vadd.f32 %v2583, %v2584
  %v2586 = vrot.slane %v2585, 4
  %v2587 = vadd.f32 %v2585, %v2586
  %v2588 = vrot.slane %v2587, 2
  %v2589 = vadd.f32 %v2587, %v2588
  %v2590 = vrot.slane %v2589, 1
  %v2591 = vadd.f32 %v2589, %v2590
  %v2592 = vmul.f32 %v2591, %v220
  %v2593 = vmul.f32 %v2506, %v2506
  %v2594 = vmul.f32 %v2509, %v2509
  %v2595 = vmul.f32 %v2512, %v2512
  %v2596 = vmul.f32 %v2515, %v2515
  %v2597 = vmul.f32 %v2518, %v2518
  %v2598 = vmul.f32 %v2521, %v2521
  %v2599 = vmul.f32 %v2524, %v2524
  %v2600 = vmul.f32 %v2527, %v2527
  %v2601 = vmul.f32 %v2530, %v2530
  %v2602 = vmul.f32 %v2533, %v2533
  %v2603 = vmul.f32 %v2536, %v2536
  %v2604 = vmul.f32 %v2539, %v2539
  %v2605 = vmul.f32 %v2542, %v2542
  %v2606 = vmul.f32 %v2545, %v2545
  %v2607 = vmul.f32 %v2548, %v2548
  %v2608 = vmul.f32 %v2551, %v2551
  %v2609 = vsel %vm1368, %v2593, 0.0
  %v2610 = vsel %vm1368, %v2594, 0.0
  %v2611 = vadd.f32 %v2609, %v2610
  %v2612 = vsel %vm1368, %v2595, 0.0
  %v2613 = vadd.f32 %v2611, %v2612
  %v2614 = vsel %vm1368, %v2596, 0.0
  %v2615 = vadd.f32 %v2613, %v2614
  %v2616 = vsel %vm1368, %v2597, 0.0
  %v2617 = vadd.f32 %v2615, %v2616
  %v2618 = vsel %vm1368, %v2598, 0.0
  %v2619 = vadd.f32 %v2617, %v2618
  %v2620 = vsel %vm1368, %v2599, 0.0
  %v2621 = vadd.f32 %v2619, %v2620
  %v2622 = vsel %vm1368, %v2600, 0.0
  %v2623 = vadd.f32 %v2621, %v2622
  %v2624 = vsel %vm1368, %v2601, 0.0
  %v2625 = vadd.f32 %v2623, %v2624
  %v2626 = vsel %vm1368, %v2602, 0.0
  %v2627 = vadd.f32 %v2625, %v2626
  %v2628 = vsel %vm1368, %v2603, 0.0
  %v2629 = vadd.f32 %v2627, %v2628
  %v2630 = vsel %vm1368, %v2604, 0.0
  %v2631 = vadd.f32 %v2629, %v2630
  %v2632 = vsel %vm1368, %v2605, 0.0
  %v2633 = vadd.f32 %v2631, %v2632
  %v2634 = vsel %vm1368, %v2606, 0.0
  %v2635 = vadd.f32 %v2633, %v2634
  %v2636 = vsel %vm1368, %v2607, 0.0
  %v2637 = vadd.f32 %v2635, %v2636
  %v2638 = vsel %vm1368, %v2608, 0.0
  %v2639 = vadd.f32 %v2637, %v2638
  %v2640 = vrot.slane %v2639, 4
  %v2641 = vadd.f32 %v2639, %v2640
  %v2642 = vrot.slane %v2641, 2
  %v2643 = vadd.f32 %v2641, %v2642
  %v2644 = vrot.slane %v2643, 1
  %v2645 = vadd.f32 %v2643, %v2644
  %v2646 = vmul.f32 %v2645, %v220
  %v2647 = vmul.f32 %v2592, %v2592
  %v2648 = vsub.f32 %v2646, %v2647
  %v2649 = vadd.f32 %v2648, 1e-05
  %v2650 = vrsqrt.pop %v2649
  %v2651 = vmul.f32 %v2650, %v2649
  %v2652 = vmul.f32 %v2651, %v2650
  %v2653 = vmul.f32 0.5, %v2652
  %v2654 = vsub.f32 1.5, %v2653
  %v2655 = vmul.f32 %v2650, %v2654
  %vm2656 = vweird.f32 %v2649
  %vm2657 = vweird.f32 %v2650
  %vm2658 = vmor %vm2656, %vm2657
  %v2659 = vsel %vm2658, %v2650, %v2655
  %v2660 = vmul.f32 %v2553, %v2659
  %v2661 = vmul.f32 %v2592, %v2660
  %v2662 = vsub.f32 %v2554, %v2661
  %v2664 = vperm.slane %v2660, 0
  %v2666 = vmul.f32 %v2506, %v2664
  %v2667 = vmul.f32 %v2509, %v2664
  %v2668 = vmul.f32 %v2512, %v2664
  %v2669 = vmul.f32 %v2515, %v2664
  %v2670 = vmul.f32 %v2518, %v2664
  %v2671 = vmul.f32 %v2521, %v2664
  %v2672 = vmul.f32 %v2524, %v2664
  %v2673 = vmul.f32 %v2527, %v2664
  %v2674 = vmul.f32 %v2530, %v2664
  %v2675 = vmul.f32 %v2533, %v2664
  %v2676 = vmul.f32 %v2536, %v2664
  %v2677 = vmul.f32 %v2539, %v2664
  %v2678 = vmul.f32 %v2542, %v2664
  %v2679 = vmul.f32 %v2545, %v2664
  %v2680 = vmul.f32 %v2548, %v2664
  %v2681 = vmul.f32 %v2551, %v2664
  %v2683 = vperm.slane %v2662, 0
  %v2685 = vadd.f32 %v2666, %v2683
  %v2686 = vadd.f32 %v2667, %v2683
  %v2687 = vadd.f32 %v2668, %v2683
  %v2688 = vadd.f32 %v2669, %v2683
  %v2689 = vadd.f32 %v2670, %v2683
  %v2690 = vadd.f32 %v2671, %v2683
  %v2691 = vadd.f32 %v2672, %v2683
  %v2692 = vadd.f32 %v2673, %v2683
  %v2693 = vadd.f32 %v2674, %v2683
  %v2694 = vadd.f32 %v2675, %v2683
  %v2695 = vadd.f32 %v2676, %v2683
  %v2696 = vadd.f32 %v2677, %v2683
  %v2697 = vadd.f32 %v2678, %v2683
  %v2698 = vadd.f32 %v2679, %v2683
  %v2699 = vadd.f32 %v2680, %v2683
  %v2700 = vadd.f32 %v2681, %v2683
  %v2701 = vmul.f32 %v2685, 0.1
  %v2702 = vmul.f32 %v2686, 0.1
  %v2703 = vmul.f32 %v2687, 0.1
  %v2704 = vmul.f32 %v2688, 0.1
  %v2705 = vmul.f32 %v2689, 0.1
  %v2706 = vmul.f32 %v2690, 0.1
  %v2707 = vmul.f32 %v2691, 0.1
  %v2708 = vmul.f32 %v2692, 0.1
  %v2709 = vmul.f32 %v2693, 0.1
  %v2710 = vmul.f32 %v2694, 0.1
  %v2711 = vmul.f32 %v2695, 0.1
  %v2712 = vmul.f32 %v2696, 0.1
  %v2713 = vmul.f32 %v2697, 0.1
  %v2714 = vmul.f32 %v2698, 0.1
  %v2715 = vmul.f32 %v2699, 0.1
  %v2716 = vmul.f32 %v2700, 0.1
  %v2717 = vmax.f32 %v2685, %v2701
  %v2718 = vmax.f32 %v2686, %v2702
  %v2719 = vmax.f32 %v2687, %v2703
  %v2720 = vmax.f32 %v2688, %v2704
  %v2721 = vmax.f32 %v2689, %v2705
  %v2722 = vmax.f32 %v2690, %v2706
  %v2723 = vmax.f32 %v2691, %v2707
  %v2724 = vmax.f32 %v2692, %v2708
  %v2725 = vmax.f32 %v2693, %v2709
  %v2726 = vmax.f32 %v2694, %v2710
  %v2727 = vmax.f32 %v2695, %v2711
  %v2728 = vmax.f32 %v2696, %v2712
  %v2729 = vmax.f32 %v2697, %v2713
  %v2730 = vmax.f32 %v2698, %v2714
  %v2731 = vmax.f32 %v2699, %v2715
  %v2732 = vmax.f32 %v2700, %v2716
  %2733 = vst.msk [vmem:[%s10] sm:$0xff] %vm1368, %v2717
  %2734 = vst.msk [vmem:[%s10 + $0x8] sm:$0xff] %vm1368, %v2718
  %2735 = vst.msk [vmem:[%s10 + $0x10] sm:$0xff] %vm1368, %v2719
  %2736 = vst.msk [vmem:[%s10 + $0x18] sm:$0xff] %vm1368, %v2720
  %2737 = vst.msk [vmem:[%s10 + $0x20] sm:$0xff] %vm1368, %v2721
  %2738 = vst.msk [vmem:[%s10 + $0x28] sm:$0xff] %vm1368, %v2722
  %2739 = vst.msk [vmem:[%s10 + $0x30] sm:$0xff] %vm1368, %v2723
  %2740 = vst.msk [vmem:[%s10 + $0x38] sm:$0xff] %vm1368, %v2724
  %2741 = vst.msk [vmem:[%s10 + $0x40] sm:$0xff] %vm1368, %v2725
  %2742 = vst.msk [vmem:[%s10 + $0x48] sm:$0xff] %vm1368, %v2726
  %2743 = vst.msk [vmem:[%s10 + $0x50] sm:$0xff] %vm1368, %v2727
  %2744 = vst.msk [vmem:[%s10 + $0x58] sm:$0xff] %vm1368, %v2728
  %2745 = vst.msk [vmem:[%s10 + $0x60] sm:$0xff] %vm1368, %v2729
  %2746 = vst.msk [vmem:[%s10 + $0x68] sm:$0xff] %vm1368, %v2730
  %2747 = vst.msk [vmem:[%s10 + $0x70] sm:$0xff] %vm1368, %v2731
  %2748 = vst.msk [vmem:[%s10 + $0x78] sm:$0xff] %vm1368, %v2732
  // Predicated region
  $region42: #{down_forward.1} parent=0 // pred_check
    _
  $region43: #{down_forward.1} parent=0 // pred_check_branch
    %2750 = sbr.rel (0) target = $region45
  $region44: #{down_forward.1} parent=0 // pred_region
    _
  $region45: #{down_forward.1} parent=0 // pred_fallthru
    _
  // Predicated region
  $region46: #{down_forward.1} parent=0 // pred_check
    _
  $region47: #{down_forward.1} parent=0 // pred_check_branch
    %2752 = sbr.rel (0) target = $region49
  $region48: #{down_forward.1} parent=0 // pred_region
    _
  $region49: #{down_forward.1} parent=0 // pred_fallthru
    _

</llo_original>
